<compile_context>
chip_gen: v5e
topology: v5e:2x2
jax: 0.10.0
libtpu: 0.0.40
codegen_flags: <defaults>
</compile_context>

<pallas_src>
import functools

import jax
import jax.numpy as jnp
from jax.experimental import pallas as pl
from jax.experimental.pallas import tpu as pltpu


# ----------------------------- in-kernel helpers ---------------------------- #

def _shift_matrix(m, length, offset):
    """0/1 matrix S (m, m): (S @ x)[i] = x[i + offset] if i + offset stays inside
    the same length-`length` sample of the flattened (B*L) axis, else 0
    (implements 'same' zero padding without jnp.pad or misaligned slices)."""
    i = jax.lax.broadcasted_iota(jnp.int32, (m, m), 0)
    j = jax.lax.broadcasted_iota(jnp.int32, (m, m), 1)
    keep = j == i + offset
    same = jnp.zeros((m, m), jnp.bool_)
    for b in range(m // length):          # static, B terms of pure compares
        lo, hi = b * length, (b + 1) * length
        same = same | ((i >= lo) & (i < hi) & (j >= lo) & (j < hi))
    return (keep & same).astype(jnp.float32)


def _pool_selectors(m):
    """0/1 matrices E, O (m//2, m) selecting even / odd rows (MaxPool1d(2))."""
    i = jax.lax.broadcasted_iota(jnp.int32, (m // 2, m), 0)
    j = jax.lax.broadcasted_iota(jnp.int32, (m // 2, m), 1)
    even = (j == 2 * i).astype(jnp.float32)
    odd = (j == 2 * i + 1).astype(jnp.float32)
    return even, odd


def _avg_matrix(batch, lf):
    """(batch, batch*lf) matrix averaging each sample's lf rows
    (AdaptiveAvgPool1d(1) on the flattened layout)."""
    b = jax.lax.broadcasted_iota(jnp.int32, (batch, batch * lf), 0)
    j = jax.lax.broadcasted_iota(jnp.int32, (batch, batch * lf), 1)
    sel = (j >= b * lf) & (j < (b + 1) * lf)
    return sel.astype(jnp.float32) * (1.0 / float(lf))


def _f32dot(a, b):
    return jnp.dot(a, b, preferred_element_type=jnp.float32)


def _conv_bn_relu_pool(h, w_ref, shift_ref, length):
    """h: (M, Cin) f32 flattened activations, M = B*length.
    w_ref: (K, Cin, Cout) bf16 (BN scale pre-folded); shift_ref: (1, Cout) f32.
    Returns MaxPool1d(2) output, shape (M//2, Cout) f32."""
    m = h.shape[0]
    k = w_ref.shape[0]
    cout = w_ref.shape[2]
    pad = (k - 1) // 2
    acc = jnp.zeros((m, cout), jnp.float32)
    for t in range(k):                                     # static tap loop
        off = t - pad
        xs = h if off == 0 else _f32dot(_shift_matrix(m, length, off), h)
        acc = acc + _f32dot(xs.astype(jnp.bfloat16), w_ref[t])
    y = jnp.maximum(acc + shift_ref[...], 0.0)             # folded BN shift + ReLU
    even, odd = _pool_selectors(m)                         # fused MaxPool1d(2)
    return jnp.maximum(_f32dot(even, y), _f32dot(odd, y))


# ------------------------------ fused kernel -------------------------------- #

def _fused_forward_kernel(x1_ref, w1_ref, s1_ref, w2_ref, s2_ref, w3_ref,
                          s3_ref, w4_ref, s4_ref, fw1_ref, fb1_ref, fw2_ref,
                          fb2_ref, o_ref, *, batch, length):
    # layer 1: im2col'ed conv (one matmul) + folded BN shift + ReLU + pool
    h = jnp.maximum(
        _f32dot(x1_ref[...].astype(jnp.bfloat16), w1_ref[...]) + s1_ref[...],
        0.0)
    even, odd = _pool_selectors(batch * length)
    h = jnp.maximum(_f32dot(even, h), _f32dot(odd, h))          # (B*L/2, 64)

    # layers 2..4
    h = _conv_bn_relu_pool(h, w2_ref, s2_ref, length // 2)      # (B*L/4, 128)
    h = _conv_bn_relu_pool(h, w3_ref, s3_ref, length // 4)      # (B*L/8, 256)
    h = _conv_bn_relu_pool(h, w4_ref, s4_ref, length // 8)      # (B*L/16, 256)

    # head: global average pool + fc1 + ReLU + (identity dropout) + fc2
    pooled = _f32dot(_avg_matrix(batch, length // 16), h)       # (B, 256)
    z = jnp.maximum(
        _f32dot(pooled.astype(jnp.bfloat16), fw1_ref[...]) + fb1_ref[...], 0.0)
    o_ref[...] = _f32dot(z.astype(jnp.bfloat16), fw2_ref[...]) + fb2_ref[...]


# ------------------------------- JAX wrapper -------------------------------- #

@jax.jit
def cnn1d_large_forward(x_ncl, params):
    """x_ncl: (B, C_in, L) PyTorch NCL layout -> logits (B, num_classes)."""
    b, cin, length = x_ncl.shape
    assert length % 16 == 0, "L must be divisible by 2**4 for the 4 maxpools"

    x = jnp.transpose(x_ncl, (0, 2, 1)).astype(jnp.float32)     # (B, L, Cin)
    # im2col for layer 1 ('same' padding, kernel_size=5): (B*L, K1*Cin)
    ksize1, pad1 = 5, 2
    xp = jnp.pad(x, ((0, 0), (pad1, pad1), (0, 0)))
    cols = jnp.stack([xp[:, t:t + length, :] for t in range(ksize1)], axis=2)
    x1 = cols.reshape(b * length, ksize1 * cin)

    num_classes = params["fb2"].shape[1]
    kernel = functools.partial(_fused_forward_kernel, batch=b, length=length)
    vmem = pl.BlockSpec(memory_space=pltpu.MemorySpace.VMEM)
    return pl.pallas_call(
        kernel,
        out_shape=jax.ShapeDtypeStruct((b, num_classes), jnp.float32),
        in_specs=[vmem] * 13,
        out_specs=vmem,
    )(x1, params["w1"], params["s1"], params["w2"], params["s2"],
      params["w3"], params["s3"], params["w4"], params["s4"],
      params["fw1"], params["fb1"], params["fw2"], params["fb2"])


# --------------------------- parameter construction -------------------------- #

def init_params(key, input_channels=1, num_classes=3):
    eps = 1e-5

    def conv_layer(k, cin, cout, ksize):
        kw, kb, kg, kbe, km, kv = jax.random.split(k, 6)
        # Conv weight in (K, Cin, Cout) layout (PyTorch (Cout, Cin, K) transposed).
        w = jax.random.normal(kw, (ksize, cin, cout), jnp.float32) / jnp.sqrt(cin * ksize)
        bias = 0.01 * jax.random.normal(kb, (cout,), jnp.float32)
        gamma = 1.0 + 0.1 * jax.random.normal(kg, (cout,), jnp.float32)
        beta = 0.1 * jax.random.normal(kbe, (cout,), jnp.float32)
        rmean = 0.1 * jax.random.normal(km, (cout,), jnp.float32)
        rvar = 1.0 + 0.1 * jax.random.uniform(kv, (cout,), jnp.float32)
        s = gamma / jnp.sqrt(rvar + eps)
        w_folded = (w * s[None, None, :]).astype(jnp.bfloat16)   # fold BN scale
        shift = (s * (bias - rmean) + beta).reshape(1, cout)     # bias + BN shift
        return w_folded, shift

    k1, k2, k3, k4, k5, k6 = jax.random.split(key, 6)
    w1, s1 = conv_layer(k1, input_channels, 64, 5)
    w2, s2 = conv_layer(k2, 64, 128, 5)
    w3, s3 = conv_layer(k3, 128, 256, 3)
    w4, s4 = conv_layer(k4, 256, 256, 3)
    fw1 = (jax.random.normal(k5, (256, 64), jnp.float32) / jnp.sqrt(256.0)
           ).astype(jnp.bfloat16)
    fb1 = jnp.zeros((1, 64), jnp.float32)
    fw2 = (jax.random.normal(k6, (64, num_classes), jnp.float32) / jnp.sqrt(64.0)
           ).astype(jnp.bfloat16)
    fb2 = jnp.zeros((1, num_classes), jnp.float32)
    return {
        # layer-1 weights reshaped for the im2col matmul: (K1*Cin, 64)
        "w1": w1.reshape(5 * input_channels, 64),
        "s1": s1, "w2": w2, "s2": s2, "w3": w3, "s3": s3, "w4": w4, "s4": s4,
        "fw1": fw1, "fb1": fb1, "fw2": fw2, "fb2": fb2,
    }


# ----------------------------------- main ------------------------------------ #

if __name__ == "__main__":
    key = jax.random.PRNGKey(0)
    kx, kp = jax.random.split(key)

    B, C_in, L = 2, 1, 32          # L divisible by 2**4 for the 4 maxpools
    x = jax.random.normal(kx, (B, C_in, L), jnp.float32)
    params = init_params(kp, input_channels=C_in, num_classes=3)

    out = cnn1d_large_forward(x, params)
    out = jax.block_until_ready(out)

    assert out.shape == (B, 3), out.shape
    assert bool(jnp.all(jnp.isfinite(out)))
    print("KERNEL_OK")
</pallas_src>

<mosaic_0001>
module attributes {stable_mosaic.version = 11 : i64} {
  func.func @_fused_forward_kernel(%arg0: memref<64x5xf32, #tpu.memory_space<vmem>>, %arg1: memref<5x64xbf16, #tpu.memory_space<vmem>>, %arg2: memref<1x64xf32, #tpu.memory_space<vmem>>, %arg3: memref<5x64x128xbf16, #tpu.memory_space<vmem>>, %arg4: memref<1x128xf32, #tpu.memory_space<vmem>>, %arg5: memref<3x128x256xbf16, #tpu.memory_space<vmem>>, %arg6: memref<1x256xf32, #tpu.memory_space<vmem>>, %arg7: memref<3x256x256xbf16, #tpu.memory_space<vmem>>, %arg8: memref<1x256xf32, #tpu.memory_space<vmem>>, %arg9: memref<256x64xbf16, #tpu.memory_space<vmem>>, %arg10: memref<1x64xf32, #tpu.memory_space<vmem>>, %arg11: memref<64x3xbf16, #tpu.memory_space<vmem>>, %arg12: memref<1x3xf32, #tpu.memory_space<vmem>>, %arg13: memref<2x3xf32, #tpu.memory_space<vmem>>) attributes {dimension_semantics = [], scalar_prefetch = 0 : i64, scratch_operands = 0 : i64, tpu.core_type = #tpu.core_type<tc>} {
    %c0 = arith.constant 0 : index
    %c0_0 = arith.constant 0 : index
    %0 = vector.load %arg0[%c0, %c0_0] : memref<64x5xf32, #tpu.memory_space<vmem>>, vector<64x5xf32>
    %1 = arith.truncf %0 : vector<64x5xf32> to vector<64x5xbf16>
    %c0_1 = arith.constant 0 : index
    %c0_2 = arith.constant 0 : index
    %2 = vector.load %arg1[%c0_1, %c0_2] : memref<5x64xbf16, #tpu.memory_space<vmem>>, vector<5x64xbf16>
    %cst = arith.constant dense<0.000000e+00> : vector<64x64xf32>
    %3 = tpu.matmul %1, %2, %cst {dimension_numbers = #tpu.dot_dimension_numbers<[1], [0], [0], [1], [0, 0, 1, 1], [], []>} : vector<64x5xbf16>, vector<5x64xbf16>, vector<64x64xf32> -> vector<64x64xf32>
    %c0_3 = arith.constant 0 : index
    %c0_4 = arith.constant 0 : index
    %4 = vector.load %arg2[%c0_3, %c0_4] : memref<1x64xf32, #tpu.memory_space<vmem>>, vector<1x64xf32>
    %5 = vector.broadcast %4 : vector<1x64xf32> to vector<64x64xf32>
    %6 = arith.addf %3, %5 : vector<64x64xf32>
    %cst_5 = arith.constant 0.000000e+00 : f32
    %7 = vector.broadcast %cst_5 : f32 to vector<64x64xf32>
    %8 = arith.maximumf %6, %7 : vector<64x64xf32>
    %9 = tpu.iota {dimensions = array<i32: 0>} : vector<32x64xi32>
    %10 = tpu.iota {dimensions = array<i32: 1>} : vector<32x64xi32>
    %c2_i32 = arith.constant 2 : i32
    %11 = vector.broadcast %c2_i32 : i32 to vector<32x64xi32>
    %12 = arith.muli %11, %9 : vector<32x64xi32>
    %13 = arith.cmpi eq, %10, %12 : vector<32x64xi32>
    %14 = arith.extui %13 : vector<32x64xi1> to vector<32x64xi32>
    %15 = arith.sitofp %14 : vector<32x64xi32> to vector<32x64xf32>
    %c2_i32_6 = arith.constant 2 : i32
    %16 = vector.broadcast %c2_i32_6 : i32 to vector<32x64xi32>
    %17 = arith.muli %16, %9 : vector<32x64xi32>
    %c1_i32 = arith.constant 1 : i32
    %18 = vector.broadcast %c1_i32 : i32 to vector<32x64xi32>
    %19 = arith.addi %17, %18 : vector<32x64xi32>
    %20 = arith.cmpi eq, %10, %19 : vector<32x64xi32>
    %21 = arith.extui %20 : vector<32x64xi1> to vector<32x64xi32>
    %22 = arith.sitofp %21 : vector<32x64xi32> to vector<32x64xf32>
    %cst_7 = arith.constant dense<0.000000e+00> : vector<32x64xf32>
    %23 = tpu.matmul %15, %8, %cst_7 {dimension_numbers = #tpu.dot_dimension_numbers<[1], [0], [0], [1], [0, 0, 1, 1], [], []>} : vector<32x64xf32>, vector<64x64xf32>, vector<32x64xf32> -> vector<32x64xf32>
    %cst_8 = arith.constant dense<0.000000e+00> : vector<32x64xf32>
    %24 = tpu.matmul %22, %8, %cst_8 {dimension_numbers = #tpu.dot_dimension_numbers<[1], [0], [0], [1], [0, 0, 1, 1], [], []>} : vector<32x64xf32>, vector<64x64xf32>, vector<32x64xf32> -> vector<32x64xf32>
    %25 = arith.maximumf %23, %24 : vector<32x64xf32>
    %cst_9 = arith.constant 0.000000e+00 : f32
    %26 = vector.broadcast %cst_9 : f32 to vector<32x128xf32>
    %27 = tpu.iota {dimensions = array<i32: 0>} : vector<32x32xi32>
    %28 = tpu.iota {dimensions = array<i32: 1>} : vector<32x32xi32>
    %c-2_i32 = arith.constant -2 : i32
    %29 = vector.broadcast %c-2_i32 : i32 to vector<32x32xi32>
    %30 = arith.addi %27, %29 : vector<32x32xi32>
    %31 = arith.cmpi eq, %28, %30 : vector<32x32xi32>
    %false = arith.constant false
    %32 = vector.broadcast %false : i1 to vector<32x32xi1>
    %c0_i32 = arith.constant 0 : i32
    %33 = vector.broadcast %c0_i32 : i32 to vector<32x32xi32>
    %34 = arith.cmpi sge, %27, %33 : vector<32x32xi32>
    %c16_i32 = arith.constant 16 : i32
    %35 = vector.broadcast %c16_i32 : i32 to vector<32x32xi32>
    %36 = arith.cmpi slt, %27, %35 : vector<32x32xi32>
    %37 = arith.andi %34, %36 : vector<32x32xi1>
    %c0_i32_10 = arith.constant 0 : i32
    %38 = vector.broadcast %c0_i32_10 : i32 to vector<32x32xi32>
    %39 = arith.cmpi sge, %28, %38 : vector<32x32xi32>
    %40 = arith.andi %37, %39 : vector<32x32xi1>
    %c16_i32_11 = arith.constant 16 : i32
    %41 = vector.broadcast %c16_i32_11 : i32 to vector<32x32xi32>
    %42 = arith.cmpi slt, %28, %41 : vector<32x32xi32>
    %43 = arith.andi %40, %42 : vector<32x32xi1>
    %44 = arith.ori %32, %43 : vector<32x32xi1>
    %c16_i32_12 = arith.constant 16 : i32
    %45 = vector.broadcast %c16_i32_12 : i32 to vector<32x32xi32>
    %46 = arith.cmpi sge, %27, %45 : vector<32x32xi32>
    %c32_i32 = arith.constant 32 : i32
    %47 = vector.broadcast %c32_i32 : i32 to vector<32x32xi32>
    %48 = arith.cmpi slt, %27, %47 : vector<32x32xi32>
    %49 = arith.andi %46, %48 : vector<32x32xi1>
    %c16_i32_13 = arith.constant 16 : i32
    %50 = vector.broadcast %c16_i32_13 : i32 to vector<32x32xi32>
    %51 = arith.cmpi sge, %28, %50 : vector<32x32xi32>
    %52 = arith.andi %49, %51 : vector<32x32xi1>
    %c32_i32_14 = arith.constant 32 : i32
    %53 = vector.broadcast %c32_i32_14 : i32 to vector<32x32xi32>
    %54 = arith.cmpi slt, %28, %53 : vector<32x32xi32>
    %55 = arith.andi %52, %54 : vector<32x32xi1>
    %56 = arith.ori %44, %55 : vector<32x32xi1>
    %57 = arith.andi %31, %56 : vector<32x32xi1>
    %58 = arith.extui %57 : vector<32x32xi1> to vector<32x32xi32>
    %59 = arith.sitofp %58 : vector<32x32xi32> to vector<32x32xf32>
    %cst_15 = arith.constant dense<0.000000e+00> : vector<32x64xf32>
    %60 = tpu.matmul %59, %25, %cst_15 {dimension_numbers = #tpu.dot_dimension_numbers<[1], [0], [0], [1], [0, 0, 1, 1], [], []>} : vector<32x32xf32>, vector<32x64xf32>, vector<32x64xf32> -> vector<32x64xf32>
    %61 = arith.truncf %60 : vector<32x64xf32> to vector<32x64xbf16>
    %c0_16 = arith.constant 0 : index
    %c0_17 = arith.constant 0 : index
    %c0_18 = arith.constant 0 : index
    %62 = vector.load %arg3[%c0_16, %c0_17, %c0_18] : memref<5x64x128xbf16, #tpu.memory_space<vmem>>, vector<1x64x128xbf16>
    %63 = vector.shape_cast %62 : vector<1x64x128xbf16> to vector<64x128xbf16>
    %cst_19 = arith.constant dense<0.000000e+00> : vector<32x128xf32>
    %64 = tpu.matmul %61, %63, %cst_19 {dimension_numbers = #tpu.dot_dimension_numbers<[1], [0], [0], [1], [0, 0, 1, 1], [], []>} : vector<32x64xbf16>, vector<64x128xbf16>, vector<32x128xf32> -> vector<32x128xf32>
    %65 = arith.addf %26, %64 : vector<32x128xf32>
    %66 = tpu.iota {dimensions = array<i32: 0>} : vector<32x32xi32>
    %67 = tpu.iota {dimensions = array<i32: 1>} : vector<32x32xi32>
    %c-1_i32 = arith.constant -1 : i32
    %68 = vector.broadcast %c-1_i32 : i32 to vector<32x32xi32>
    %69 = arith.addi %66, %68 : vector<32x32xi32>
    %70 = arith.cmpi eq, %67, %69 : vector<32x32xi32>
    %false_20 = arith.constant false
    %71 = vector.broadcast %false_20 : i1 to vector<32x32xi1>
    %c0_i32_21 = arith.constant 0 : i32
    %72 = vector.broadcast %c0_i32_21 : i32 to vector<32x32xi32>
    %73 = arith.cmpi sge, %66, %72 : vector<32x32xi32>
    %c16_i32_22 = arith.constant 16 : i32
    %74 = vector.broadcast %c16_i32_22 : i32 to vector<32x32xi32>
    %75 = arith.cmpi slt, %66, %74 : vector<32x32xi32>
    %76 = arith.andi %73, %75 : vector<32x32xi1>
    %c0_i32_23 = arith.constant 0 : i32
    %77 = vector.broadcast %c0_i32_23 : i32 to vector<32x32xi32>
    %78 = arith.cmpi sge, %67, %77 : vector<32x32xi32>
    %79 = arith.andi %76, %78 : vector<32x32xi1>
    %c16_i32_24 = arith.constant 16 : i32
    %80 = vector.broadcast %c16_i32_24 : i32 to vector<32x32xi32>
    %81 = arith.cmpi slt, %67, %80 : vector<32x32xi32>
    %82 = arith.andi %79, %81 : vector<32x32xi1>
    %83 = arith.ori %71, %82 : vector<32x32xi1>
    %c16_i32_25 = arith.constant 16 : i32
    %84 = vector.broadcast %c16_i32_25 : i32 to vector<32x32xi32>
    %85 = arith.cmpi sge, %66, %84 : vector<32x32xi32>
    %c32_i32_26 = arith.constant 32 : i32
    %86 = vector.broadcast %c32_i32_26 : i32 to vector<32x32xi32>
    %87 = arith.cmpi slt, %66, %86 : vector<32x32xi32>
    %88 = arith.andi %85, %87 : vector<32x32xi1>
    %c16_i32_27 = arith.constant 16 : i32
    %89 = vector.broadcast %c16_i32_27 : i32 to vector<32x32xi32>
    %90 = arith.cmpi sge, %67, %89 : vector<32x32xi32>
    %91 = arith.andi %88, %90 : vector<32x32xi1>
    %c32_i32_28 = arith.constant 32 : i32
    %92 = vector.broadcast %c32_i32_28 : i32 to vector<32x32xi32>
    %93 = arith.cmpi slt, %67, %92 : vector<32x32xi32>
    %94 = arith.andi %91, %93 : vector<32x32xi1>
    %95 = arith.ori %83, %94 : vector<32x32xi1>
    %96 = arith.andi %70, %95 : vector<32x32xi1>
    %97 = arith.extui %96 : vector<32x32xi1> to vector<32x32xi32>
    %98 = arith.sitofp %97 : vector<32x32xi32> to vector<32x32xf32>
    %cst_29 = arith.constant dense<0.000000e+00> : vector<32x64xf32>
    %99 = tpu.matmul %98, %25, %cst_29 {dimension_numbers = #tpu.dot_dimension_numbers<[1], [0], [0], [1], [0, 0, 1, 1], [], []>} : vector<32x32xf32>, vector<32x64xf32>, vector<32x64xf32> -> vector<32x64xf32>
    %100 = arith.truncf %99 : vector<32x64xf32> to vector<32x64xbf16>
    %c1 = arith.constant 1 : index
    %c0_30 = arith.constant 0 : index
    %c0_31 = arith.constant 0 : index
    %101 = vector.load %arg3[%c1, %c0_30, %c0_31] : memref<5x64x128xbf16, #tpu.memory_space<vmem>>, vector<1x64x128xbf16>
    %102 = vector.shape_cast %101 : vector<1x64x128xbf16> to vector<64x128xbf16>
    %cst_32 = arith.constant dense<0.000000e+00> : vector<32x128xf32>
    %103 = tpu.matmul %100, %102, %cst_32 {dimension_numbers = #tpu.dot_dimension_numbers<[1], [0], [0], [1], [0, 0, 1, 1], [], []>} : vector<32x64xbf16>, vector<64x128xbf16>, vector<32x128xf32> -> vector<32x128xf32>
    %104 = arith.addf %65, %103 : vector<32x128xf32>
    %105 = arith.truncf %25 : vector<32x64xf32> to vector<32x64xbf16>
    %c2 = arith.constant 2 : index
    %c0_33 = arith.constant 0 : index
    %c0_34 = arith.constant 0 : index
    %106 = vector.load %arg3[%c2, %c0_33, %c0_34] : memref<5x64x128xbf16, #tpu.memory_space<vmem>>, vector<1x64x128xbf16>
    %107 = vector.shape_cast %106 : vector<1x64x128xbf16> to vector<64x128xbf16>
    %cst_35 = arith.constant dense<0.000000e+00> : vector<32x128xf32>
    %108 = tpu.matmul %105, %107, %cst_35 {dimension_numbers = #tpu.dot_dimension_numbers<[1], [0], [0], [1], [0, 0, 1, 1], [], []>} : vector<32x64xbf16>, vector<64x128xbf16>, vector<32x128xf32> -> vector<32x128xf32>
    %109 = arith.addf %104, %108 : vector<32x128xf32>
    %110 = tpu.iota {dimensions = array<i32: 0>} : vector<32x32xi32>
    %111 = tpu.iota {dimensions = array<i32: 1>} : vector<32x32xi32>
    %c1_i32_36 = arith.constant 1 : i32
    %112 = vector.broadcast %c1_i32_36 : i32 to vector<32x32xi32>
    %113 = arith.addi %110, %112 : vector<32x32xi32>
    %114 = arith.cmpi eq, %111, %113 : vector<32x32xi32>
    %false_37 = arith.constant false
    %115 = vector.broadcast %false_37 : i1 to vector<32x32xi1>
    %c0_i32_38 = arith.constant 0 : i32
    %116 = vector.broadcast %c0_i32_38 : i32 to vector<32x32xi32>
    %117 = arith.cmpi sge, %110, %116 : vector<32x32xi32>
    %c16_i32_39 = arith.constant 16 : i32
    %118 = vector.broadcast %c16_i32_39 : i32 to vector<32x32xi32>
    %119 = arith.cmpi slt, %110, %118 : vector<32x32xi32>
    %120 = arith.andi %117, %119 : vector<32x32xi1>
    %c0_i32_40 = arith.constant 0 : i32
    %121 = vector.broadcast %c0_i32_40 : i32 to vector<32x32xi32>
    %122 = arith.cmpi sge, %111, %121 : vector<32x32xi32>
    %123 = arith.andi %120, %122 : vector<32x32xi1>
    %c16_i32_41 = arith.constant 16 : i32
    %124 = vector.broadcast %c16_i32_41 : i32 to vector<32x32xi32>
    %125 = arith.cmpi slt, %111, %124 : vector<32x32xi32>
    %126 = arith.andi %123, %125 : vector<32x32xi1>
    %127 = arith.ori %115, %126 : vector<32x32xi1>
    %c16_i32_42 = arith.constant 16 : i32
    %128 = vector.broadcast %c16_i32_42 : i32 to vector<32x32xi32>
    %129 = arith.cmpi sge, %110, %128 : vector<32x32xi32>
    %c32_i32_43 = arith.constant 32 : i32
    %130 = vector.broadcast %c32_i32_43 : i32 to vector<32x32xi32>
    %131 = arith.cmpi slt, %110, %130 : vector<32x32xi32>
    %132 = arith.andi %129, %131 : vector<32x32xi1>
    %c16_i32_44 = arith.constant 16 : i32
    %133 = vector.broadcast %c16_i32_44 : i32 to vector<32x32xi32>
    %134 = arith.cmpi sge, %111, %133 : vector<32x32xi32>
    %135 = arith.andi %132, %134 : vector<32x32xi1>
    %c32_i32_45 = arith.constant 32 : i32
    %136 = vector.broadcast %c32_i32_45 : i32 to vector<32x32xi32>
    %137 = arith.cmpi slt, %111, %136 : vector<32x32xi32>
    %138 = arith.andi %135, %137 : vector<32x32xi1>
    %139 = arith.ori %127, %138 : vector<32x32xi1>
    %140 = arith.andi %114, %139 : vector<32x32xi1>
    %141 = arith.extui %140 : vector<32x32xi1> to vector<32x32xi32>
    %142 = arith.sitofp %141 : vector<32x32xi32> to vector<32x32xf32>
    %cst_46 = arith.constant dense<0.000000e+00> : vector<32x64xf32>
    %143 = tpu.matmul %142, %25, %cst_46 {dimension_numbers = #tpu.dot_dimension_numbers<[1], [0], [0], [1], [0, 0, 1, 1], [], []>} : vector<32x32xf32>, vector<32x64xf32>, vector<32x64xf32> -> vector<32x64xf32>
    %144 = arith.truncf %143 : vector<32x64xf32> to vector<32x64xbf16>
    %c3 = arith.constant 3 : index
    %c0_47 = arith.constant 0 : index
    %c0_48 = arith.constant 0 : index
    %145 = vector.load %arg3[%c3, %c0_47, %c0_48] : memref<5x64x128xbf16, #tpu.memory_space<vmem>>, vector<1x64x128xbf16>
    %146 = vector.shape_cast %145 : vector<1x64x128xbf16> to vector<64x128xbf16>
    %cst_49 = arith.constant dense<0.000000e+00> : vector<32x128xf32>
    %147 = tpu.matmul %144, %146, %cst_49 {dimension_numbers = #tpu.dot_dimension_numbers<[1], [0], [0], [1], [0, 0, 1, 1], [], []>} : vector<32x64xbf16>, vector<64x128xbf16>, vector<32x128xf32> -> vector<32x128xf32>
    %148 = arith.addf %109, %147 : vector<32x128xf32>
    %149 = tpu.iota {dimensions = array<i32: 0>} : vector<32x32xi32>
    %150 = tpu.iota {dimensions = array<i32: 1>} : vector<32x32xi32>
    %c2_i32_50 = arith.constant 2 : i32
    %151 = vector.broadcast %c2_i32_50 : i32 to vector<32x32xi32>
    %152 = arith.addi %149, %151 : vector<32x32xi32>
    %153 = arith.cmpi eq, %150, %152 : vector<32x32xi32>
    %false_51 = arith.constant false
    %154 = vector.broadcast %false_51 : i1 to vector<32x32xi1>
    %c0_i32_52 = arith.constant 0 : i32
    %155 = vector.broadcast %c0_i32_52 : i32 to vector<32x32xi32>
    %156 = arith.cmpi sge, %149, %155 : vector<32x32xi32>
    %c16_i32_53 = arith.constant 16 : i32
    %157 = vector.broadcast %c16_i32_53 : i32 to vector<32x32xi32>
    %158 = arith.cmpi slt, %149, %157 : vector<32x32xi32>
    %159 = arith.andi %156, %158 : vector<32x32xi1>
    %c0_i32_54 = arith.constant 0 : i32
    %160 = vector.broadcast %c0_i32_54 : i32 to vector<32x32xi32>
    %161 = arith.cmpi sge, %150, %160 : vector<32x32xi32>
    %162 = arith.andi %159, %161 : vector<32x32xi1>
    %c16_i32_55 = arith.constant 16 : i32
    %163 = vector.broadcast %c16_i32_55 : i32 to vector<32x32xi32>
    %164 = arith.cmpi slt, %150, %163 : vector<32x32xi32>
    %165 = arith.andi %162, %164 : vector<32x32xi1>
    %166 = arith.ori %154, %165 : vector<32x32xi1>
    %c16_i32_56 = arith.constant 16 : i32
    %167 = vector.broadcast %c16_i32_56 : i32 to vector<32x32xi32>
    %168 = arith.cmpi sge, %149, %167 : vector<32x32xi32>
    %c32_i32_57 = arith.constant 32 : i32
    %169 = vector.broadcast %c32_i32_57 : i32 to vector<32x32xi32>
    %170 = arith.cmpi slt, %149, %169 : vector<32x32xi32>
    %171 = arith.andi %168, %170 : vector<32x32xi1>
    %c16_i32_58 = arith.constant 16 : i32
    %172 = vector.broadcast %c16_i32_58 : i32 to vector<32x32xi32>
    %173 = arith.cmpi sge, %150, %172 : vector<32x32xi32>
    %174 = arith.andi %171, %173 : vector<32x32xi1>
    %c32_i32_59 = arith.constant 32 : i32
    %175 = vector.broadcast %c32_i32_59 : i32 to vector<32x32xi32>
    %176 = arith.cmpi slt, %150, %175 : vector<32x32xi32>
    %177 = arith.andi %174, %176 : vector<32x32xi1>
    %178 = arith.ori %166, %177 : vector<32x32xi1>
    %179 = arith.andi %153, %178 : vector<32x32xi1>
    %180 = arith.extui %179 : vector<32x32xi1> to vector<32x32xi32>
    %181 = arith.sitofp %180 : vector<32x32xi32> to vector<32x32xf32>
    %cst_60 = arith.constant dense<0.000000e+00> : vector<32x64xf32>
    %182 = tpu.matmul %181, %25, %cst_60 {dimension_numbers = #tpu.dot_dimension_numbers<[1], [0], [0], [1], [0, 0, 1, 1], [], []>} : vector<32x32xf32>, vector<32x64xf32>, vector<32x64xf32> -> vector<32x64xf32>
    %183 = arith.truncf %182 : vector<32x64xf32> to vector<32x64xbf16>
    %c4 = arith.constant 4 : index
    %c0_61 = arith.constant 0 : index
    %c0_62 = arith.constant 0 : index
    %184 = vector.load %arg3[%c4, %c0_61, %c0_62] : memref<5x64x128xbf16, #tpu.memory_space<vmem>>, vector<1x64x128xbf16>
    %185 = vector.shape_cast %184 : vector<1x64x128xbf16> to vector<64x128xbf16>
    %cst_63 = arith.constant dense<0.000000e+00> : vector<32x128xf32>
    %186 = tpu.matmul %183, %185, %cst_63 {dimension_numbers = #tpu.dot_dimension_numbers<[1], [0], [0], [1], [0, 0, 1, 1], [], []>} : vector<32x64xbf16>, vector<64x128xbf16>, vector<32x128xf32> -> vector<32x128xf32>
    %187 = arith.addf %148, %186 : vector<32x128xf32>
    %c0_64 = arith.constant 0 : index
    %c0_65 = arith.constant 0 : index
    %188 = vector.load %arg4[%c0_64, %c0_65] : memref<1x128xf32, #tpu.memory_space<vmem>>, vector<1x128xf32>
    %189 = vector.broadcast %188 : vector<1x128xf32> to vector<32x128xf32>
    %190 = arith.addf %187, %189 : vector<32x128xf32>
    %cst_66 = arith.constant 0.000000e+00 : f32
    %191 = vector.broadcast %cst_66 : f32 to vector<32x128xf32>
    %192 = arith.maximumf %190, %191 : vector<32x128xf32>
    %193 = tpu.iota {dimensions = array<i32: 0>} : vector<16x32xi32>
    %194 = tpu.iota {dimensions = array<i32: 1>} : vector<16x32xi32>
    %c2_i32_67 = arith.constant 2 : i32
    %195 = vector.broadcast %c2_i32_67 : i32 to vector<16x32xi32>
    %196 = arith.muli %195, %193 : vector<16x32xi32>
    %197 = arith.cmpi eq, %194, %196 : vector<16x32xi32>
    %198 = arith.extui %197 : vector<16x32xi1> to vector<16x32xi32>
    %199 = arith.sitofp %198 : vector<16x32xi32> to vector<16x32xf32>
    %c2_i32_68 = arith.constant 2 : i32
    %200 = vector.broadcast %c2_i32_68 : i32 to vector<16x32xi32>
    %201 = arith.muli %200, %193 : vector<16x32xi32>
    %c1_i32_69 = arith.constant 1 : i32
    %202 = vector.broadcast %c1_i32_69 : i32 to vector<16x32xi32>
    %203 = arith.addi %201, %202 : vector<16x32xi32>
    %204 = arith.cmpi eq, %194, %203 : vector<16x32xi32>
    %205 = arith.extui %204 : vector<16x32xi1> to vector<16x32xi32>
    %206 = arith.sitofp %205 : vector<16x32xi32> to vector<16x32xf32>
    %cst_70 = arith.constant dense<0.000000e+00> : vector<16x128xf32>
    %207 = tpu.matmul %199, %192, %cst_70 {dimension_numbers = #tpu.dot_dimension_numbers<[1], [0], [0], [1], [0, 0, 1, 1], [], []>} : vector<16x32xf32>, vector<32x128xf32>, vector<16x128xf32> -> vector<16x128xf32>
    %cst_71 = arith.constant dense<0.000000e+00> : vector<16x128xf32>
    %208 = tpu.matmul %206, %192, %cst_71 {dimension_numbers = #tpu.dot_dimension_numbers<[1], [0], [0], [1], [0, 0, 1, 1], [], []>} : vector<16x32xf32>, vector<32x128xf32>, vector<16x128xf32> -> vector<16x128xf32>
    %209 = arith.maximumf %207, %208 : vector<16x128xf32>
    %cst_72 = arith.constant 0.000000e+00 : f32
    %210 = vector.broadcast %cst_72 : f32 to vector<16x256xf32>
    %211 = tpu.iota {dimensions = array<i32: 0>} : vector<16x16xi32>
    %212 = tpu.iota {dimensions = array<i32: 1>} : vector<16x16xi32>
    %c-1_i32_73 = arith.constant -1 : i32
    %213 = vector.broadcast %c-1_i32_73 : i32 to vector<16x16xi32>
    %214 = arith.addi %211, %213 : vector<16x16xi32>
    %215 = arith.cmpi eq, %212, %214 : vector<16x16xi32>
    %false_74 = arith.constant false
    %216 = vector.broadcast %false_74 : i1 to vector<16x16xi1>
    %c0_i32_75 = arith.constant 0 : i32
    %217 = vector.broadcast %c0_i32_75 : i32 to vector<16x16xi32>
    %218 = arith.cmpi sge, %211, %217 : vector<16x16xi32>
    %c8_i32 = arith.constant 8 : i32
    %219 = vector.broadcast %c8_i32 : i32 to vector<16x16xi32>
    %220 = arith.cmpi slt, %211, %219 : vector<16x16xi32>
    %221 = arith.andi %218, %220 : vector<16x16xi1>
    %c0_i32_76 = arith.constant 0 : i32
    %222 = vector.broadcast %c0_i32_76 : i32 to vector<16x16xi32>
    %223 = arith.cmpi sge, %212, %222 : vector<16x16xi32>
    %224 = arith.andi %221, %223 : vector<16x16xi1>
    %c8_i32_77 = arith.constant 8 : i32
    %225 = vector.broadcast %c8_i32_77 : i32 to vector<16x16xi32>
    %226 = arith.cmpi slt, %212, %225 : vector<16x16xi32>
    %227 = arith.andi %224, %226 : vector<16x16xi1>
    %228 = arith.ori %216, %227 : vector<16x16xi1>
    %c8_i32_78 = arith.constant 8 : i32
    %229 = vector.broadcast %c8_i32_78 : i32 to vector<16x16xi32>
    %230 = arith.cmpi sge, %211, %229 : vector<16x16xi32>
    %c16_i32_79 = arith.constant 16 : i32
    %231 = vector.broadcast %c16_i32_79 : i32 to vector<16x16xi32>
    %232 = arith.cmpi slt, %211, %231 : vector<16x16xi32>
    %233 = arith.andi %230, %232 : vector<16x16xi1>
    %c8_i32_80 = arith.constant 8 : i32
    %234 = vector.broadcast %c8_i32_80 : i32 to vector<16x16xi32>
    %235 = arith.cmpi sge, %212, %234 : vector<16x16xi32>
    %236 = arith.andi %233, %235 : vector<16x16xi1>
    %c16_i32_81 = arith.constant 16 : i32
    %237 = vector.broadcast %c16_i32_81 : i32 to vector<16x16xi32>
    %238 = arith.cmpi slt, %212, %237 : vector<16x16xi32>
    %239 = arith.andi %236, %238 : vector<16x16xi1>
    %240 = arith.ori %228, %239 : vector<16x16xi1>
    %241 = arith.andi %215, %240 : vector<16x16xi1>
    %242 = arith.extui %241 : vector<16x16xi1> to vector<16x16xi32>
    %243 = arith.sitofp %242 : vector<16x16xi32> to vector<16x16xf32>
    %cst_82 = arith.constant dense<0.000000e+00> : vector<16x128xf32>
    %244 = tpu.matmul %243, %209, %cst_82 {dimension_numbers = #tpu.dot_dimension_numbers<[1], [0], [0], [1], [0, 0, 1, 1], [], []>} : vector<16x16xf32>, vector<16x128xf32>, vector<16x128xf32> -> vector<16x128xf32>
    %245 = arith.truncf %244 : vector<16x128xf32> to vector<16x128xbf16>
    %c0_83 = arith.constant 0 : index
    %c0_84 = arith.constant 0 : index
    %c0_85 = arith.constant 0 : index
    %246 = vector.load %arg5[%c0_83, %c0_84, %c0_85] : memref<3x128x256xbf16, #tpu.memory_space<vmem>>, vector<1x128x256xbf16>
    %247 = vector.shape_cast %246 : vector<1x128x256xbf16> to vector<128x256xbf16>
    %cst_86 = arith.constant dense<0.000000e+00> : vector<16x256xf32>
    %248 = tpu.matmul %245, %247, %cst_86 {dimension_numbers = #tpu.dot_dimension_numbers<[1], [0], [0], [1], [0, 0, 1, 1], [], []>} : vector<16x128xbf16>, vector<128x256xbf16>, vector<16x256xf32> -> vector<16x256xf32>
    %249 = arith.addf %210, %248 : vector<16x256xf32>
    %250 = arith.truncf %209 : vector<16x128xf32> to vector<16x128xbf16>
    %c1_87 = arith.constant 1 : index
    %c0_88 = arith.constant 0 : index
    %c0_89 = arith.constant 0 : index
    %251 = vector.load %arg5[%c1_87, %c0_88, %c0_89] : memref<3x128x256xbf16, #tpu.memory_space<vmem>>, vector<1x128x256xbf16>
    %252 = vector.shape_cast %251 : vector<1x128x256xbf16> to vector<128x256xbf16>
    %cst_90 = arith.constant dense<0.000000e+00> : vector<16x256xf32>
    %253 = tpu.matmul %250, %252, %cst_90 {dimension_numbers = #tpu.dot_dimension_numbers<[1], [0], [0], [1], [0, 0, 1, 1], [], []>} : vector<16x128xbf16>, vector<128x256xbf16>, vector<16x256xf32> -> vector<16x256xf32>
    %254 = arith.addf %249, %253 : vector<16x256xf32>
    %255 = tpu.iota {dimensions = array<i32: 0>} : vector<16x16xi32>
    %256 = tpu.iota {dimensions = array<i32: 1>} : vector<16x16xi32>
    %c1_i32_91 = arith.constant 1 : i32
    %257 = vector.broadcast %c1_i32_91 : i32 to vector<16x16xi32>
    %258 = arith.addi %255, %257 : vector<16x16xi32>
    %259 = arith.cmpi eq, %256, %258 : vector<16x16xi32>
    %false_92 = arith.constant false
    %260 = vector.broadcast %false_92 : i1 to vector<16x16xi1>
    %c0_i32_93 = arith.constant 0 : i32
    %261 = vector.broadcast %c0_i32_93 : i32 to vector<16x16xi32>
    %262 = arith.cmpi sge, %255, %261 : vector<16x16xi32>
    %c8_i32_94 = arith.constant 8 : i32
    %263 = vector.broadcast %c8_i32_94 : i32 to vector<16x16xi32>
    %264 = arith.cmpi slt, %255, %263 : vector<16x16xi32>
    %265 = arith.andi %262, %264 : vector<16x16xi1>
    %c0_i32_95 = arith.constant 0 : i32
    %266 = vector.broadcast %c0_i32_95 : i32 to vector<16x16xi32>
    %267 = arith.cmpi sge, %256, %266 : vector<16x16xi32>
    %268 = arith.andi %265, %267 : vector<16x16xi1>
    %c8_i32_96 = arith.constant 8 : i32
    %269 = vector.broadcast %c8_i32_96 : i32 to vector<16x16xi32>
    %270 = arith.cmpi slt, %256, %269 : vector<16x16xi32>
    %271 = arith.andi %268, %270 : vector<16x16xi1>
    %272 = arith.ori %260, %271 : vector<16x16xi1>
    %c8_i32_97 = arith.constant 8 : i32
    %273 = vector.broadcast %c8_i32_97 : i32 to vector<16x16xi32>
    %274 = arith.cmpi sge, %255, %273 : vector<16x16xi32>
    %c16_i32_98 = arith.constant 16 : i32
    %275 = vector.broadcast %c16_i32_98 : i32 to vector<16x16xi32>
    %276 = arith.cmpi slt, %255, %275 : vector<16x16xi32>
    %277 = arith.andi %274, %276 : vector<16x16xi1>
    %c8_i32_99 = arith.constant 8 : i32
    %278 = vector.broadcast %c8_i32_99 : i32 to vector<16x16xi32>
    %279 = arith.cmpi sge, %256, %278 : vector<16x16xi32>
    %280 = arith.andi %277, %279 : vector<16x16xi1>
    %c16_i32_100 = arith.constant 16 : i32
    %281 = vector.broadcast %c16_i32_100 : i32 to vector<16x16xi32>
    %282 = arith.cmpi slt, %256, %281 : vector<16x16xi32>
    %283 = arith.andi %280, %282 : vector<16x16xi1>
    %284 = arith.ori %272, %283 : vector<16x16xi1>
    %285 = arith.andi %259, %284 : vector<16x16xi1>
    %286 = arith.extui %285 : vector<16x16xi1> to vector<16x16xi32>
    %287 = arith.sitofp %286 : vector<16x16xi32> to vector<16x16xf32>
    %cst_101 = arith.constant dense<0.000000e+00> : vector<16x128xf32>
    %288 = tpu.matmul %287, %209, %cst_101 {dimension_numbers = #tpu.dot_dimension_numbers<[1], [0], [0], [1], [0, 0, 1, 1], [], []>} : vector<16x16xf32>, vector<16x128xf32>, vector<16x128xf32> -> vector<16x128xf32>
    %289 = arith.truncf %288 : vector<16x128xf32> to vector<16x128xbf16>
    %c2_102 = arith.constant 2 : index
    %c0_103 = arith.constant 0 : index
    %c0_104 = arith.constant 0 : index
    %290 = vector.load %arg5[%c2_102, %c0_103, %c0_104] : memref<3x128x256xbf16, #tpu.memory_space<vmem>>, vector<1x128x256xbf16>
    %291 = vector.shape_cast %290 : vector<1x128x256xbf16> to vector<128x256xbf16>
    %cst_105 = arith.constant dense<0.000000e+00> : vector<16x256xf32>
    %292 = tpu.matmul %289, %291, %cst_105 {dimension_numbers = #tpu.dot_dimension_numbers<[1], [0], [0], [1], [0, 0, 1, 1], [], []>} : vector<16x128xbf16>, vector<128x256xbf16>, vector<16x256xf32> -> vector<16x256xf32>
    %293 = arith.addf %254, %292 : vector<16x256xf32>
    %c0_106 = arith.constant 0 : index
    %c0_107 = arith.constant 0 : index
    %294 = vector.load %arg6[%c0_106, %c0_107] : memref<1x256xf32, #tpu.memory_space<vmem>>, vector<1x256xf32>
    %295 = vector.broadcast %294 : vector<1x256xf32> to vector<16x256xf32>
    %296 = arith.addf %293, %295 : vector<16x256xf32>
    %cst_108 = arith.constant 0.000000e+00 : f32
    %297 = vector.broadcast %cst_108 : f32 to vector<16x256xf32>
    %298 = arith.maximumf %296, %297 : vector<16x256xf32>
    %299 = tpu.iota {dimensions = array<i32: 0>} : vector<8x16xi32>
    %300 = tpu.iota {dimensions = array<i32: 1>} : vector<8x16xi32>
    %c2_i32_109 = arith.constant 2 : i32
    %301 = vector.broadcast %c2_i32_109 : i32 to vector<8x16xi32>
    %302 = arith.muli %301, %299 : vector<8x16xi32>
    %303 = arith.cmpi eq, %300, %302 : vector<8x16xi32>
    %304 = arith.extui %303 : vector<8x16xi1> to vector<8x16xi32>
    %305 = arith.sitofp %304 : vector<8x16xi32> to vector<8x16xf32>
    %c2_i32_110 = arith.constant 2 : i32
    %306 = vector.broadcast %c2_i32_110 : i32 to vector<8x16xi32>
    %307 = arith.muli %306, %299 : vector<8x16xi32>
    %c1_i32_111 = arith.constant 1 : i32
    %308 = vector.broadcast %c1_i32_111 : i32 to vector<8x16xi32>
    %309 = arith.addi %307, %308 : vector<8x16xi32>
    %310 = arith.cmpi eq, %300, %309 : vector<8x16xi32>
    %311 = arith.extui %310 : vector<8x16xi1> to vector<8x16xi32>
    %312 = arith.sitofp %311 : vector<8x16xi32> to vector<8x16xf32>
    %cst_112 = arith.constant dense<0.000000e+00> : vector<8x256xf32>
    %313 = tpu.matmul %305, %298, %cst_112 {dimension_numbers = #tpu.dot_dimension_numbers<[1], [0], [0], [1], [0, 0, 1, 1], [], []>} : vector<8x16xf32>, vector<16x256xf32>, vector<8x256xf32> -> vector<8x256xf32>
    %cst_113 = arith.constant dense<0.000000e+00> : vector<8x256xf32>
    %314 = tpu.matmul %312, %298, %cst_113 {dimension_numbers = #tpu.dot_dimension_numbers<[1], [0], [0], [1], [0, 0, 1, 1], [], []>} : vector<8x16xf32>, vector<16x256xf32>, vector<8x256xf32> -> vector<8x256xf32>
    %315 = arith.maximumf %313, %314 : vector<8x256xf32>
    %cst_114 = arith.constant 0.000000e+00 : f32
    %316 = vector.broadcast %cst_114 : f32 to vector<8x256xf32>
    %317 = tpu.iota {dimensions = array<i32: 0>} : vector<8x8xi32>
    %318 = tpu.iota {dimensions = array<i32: 1>} : vector<8x8xi32>
    %c-1_i32_115 = arith.constant -1 : i32
    %319 = vector.broadcast %c-1_i32_115 : i32 to vector<8x8xi32>
    %320 = arith.addi %317, %319 : vector<8x8xi32>
    %321 = arith.cmpi eq, %318, %320 : vector<8x8xi32>
    %false_116 = arith.constant false
    %322 = vector.broadcast %false_116 : i1 to vector<8x8xi1>
    %c0_i32_117 = arith.constant 0 : i32
    %323 = vector.broadcast %c0_i32_117 : i32 to vector<8x8xi32>
    %324 = arith.cmpi sge, %317, %323 : vector<8x8xi32>
    %c4_i32 = arith.constant 4 : i32
    %325 = vector.broadcast %c4_i32 : i32 to vector<8x8xi32>
    %326 = arith.cmpi slt, %317, %325 : vector<8x8xi32>
    %327 = arith.andi %324, %326 : vector<8x8xi1>
    %c0_i32_118 = arith.constant 0 : i32
    %328 = vector.broadcast %c0_i32_118 : i32 to vector<8x8xi32>
    %329 = arith.cmpi sge, %318, %328 : vector<8x8xi32>
    %330 = arith.andi %327, %329 : vector<8x8xi1>
    %c4_i32_119 = arith.constant 4 : i32
    %331 = vector.broadcast %c4_i32_119 : i32 to vector<8x8xi32>
    %332 = arith.cmpi slt, %318, %331 : vector<8x8xi32>
    %333 = arith.andi %330, %332 : vector<8x8xi1>
    %334 = arith.ori %322, %333 : vector<8x8xi1>
    %c4_i32_120 = arith.constant 4 : i32
    %335 = vector.broadcast %c4_i32_120 : i32 to vector<8x8xi32>
    %336 = arith.cmpi sge, %317, %335 : vector<8x8xi32>
    %c8_i32_121 = arith.constant 8 : i32
    %337 = vector.broadcast %c8_i32_121 : i32 to vector<8x8xi32>
    %338 = arith.cmpi slt, %317, %337 : vector<8x8xi32>
    %339 = arith.andi %336, %338 : vector<8x8xi1>
    %c4_i32_122 = arith.constant 4 : i32
    %340 = vector.broadcast %c4_i32_122 : i32 to vector<8x8xi32>
    %341 = arith.cmpi sge, %318, %340 : vector<8x8xi32>
    %342 = arith.andi %339, %341 : vector<8x8xi1>
    %c8_i32_123 = arith.constant 8 : i32
    %343 = vector.broadcast %c8_i32_123 : i32 to vector<8x8xi32>
    %344 = arith.cmpi slt, %318, %343 : vector<8x8xi32>
    %345 = arith.andi %342, %344 : vector<8x8xi1>
    %346 = arith.ori %334, %345 : vector<8x8xi1>
    %347 = arith.andi %321, %346 : vector<8x8xi1>
    %348 = arith.extui %347 : vector<8x8xi1> to vector<8x8xi32>
    %349 = arith.sitofp %348 : vector<8x8xi32> to vector<8x8xf32>
    %cst_124 = arith.constant dense<0.000000e+00> : vector<8x256xf32>
    %350 = tpu.matmul %349, %315, %cst_124 {dimension_numbers = #tpu.dot_dimension_numbers<[1], [0], [0], [1], [0, 0, 1, 1], [], []>} : vector<8x8xf32>, vector<8x256xf32>, vector<8x256xf32> -> vector<8x256xf32>
    %351 = arith.truncf %350 : vector<8x256xf32> to vector<8x256xbf16>
    %c0_125 = arith.constant 0 : index
    %c0_126 = arith.constant 0 : index
    %c0_127 = arith.constant 0 : index
    %352 = vector.load %arg7[%c0_125, %c0_126, %c0_127] : memref<3x256x256xbf16, #tpu.memory_space<vmem>>, vector<1x256x256xbf16>
    %353 = vector.shape_cast %352 : vector<1x256x256xbf16> to vector<256x256xbf16>
    %cst_128 = arith.constant dense<0.000000e+00> : vector<8x256xf32>
    %354 = tpu.matmul %351, %353, %cst_128 {dimension_numbers = #tpu.dot_dimension_numbers<[1], [0], [0], [1], [0, 0, 1, 1], [], []>} : vector<8x256xbf16>, vector<256x256xbf16>, vector<8x256xf32> -> vector<8x256xf32>
    %355 = arith.addf %316, %354 : vector<8x256xf32>
    %356 = arith.truncf %315 : vector<8x256xf32> to vector<8x256xbf16>
    %c1_129 = arith.constant 1 : index
    %c0_130 = arith.constant 0 : index
    %c0_131 = arith.constant 0 : index
    %357 = vector.load %arg7[%c1_129, %c0_130, %c0_131] : memref<3x256x256xbf16, #tpu.memory_space<vmem>>, vector<1x256x256xbf16>
    %358 = vector.shape_cast %357 : vector<1x256x256xbf16> to vector<256x256xbf16>
    %cst_132 = arith.constant dense<0.000000e+00> : vector<8x256xf32>
    %359 = tpu.matmul %356, %358, %cst_132 {dimension_numbers = #tpu.dot_dimension_numbers<[1], [0], [0], [1], [0, 0, 1, 1], [], []>} : vector<8x256xbf16>, vector<256x256xbf16>, vector<8x256xf32> -> vector<8x256xf32>
    %360 = arith.addf %355, %359 : vector<8x256xf32>
    %361 = tpu.iota {dimensions = array<i32: 0>} : vector<8x8xi32>
    %362 = tpu.iota {dimensions = array<i32: 1>} : vector<8x8xi32>
    %c1_i32_133 = arith.constant 1 : i32
    %363 = vector.broadcast %c1_i32_133 : i32 to vector<8x8xi32>
    %364 = arith.addi %361, %363 : vector<8x8xi32>
    %365 = arith.cmpi eq, %362, %364 : vector<8x8xi32>
    %false_134 = arith.constant false
    %366 = vector.broadcast %false_134 : i1 to vector<8x8xi1>
    %c0_i32_135 = arith.constant 0 : i32
    %367 = vector.broadcast %c0_i32_135 : i32 to vector<8x8xi32>
    %368 = arith.cmpi sge, %361, %367 : vector<8x8xi32>
    %c4_i32_136 = arith.constant 4 : i32
    %369 = vector.broadcast %c4_i32_136 : i32 to vector<8x8xi32>
    %370 = arith.cmpi slt, %361, %369 : vector<8x8xi32>
    %371 = arith.andi %368, %370 : vector<8x8xi1>
    %c0_i32_137 = arith.constant 0 : i32
    %372 = vector.broadcast %c0_i32_137 : i32 to vector<8x8xi32>
    %373 = arith.cmpi sge, %362, %372 : vector<8x8xi32>
    %374 = arith.andi %371, %373 : vector<8x8xi1>
    %c4_i32_138 = arith.constant 4 : i32
    %375 = vector.broadcast %c4_i32_138 : i32 to vector<8x8xi32>
    %376 = arith.cmpi slt, %362, %375 : vector<8x8xi32>
    %377 = arith.andi %374, %376 : vector<8x8xi1>
    %378 = arith.ori %366, %377 : vector<8x8xi1>
    %c4_i32_139 = arith.constant 4 : i32
    %379 = vector.broadcast %c4_i32_139 : i32 to vector<8x8xi32>
    %380 = arith.cmpi sge, %361, %379 : vector<8x8xi32>
    %c8_i32_140 = arith.constant 8 : i32
    %381 = vector.broadcast %c8_i32_140 : i32 to vector<8x8xi32>
    %382 = arith.cmpi slt, %361, %381 : vector<8x8xi32>
    %383 = arith.andi %380, %382 : vector<8x8xi1>
    %c4_i32_141 = arith.constant 4 : i32
    %384 = vector.broadcast %c4_i32_141 : i32 to vector<8x8xi32>
    %385 = arith.cmpi sge, %362, %384 : vector<8x8xi32>
    %386 = arith.andi %383, %385 : vector<8x8xi1>
    %c8_i32_142 = arith.constant 8 : i32
    %387 = vector.broadcast %c8_i32_142 : i32 to vector<8x8xi32>
    %388 = arith.cmpi slt, %362, %387 : vector<8x8xi32>
    %389 = arith.andi %386, %388 : vector<8x8xi1>
    %390 = arith.ori %378, %389 : vector<8x8xi1>
    %391 = arith.andi %365, %390 : vector<8x8xi1>
    %392 = arith.extui %391 : vector<8x8xi1> to vector<8x8xi32>
    %393 = arith.sitofp %392 : vector<8x8xi32> to vector<8x8xf32>
    %cst_143 = arith.constant dense<0.000000e+00> : vector<8x256xf32>
    %394 = tpu.matmul %393, %315, %cst_143 {dimension_numbers = #tpu.dot_dimension_numbers<[1], [0], [0], [1], [0, 0, 1, 1], [], []>} : vector<8x8xf32>, vector<8x256xf32>, vector<8x256xf32> -> vector<8x256xf32>
    %395 = arith.truncf %394 : vector<8x256xf32> to vector<8x256xbf16>
    %c2_144 = arith.constant 2 : index
    %c0_145 = arith.constant 0 : index
    %c0_146 = arith.constant 0 : index
    %396 = vector.load %arg7[%c2_144, %c0_145, %c0_146] : memref<3x256x256xbf16, #tpu.memory_space<vmem>>, vector<1x256x256xbf16>
    %397 = vector.shape_cast %396 : vector<1x256x256xbf16> to vector<256x256xbf16>
    %cst_147 = arith.constant dense<0.000000e+00> : vector<8x256xf32>
    %398 = tpu.matmul %395, %397, %cst_147 {dimension_numbers = #tpu.dot_dimension_numbers<[1], [0], [0], [1], [0, 0, 1, 1], [], []>} : vector<8x256xbf16>, vector<256x256xbf16>, vector<8x256xf32> -> vector<8x256xf32>
    %399 = arith.addf %360, %398 : vector<8x256xf32>
    %c0_148 = arith.constant 0 : index
    %c0_149 = arith.constant 0 : index
    %400 = vector.load %arg8[%c0_148, %c0_149] : memref<1x256xf32, #tpu.memory_space<vmem>>, vector<1x256xf32>
    %401 = vector.broadcast %400 : vector<1x256xf32> to vector<8x256xf32>
    %402 = arith.addf %399, %401 : vector<8x256xf32>
    %cst_150 = arith.constant 0.000000e+00 : f32
    %403 = vector.broadcast %cst_150 : f32 to vector<8x256xf32>
    %404 = arith.maximumf %402, %403 : vector<8x256xf32>
    %405 = tpu.iota {dimensions = array<i32: 0>} : vector<4x8xi32>
    %406 = tpu.iota {dimensions = array<i32: 1>} : vector<4x8xi32>
    %c2_i32_151 = arith.constant 2 : i32
    %407 = vector.broadcast %c2_i32_151 : i32 to vector<4x8xi32>
    %408 = arith.muli %407, %405 : vector<4x8xi32>
    %409 = arith.cmpi eq, %406, %408 : vector<4x8xi32>
    %410 = arith.extui %409 : vector<4x8xi1> to vector<4x8xi32>
    %411 = arith.sitofp %410 : vector<4x8xi32> to vector<4x8xf32>
    %c2_i32_152 = arith.constant 2 : i32
    %412 = vector.broadcast %c2_i32_152 : i32 to vector<4x8xi32>
    %413 = arith.muli %412, %405 : vector<4x8xi32>
    %c1_i32_153 = arith.constant 1 : i32
    %414 = vector.broadcast %c1_i32_153 : i32 to vector<4x8xi32>
    %415 = arith.addi %413, %414 : vector<4x8xi32>
    %416 = arith.cmpi eq, %406, %415 : vector<4x8xi32>
    %417 = arith.extui %416 : vector<4x8xi1> to vector<4x8xi32>
    %418 = arith.sitofp %417 : vector<4x8xi32> to vector<4x8xf32>
    %cst_154 = arith.constant dense<0.000000e+00> : vector<4x256xf32>
    %419 = tpu.matmul %411, %404, %cst_154 {dimension_numbers = #tpu.dot_dimension_numbers<[1], [0], [0], [1], [0, 0, 1, 1], [], []>} : vector<4x8xf32>, vector<8x256xf32>, vector<4x256xf32> -> vector<4x256xf32>
    %cst_155 = arith.constant dense<0.000000e+00> : vector<4x256xf32>
    %420 = tpu.matmul %418, %404, %cst_155 {dimension_numbers = #tpu.dot_dimension_numbers<[1], [0], [0], [1], [0, 0, 1, 1], [], []>} : vector<4x8xf32>, vector<8x256xf32>, vector<4x256xf32> -> vector<4x256xf32>
    %421 = arith.maximumf %419, %420 : vector<4x256xf32>
    %422 = tpu.iota {dimensions = array<i32: 0>} : vector<2x4xi32>
    %423 = tpu.iota {dimensions = array<i32: 1>} : vector<2x4xi32>
    %c2_i32_156 = arith.constant 2 : i32
    %424 = vector.broadcast %c2_i32_156 : i32 to vector<2x4xi32>
    %425 = arith.muli %422, %424 : vector<2x4xi32>
    %426 = arith.cmpi sge, %423, %425 : vector<2x4xi32>
    %c1_i32_157 = arith.constant 1 : i32
    %427 = vector.broadcast %c1_i32_157 : i32 to vector<2x4xi32>
    %428 = arith.addi %422, %427 : vector<2x4xi32>
    %c2_i32_158 = arith.constant 2 : i32
    %429 = vector.broadcast %c2_i32_158 : i32 to vector<2x4xi32>
    %430 = arith.muli %428, %429 : vector<2x4xi32>
    %431 = arith.cmpi slt, %423, %430 : vector<2x4xi32>
    %432 = arith.andi %426, %431 : vector<2x4xi1>
    %433 = arith.extui %432 : vector<2x4xi1> to vector<2x4xi32>
    %434 = arith.sitofp %433 : vector<2x4xi32> to vector<2x4xf32>
    %cst_159 = arith.constant 5.000000e-01 : f32
    %435 = vector.broadcast %cst_159 : f32 to vector<2x4xf32>
    %436 = arith.mulf %434, %435 : vector<2x4xf32>
    %cst_160 = arith.constant dense<0.000000e+00> : vector<2x256xf32>
    %437 = tpu.matmul %436, %421, %cst_160 {dimension_numbers = #tpu.dot_dimension_numbers<[1], [0], [0], [1], [0, 0, 1, 1], [], []>} : vector<2x4xf32>, vector<4x256xf32>, vector<2x256xf32> -> vector<2x256xf32>
    %438 = arith.truncf %437 : vector<2x256xf32> to vector<2x256xbf16>
    %c0_161 = arith.constant 0 : index
    %c0_162 = arith.constant 0 : index
    %439 = vector.load %arg9[%c0_161, %c0_162] : memref<256x64xbf16, #tpu.memory_space<vmem>>, vector<256x64xbf16>
    %cst_163 = arith.constant dense<0.000000e+00> : vector<2x64xf32>
    %440 = tpu.matmul %438, %439, %cst_163 {dimension_numbers = #tpu.dot_dimension_numbers<[1], [0], [0], [1], [0, 0, 1, 1], [], []>} : vector<2x256xbf16>, vector<256x64xbf16>, vector<2x64xf32> -> vector<2x64xf32>
    %c0_164 = arith.constant 0 : index
    %c0_165 = arith.constant 0 : index
    %441 = vector.load %arg10[%c0_164, %c0_165] : memref<1x64xf32, #tpu.memory_space<vmem>>, vector<1x64xf32>
    %442 = vector.broadcast %441 : vector<1x64xf32> to vector<2x64xf32>
    %443 = arith.addf %440, %442 : vector<2x64xf32>
    %cst_166 = arith.constant 0.000000e+00 : f32
    %444 = vector.broadcast %cst_166 : f32 to vector<2x64xf32>
    %445 = arith.maximumf %443, %444 : vector<2x64xf32>
    %446 = arith.truncf %445 : vector<2x64xf32> to vector<2x64xbf16>
    %c0_167 = arith.constant 0 : index
    %c0_168 = arith.constant 0 : index
    %447 = vector.load %arg11[%c0_167, %c0_168] : memref<64x3xbf16, #tpu.memory_space<vmem>>, vector<64x3xbf16>
    %cst_169 = arith.constant dense<0.000000e+00> : vector<2x3xf32>
    %448 = tpu.matmul %446, %447, %cst_169 {dimension_numbers = #tpu.dot_dimension_numbers<[1], [0], [0], [1], [0, 0, 1, 1], [], []>} : vector<2x64xbf16>, vector<64x3xbf16>, vector<2x3xf32> -> vector<2x3xf32>
    %c0_170 = arith.constant 0 : index
    %c0_171 = arith.constant 0 : index
    %449 = vector.load %arg12[%c0_170, %c0_171] : memref<1x3xf32, #tpu.memory_space<vmem>>, vector<1x3xf32>
    %450 = vector.broadcast %449 : vector<1x3xf32> to vector<2x3xf32>
    %451 = arith.addf %448, %450 : vector<2x3xf32>
    %c0_172 = arith.constant 0 : index
    %c0_173 = arith.constant 0 : index
    %452 = vector.load %arg13[%c0_172, %c0_173] : memref<2x3xf32, #tpu.memory_space<vmem>>, vector<2x3xf32>
    tpu.vector_store %arg13[%c0_172, %c0_173], %451 {strides = array<i32>} : memref<2x3xf32, #tpu.memory_space<vmem>>, vector<2x3xf32>,
    return
  }
}

</mosaic_0001>

<llo_original>
// kernel: cnn1d_large_forward.1
$region0: #{cnn1d_large_forward.1}
  #allocation0 [shape = 'u32[]', space=smem, size = 0x4, offset = 0x4, fixed_abs, tag = 'smem constant byte address 0x4 - core index']
  #allocation1 [shape = 'u32[72,128]{1,0:T(1,128)}', space=vmem, size = 0x9000, scoped, tag = 'internal scratch']
  %s0 = inlined_call_operand.vmem [shape: f32[64,5], index: 0, kind: input, shape index: {}]
  %s1 = inlined_call_operand.vmem [shape: bf16[5,64], index: 1, kind: input, shape index: {}]
  %s2 = inlined_call_operand.vmem [shape: f32[1,64], index: 2, kind: input, shape index: {}]
  %s3 = inlined_call_operand.vmem [shape: bf16[5,64,128], index: 3, kind: input, shape index: {}]
  %s4 = inlined_call_operand.vmem [shape: f32[1,128], index: 4, kind: input, shape index: {}]
  %s5 = inlined_call_operand.hbm [shape: bf16[3,128,256], index: 5, kind: input, shape index: {}]
  %s6 = inlined_call_operand.vmem [shape: f32[1,256], index: 6, kind: input, shape index: {}]
  %s7 = inlined_call_operand.hbm [shape: bf16[3,256,256], index: 7, kind: input, shape index: {}]
  %s8 = inlined_call_operand.vmem [shape: f32[1,256], index: 8, kind: input, shape index: {}]
  %s9 = inlined_call_operand.vmem [shape: bf16[256,64], index: 9, kind: input, shape index: {}]
  %s10 = inlined_call_operand.vmem [shape: f32[1,64], index: 10, kind: input, shape index: {}]
  %s11 = inlined_call_operand.vmem [shape: bf16[64,3], index: 11, kind: input, shape index: {}]
  %s12 = inlined_call_operand.vmem [shape: f32[1,3], index: 12, kind: input, shape index: {}]
  %s13 = inlined_call_operand.hbm [shape: f32[2,3], index: 13, kind: output, shape index: {}]
  %s14 = sld [smem:[#allocation0]]
  $region70: #{cnn1d_large_forward.1} parent=0
    _
  %s16 = ssub.s32 1, %s14
  %s17 = scalar_select 0, %s16, %s14
  $region1: #{cnn1d_large_forward.1} parent=0
    #allocation2 [shape = 'u8[196608]{0}', space=vmem, size = 0x30000, scoped, tag = 'input window, operand 5, single buffered']
    #allocation3 [shape = 's32[1]{0}', space=sflag, size = 0x4, scoped, tag = 'scoped memory for cnn1d_large_forward.1']
    #allocation4 [shape = 's32[1]{0}', space=sflag, size = 0x4, scoped, tag = 'scoped memory for cnn1d_large_forward.1']
    #allocation5 [shape = 'u8[393216]{0}', space=vmem, size = 0x60000, scoped, tag = 'input window, operand 7, single buffered']
    #allocation6 [shape = 's32[1]{0}', space=sflag, size = 0x4, scoped, tag = 'scoped memory for cnn1d_large_forward.1']
    #allocation7 [shape = 'u8[1024]{0}', space=vmem, size = 0x400, scoped, tag = 'output window, operand 0, single buffered']
    %18 = vsyncpa [#allocation3], 0
    %19 = vsyncpa [#allocation6], 0
    %20 = vsyncpa [#allocation4], 0
    // Predicated region
    $region2: #{cnn1d_large_forward.1} parent=1 // pred_check
      _
    $region3: #{cnn1d_large_forward.1} parent=1 // pred_check_branch
      %22 = sbr.rel (0) target = $region5
    $region4: #{cnn1d_large_forward.1} parent=1 // pred_region
      _
    $region5: #{cnn1d_large_forward.1} parent=1 // pred_fallthru
      _
    // Predicated region
    $region6: #{cnn1d_large_forward.1} parent=1 // pred_check
      _
    $region7: #{cnn1d_large_forward.1} parent=1 // pred_check_branch
      %24 = sbr.rel (0) target = $region9
    $region8: #{cnn1d_large_forward.1} parent=1 // pred_region
      _
    $region9: #{cnn1d_large_forward.1} parent=1 // pred_fallthru
      _
    // Predicated region
    $region10: #{cnn1d_large_forward.1} parent=1 // pred_check
      _
    $region11: #{cnn1d_large_forward.1} parent=1 // pred_check_branch
      %26 = sbr.rel (0) target = $region13
    $region12: #{cnn1d_large_forward.1} parent=1 // pred_region
      _
    $region13: #{cnn1d_large_forward.1} parent=1 // pred_fallthru
      _
    // Predicated region
    $region14: #{cnn1d_large_forward.1} parent=1 // pred_check
      _
    $region15: #{cnn1d_large_forward.1} parent=1 // pred_check_branch
      %28 = sbr.rel (0) target = $region17
    $region16: #{cnn1d_large_forward.1} parent=1 // pred_region
      _
    $region17: #{cnn1d_large_forward.1} parent=1 // pred_fallthru
      _
    // Predicated region
    $region18: #{cnn1d_large_forward.1} parent=1 // pred_check
      _
    $region19: #{cnn1d_large_forward.1} parent=1 // pred_check_branch
      %30 = sbr.rel (0) target = $region21
    $region20: #{cnn1d_large_forward.1} parent=1 // pred_region
      _
    $region21: #{cnn1d_large_forward.1} parent=1 // pred_fallthru
      _
    // Predicated region
    $region22: #{cnn1d_large_forward.1} parent=1 // pred_check
      _
    $region23: #{cnn1d_large_forward.1} parent=1 // pred_check_branch
      %32 = sbr.rel (0) target = $region25
    $region24: #{cnn1d_large_forward.1} parent=1 // pred_region
      %34 = vsyncadd [#allocation3], 0
      %s35 = sshll.u32 %s5, 4
      %s36 = int_to_ptr.hbm [resolvable:$true] %s35
      %s37 = sshll.u32 [#allocation2], 4
      %s38 = int_to_ptr.vmem [resolvable:$true] %s37
      %43 = dma.hbm_to_vmem [thread:$0]  %s36, 6144, %s38, [#allocation3], 128, 128, 8
    $region25: #{cnn1d_large_forward.1} parent=1 // pred_fallthru
      _
    // Predicated region
    $region26: #{cnn1d_large_forward.1} parent=1 // pred_check
      _
    $region27: #{cnn1d_large_forward.1} parent=1 // pred_check_branch
      %45 = sbr.rel (0) target = $region29
    $region28: #{cnn1d_large_forward.1} parent=1 // pred_region
      _
    $region29: #{cnn1d_large_forward.1} parent=1 // pred_fallthru
      _
    // Predicated region
    $region30: #{cnn1d_large_forward.1} parent=1 // pred_check
      _
    $region31: #{cnn1d_large_forward.1} parent=1 // pred_check_branch
      %47 = sbr.rel (0) target = $region33
    $region32: #{cnn1d_large_forward.1} parent=1 // pred_region
      %49 = vsyncadd [#allocation6], 0
      %s50 = sshll.u32 %s7, 4
      %s51 = int_to_ptr.hbm [resolvable:$true] %s50
      %s52 = sshll.u32 [#allocation5], 4
      %s53 = int_to_ptr.vmem [resolvable:$true] %s52
      %58 = dma.hbm_to_vmem [thread:$0]  %s51, 12288, %s53, [#allocation6], 128, 128, 8
    $region33: #{cnn1d_large_forward.1} parent=1 // pred_fallthru
      _
    // Predicated region
    $region34: #{cnn1d_large_forward.1} parent=1 // pred_check
      _
    $region35: #{cnn1d_large_forward.1} parent=1 // pred_check_branch
      %60 = sbr.rel (0) target = $region37
    $region36: #{cnn1d_large_forward.1} parent=1 // pred_region
      _
    $region37: #{cnn1d_large_forward.1} parent=1 // pred_fallthru
      _
    // Predicated region
    $region38: #{cnn1d_large_forward.1} parent=1 // pred_check
      _
    $region39: #{cnn1d_large_forward.1} parent=1 // pred_check_branch
      %62 = sbr.rel (0) target = $region41
    $region40: #{cnn1d_large_forward.1} parent=1 // pred_region
      _
    $region41: #{cnn1d_large_forward.1} parent=1 // pred_fallthru
      _
    // Predicated region
    $region42: #{cnn1d_large_forward.1} parent=1 // pred_check
      _
    $region43: #{cnn1d_large_forward.1} parent=1 // pred_check_branch
      %64 = sbr.rel (0) target = $region45
    $region44: #{cnn1d_large_forward.1} parent=1 // pred_region
      _
    $region45: #{cnn1d_large_forward.1} parent=1 // pred_fallthru
      _
    // Predicated region
    $region46: #{cnn1d_large_forward.1} parent=1 // pred_check
      _
    $region47: #{cnn1d_large_forward.1} parent=1 // pred_check_branch
      %66 = sbr.rel (0) target = $region49
    $region48: #{cnn1d_large_forward.1} parent=1 // pred_region
      _
    $region49: #{cnn1d_large_forward.1} parent=1 // pred_fallthru
      _
    // Predicated region
    $region50: #{cnn1d_large_forward.1} parent=1 // pred_check
      _
    $region51: #{cnn1d_large_forward.1} parent=1 // pred_check_branch
      %68 = sbr.rel (0) target = $region53
    $region52: #{cnn1d_large_forward.1} parent=1 // pred_region
      _
    $region53: #{cnn1d_large_forward.1} parent=1 // pred_fallthru
      _
    // Predicated region
    $region54: #{cnn1d_large_forward.1} parent=1 // pred_check
      _
    $region55: #{cnn1d_large_forward.1} parent=1 // pred_check_branch
      %70 = sbr.rel (0) target = $region57
    $region56: #{cnn1d_large_forward.1} parent=1 // pred_region
      %72 = dma.done [#allocation3], 6144
    $region57: #{cnn1d_large_forward.1} parent=1 // pred_fallthru
      _
    // Predicated region
    $region58: #{cnn1d_large_forward.1} parent=1 // pred_check
      _
    $region59: #{cnn1d_large_forward.1} parent=1 // pred_check_branch
      %74 = sbr.rel (0) target = $region61
    $region60: #{cnn1d_large_forward.1} parent=1 // pred_region
      %76 = dma.done [#allocation6], 12288
    $region61: #{cnn1d_large_forward.1} parent=1 // pred_fallthru
      _
    %v78 = vld [vmem:[%s0] sm:$0xff]
    %v79 = vld [vmem:[%s0 + $0x8] sm:$0xff]
    %v80 = vld [vmem:[%s0 + $0x10] sm:$0xff]
    %v81 = vld [vmem:[%s0 + $0x18] sm:$0xff]
    %v82 = vld [vmem:[%s0 + $0x20] sm:$0xff]
    %v83 = vld [vmem:[%s0 + $0x28] sm:$0xff]
    %v84 = vld [vmem:[%s0 + $0x30] sm:$0xff]
    %v85 = vld [vmem:[%s0 + $0x38] sm:$0xff]
    %v86 = vpack.c.bf16 %v79, %v78
    %v87 = vpack.c.bf16 %v81, %v80
    %v88 = vpack.c.bf16 %v83, %v82
    %v89 = vpack.c.bf16 %v85, %v84
    %v90 = vld [vmem:[%s1] sm:$0x7]
    %v91 = vld [vmem:[%s2] sm:$0x1]
    %v93 = vperm.slane %v91, 0
    %vm95 = vcmask 39936
    %v97 = vsel %vm95, %v86, 0
    %v100 = vsel %vm95, %v87, 0
    %v103 = vsel %vm95, %v88, 0
    %v106 = vsel %vm95, %v89, 0
    %vm108 = vcmask 1041408
    %vm109 = vcmask 1042432
    %v110 = vsel %vm108, 4294967295, 65535
    %v111 = vsel %vm109, %v110, 0
    %v113 = vand.u32 %v90, %v111
    %115 = vmatpush.bf16.msra.mxu0 0
    %116 = vmatpush.bf16.msra.mxu0 0
    %117 = vmatpush.bf16.msra.mxu0 0
    %118 = vmatpush.bf16.msra.mxu0 0
    %119 = vmatpush.bf16.msra.mxu0 0
    %120 = vmatpush.bf16.msra.mxu0 0
    %121 = vmatpush.bf16.msra.mxu0 0
    %122 = vmatpush.bf16.msra.mxu0 %v113
    %123 = vmatmul.bf16.gmra.mxu0 %v97
    %v124 = vpop.f32.mrf.mxu0
    %v125 = vadd.f32 %v93, %v124
    %v126 = vpop.f32.mrf.mxu0
    %v127 = vadd.f32 %v93, %v126
    %128 = vmatmul.bf16.gmra.mxu0 %v100
    %v129 = vpop.f32.mrf.mxu0
    %v130 = vadd.f32 %v93, %v129
    %v131 = vpop.f32.mrf.mxu0
    %v132 = vadd.f32 %v93, %v131
    %133 = vmatmul.bf16.gmra.mxu0 %v103
    %v134 = vpop.f32.mrf.mxu0
    %v135 = vadd.f32 %v93, %v134
    %v136 = vpop.f32.mrf.mxu0
    %v137 = vadd.f32 %v93, %v136
    %138 = vmatmul.bf16.gmra.mxu0 %v106
    %v139 = vpop.f32.mrf.mxu0
    %v140 = vadd.f32 %v93, %v139
    %v141 = vpop.f32.mrf.mxu0
    %v142 = vadd.f32 %v93, %v141
    %143 = vdwg.mxu0
    %v144 = vmax.f32 %v125, 0.0
    %v145 = vmax.f32 %v127, 0.0
    %v146 = vmax.f32 %v130, 0.0
    %v147 = vmax.f32 %v132, 0.0
    %v148 = vmax.f32 %v135, 0.0
    %v149 = vmax.f32 %v137, 0.0
    %v150 = vmax.f32 %v140, 0.0
    %v151 = vmax.f32 %v142, 0.0
    %v152 = vlaneseq
    %v153 = vshrl.u32 %v152, 7
    %v154 = vadd.s32 %v153, 8
    %v155 = vadd.s32 %v153, 16
    %v156 = vadd.s32 %v153, 24
    %v157 = vlaneseq
    %v158 = vand.u32 %v157, 127
    %v159 = vmul.u32 %v153, 2
    %v160 = vmul.u32 %v154, 2
    %v161 = vmul.u32 %v155, 2
    %v162 = vmul.u32 %v156, 2
    %vm163 = vcmp.eq.s32.totalorder %v158, %v159
    %vm164 = vcmp.eq.s32.totalorder %v158, %v160
    %vm165 = vcmp.eq.s32.totalorder %v158, %v161
    %vm166 = vcmp.eq.s32.totalorder %v158, %v162
    %v167 = vsel %vm163, 1, 0
    %v168 = vsel %vm164, 1, 0
    %v169 = vsel %vm165, 1, 0
    %v170 = vsel %vm166, 1, 0
    %v171 = vcvt.s32.f32 %v167
    %v172 = vcvt.s32.f32 %v168
    %v173 = vcvt.s32.f32 %v169
    %v174 = vcvt.s32.f32 %v170
    %v175 = vadd.s32 %v159, 1
    %v176 = vadd.s32 %v160, 1
    %v177 = vadd.s32 %v161, 1
    %v178 = vadd.s32 %v162, 1
    %vm179 = vcmp.eq.s32.totalorder %v158, %v175
    %vm180 = vcmp.eq.s32.totalorder %v158, %v176
    %vm181 = vcmp.eq.s32.totalorder %v158, %v177
    %vm182 = vcmp.eq.s32.totalorder %v158, %v178
    %v183 = vsel %vm179, 1, 0
    %v184 = vsel %vm180, 1, 0
    %v185 = vsel %vm181, 1, 0
    %v186 = vsel %vm182, 1, 0
    %v187 = vcvt.s32.f32 %v183
    %v188 = vcvt.s32.f32 %v184
    %v189 = vcvt.s32.f32 %v185
    %v190 = vcvt.s32.f32 %v186
    %vm191 = vcmask 523264
    %v193 = vsel %vm191, %v171, 0
    %v196 = vsel %vm191, %v172, 0
    %v199 = vsel %vm191, %v173, 0
    %v202 = vsel %vm191, %v174, 0
    %204 = vmatpush.msra.mxu0 0.0
    %205 = vmatpush.msra.mxu0 0.0
    %206 = vmatpush.msra.mxu0 0.0
    %207 = vmatpush.msra.mxu0 0.0
    %208 = vmatpush.msra.mxu0 0.0
    %209 = vmatpush.msra.mxu0 0.0
    %210 = vmatpush.msra.mxu0 0.0
    %211 = vmatpush.msra.mxu0 0.0
    %212 = vmatpush.msra.mxu0 %v151
    %213 = vmatpush.msra.mxu0 %v150
    %214 = vmatpush.msra.mxu0 %v149
    %215 = vmatpush.msra.mxu0 %v148
    %216 = vmatpush.msra.mxu0 %v147
    %217 = vmatpush.msra.mxu0 %v146
    %218 = vmatpush.msra.mxu0 %v145
    %219 = vmatpush.msra.mxu0 %v144
    %220 = vmatmul.f32.gmra.mxu0 %v193
    %v221 = vpop.f32.mrf.mxu0
    %v222 = vadd.f32 0.0, %v221
    %223 = vmatmul.f32.gmra.mxu0 %v196
    %v224 = vpop.f32.mrf.mxu0
    %v225 = vadd.f32 0.0, %v224
    %226 = vmatmul.f32.gmra.mxu0 %v199
    %v227 = vpop.f32.mrf.mxu0
    %v228 = vadd.f32 0.0, %v227
    %229 = vmatmul.f32.gmra.mxu0 %v202
    %v230 = vpop.f32.mrf.mxu0
    %v231 = vadd.f32 0.0, %v230
    %232 = vdwg.mxu0
    %v234 = vsel %vm191, %v187, 0
    %v237 = vsel %vm191, %v188, 0
    %v240 = vsel %vm191, %v189, 0
    %v243 = vsel %vm191, %v190, 0
    %245 = vmatpush.msra.mxu0 0.0
    %246 = vmatpush.msra.mxu0 0.0
    %247 = vmatpush.msra.mxu0 0.0
    %248 = vmatpush.msra.mxu0 0.0
    %249 = vmatpush.msra.mxu0 0.0
    %250 = vmatpush.msra.mxu0 0.0
    %251 = vmatpush.msra.mxu0 0.0
    %252 = vmatpush.msra.mxu0 0.0
    %253 = vmatpush.msra.mxu0 %v151
    %254 = vmatpush.msra.mxu0 %v150
    %255 = vmatpush.msra.mxu0 %v149
    %256 = vmatpush.msra.mxu0 %v148
    %257 = vmatpush.msra.mxu0 %v147
    %258 = vmatpush.msra.mxu0 %v146
    %259 = vmatpush.msra.mxu0 %v145
    %260 = vmatpush.msra.mxu0 %v144
    %261 = vmatmul.f32.gmra.mxu0 %v234
    %v262 = vpop.f32.mrf.mxu0
    %v263 = vadd.f32 0.0, %v262
    %264 = vmatmul.f32.gmra.mxu0 %v237
    %v265 = vpop.f32.mrf.mxu0
    %v266 = vadd.f32 0.0, %v265
    %267 = vmatmul.f32.gmra.mxu0 %v240
    %v268 = vpop.f32.mrf.mxu0
    %v269 = vadd.f32 0.0, %v268
    %270 = vmatmul.f32.gmra.mxu0 %v243
    %v271 = vpop.f32.mrf.mxu0
    %v272 = vadd.f32 0.0, %v271
    %273 = vdwg.mxu0
    %v274 = vmax.f32 %v222, %v263
    %v275 = vmax.f32 %v225, %v266
    %v276 = vmax.f32 %v228, %v269
    %v277 = vmax.f32 %v231, %v272
    %v278 = vadd.s32 %v153, 4294967294
    %v279 = vadd.s32 %v154, 4294967294
    %v280 = vadd.s32 %v155, 4294967294
    %v281 = vadd.s32 %v156, 4294967294
    %vm282 = vcmp.eq.s32.totalorder %v158, %v278
    %vm283 = vcmp.eq.s32.totalorder %v158, %v279
    %vm284 = vcmp.eq.s32.totalorder %v158, %v280
    %vm285 = vcmp.eq.s32.totalorder %v158, %v281
    %vm286 = vcmp.ge.s32.totalorder %v153, 0
    %vm287 = vcmp.ge.s32.totalorder %v154, 0
    %vm288 = vcmp.ge.s32.totalorder %v155, 0
    %vm289 = vcmp.ge.s32.totalorder %v156, 0
    %vm290 = vcmp.lt.s32.totalorder %v153, 16
    %vm291 = vcmp.lt.s32.totalorder %v154, 16
    %vm292 = vcmp.lt.s32.totalorder %v155, 16
    %vm293 = vcmp.lt.s32.totalorder %v156, 16
    %vm294 = vmand %vm286, %vm290
    %vm295 = vmand %vm287, %vm291
    %vm296 = vmand %vm288, %vm292
    %vm297 = vmand %vm289, %vm293
    %vm298 = vcmp.ge.s32.totalorder %v158, 0
    %vm299 = vmand %vm294, %vm298
    %vm300 = vmand %vm295, %vm298
    %vm301 = vmand %vm296, %vm298
    %vm302 = vmand %vm297, %vm298
    %vm303 = vcmp.lt.s32.totalorder %v158, 16
    %vm304 = vmand %vm299, %vm303
    %vm305 = vmand %vm300, %vm303
    %vm306 = vmand %vm301, %vm303
    %vm307 = vmand %vm302, %vm303
    %vm308 = vcmp.ge.s32.totalorder %v153, 16
    %vm309 = vcmp.ge.s32.totalorder %v154, 16
    %vm310 = vcmp.ge.s32.totalorder %v155, 16
    %vm311 = vcmp.ge.s32.totalorder %v156, 16
    %vm312 = vcmp.lt.s32.totalorder %v153, 32
    %vm313 = vcmp.lt.s32.totalorder %v154, 32
    %vm314 = vcmp.lt.s32.totalorder %v155, 32
    %vm315 = vcmp.lt.s32.totalorder %v156, 32
    %vm316 = vmand %vm308, %vm312
    %vm317 = vmand %vm309, %vm313
    %vm318 = vmand %vm310, %vm314
    %vm319 = vmand %vm311, %vm315
    %vm320 = vcmp.ge.s32.totalorder %v158, 16
    %vm321 = vmand %vm316, %vm320
    %vm322 = vmand %vm317, %vm320
    %vm323 = vmand %vm318, %vm320
    %vm324 = vmand %vm319, %vm320
    %vm325 = vcmp.lt.s32.totalorder %v158, 32
    %vm326 = vmand %vm321, %vm325
    %vm327 = vmand %vm322, %vm325
    %vm328 = vmand %vm323, %vm325
    %vm329 = vmand %vm324, %vm325
    %vm330 = vmor %vm304, %vm326
    %vm331 = vmor %vm305, %vm327
    %vm332 = vmor %vm306, %vm328
    %vm333 = vmor %vm307, %vm329
    %vm334 = vmand %vm282, %vm330
    %vm335 = vmand %vm283, %vm331
    %vm336 = vmand %vm284, %vm332
    %vm337 = vmand %vm285, %vm333
    %v338 = vsel %vm334, 1, 0
    %v339 = vsel %vm335, 1, 0
    %v340 = vsel %vm336, 1, 0
    %v341 = vsel %vm337, 1, 0
    %v342 = vcvt.s32.f32 %v338
    %v343 = vcvt.s32.f32 %v339
    %v344 = vcvt.s32.f32 %v340
    %v345 = vcvt.s32.f32 %v341
    %vm346 = vcmask 261120
    %v348 = vsel %vm346, %v342, 0
    %v351 = vsel %vm346, %v343, 0
    %v354 = vsel %vm346, %v344, 0
    %v357 = vsel %vm346, %v345, 0
    %359 = vmatpush.msra.mxu0 0.0
    %360 = vmatpush.msra.mxu0 0.0
    %361 = vmatpush.msra.mxu0 0.0
    %362 = vmatpush.msra.mxu0 0.0
    %363 = vmatpush.msra.mxu0 0.0
    %364 = vmatpush.msra.mxu0 0.0
    %365 = vmatpush.msra.mxu0 0.0
    %366 = vmatpush.msra.mxu0 0.0
    %367 = vmatpush.msra.mxu0 0.0
    %368 = vmatpush.msra.mxu0 0.0
    %369 = vmatpush.msra.mxu0 0.0
    %370 = vmatpush.msra.mxu0 0.0
    %371 = vmatpush.msra.mxu0 %v277
    %372 = vmatpush.msra.mxu0 %v276
    %373 = vmatpush.msra.mxu0 %v275
    %374 = vmatpush.msra.mxu0 %v274
    %375 = vmatmul.f32.gmra.mxu0 %v348
    %v376 = vpop.f32.mrf.mxu0
    %v377 = vadd.f32 0.0, %v376
    %378 = vmatmul.f32.gmra.mxu0 %v351
    %v379 = vpop.f32.mrf.mxu0
    %v380 = vadd.f32 0.0, %v379
    %381 = vmatmul.f32.gmra.mxu0 %v354
    %v382 = vpop.f32.mrf.mxu0
    %v383 = vadd.f32 0.0, %v382
    %384 = vmatmul.f32.gmra.mxu0 %v357
    %v385 = vpop.f32.mrf.mxu0
    %v386 = vadd.f32 0.0, %v385
    %387 = vdwg.mxu0
    %v388 = vpack.c.bf16 %v380, %v377
    %v389 = vpack.c.bf16 %v386, %v383
    %v390 = vld [vmem:[%s3] sm:$0xf]
    %v391 = vld [vmem:[%s3 + $0x4] sm:$0xf]
    %v392 = vld [vmem:[%s3 + $0x8] sm:$0xf]
    %v393 = vld [vmem:[%s3 + $0xc] sm:$0xf]
    %v394 = vld [vmem:[%s3 + $0x10] sm:$0xf]
    %v395 = vld [vmem:[%s3 + $0x14] sm:$0xf]
    %v396 = vld [vmem:[%s3 + $0x18] sm:$0xf]
    %v397 = vld [vmem:[%s3 + $0x1c] sm:$0xf]
    %v398 = vadd.s32 %v153, 4294967295
    %v399 = vadd.s32 %v154, 4294967295
    %v400 = vadd.s32 %v155, 4294967295
    %v401 = vadd.s32 %v156, 4294967295
    %vm402 = vcmp.eq.s32.totalorder %v158, %v398
    %vm403 = vcmp.eq.s32.totalorder %v158, %v399
    %vm404 = vcmp.eq.s32.totalorder %v158, %v400
    %vm405 = vcmp.eq.s32.totalorder %v158, %v401
    %vm406 = vmand %vm402, %vm330
    %vm407 = vmand %vm403, %vm331
    %vm408 = vmand %vm404, %vm332
    %vm409 = vmand %vm405, %vm333
    %v410 = vsel %vm406, 1, 0
    %v411 = vsel %vm407, 1, 0
    %v412 = vsel %vm408, 1, 0
    %v413 = vsel %vm409, 1, 0
    %v414 = vcvt.s32.f32 %v410
    %v415 = vcvt.s32.f32 %v411
    %v416 = vcvt.s32.f32 %v412
    %v417 = vcvt.s32.f32 %v413
    %v419 = vsel %vm346, %v414, 0
    %v422 = vsel %vm346, %v415, 0
    %v425 = vsel %vm346, %v416, 0
    %v428 = vsel %vm346, %v417, 0
    %430 = vmatpush.msra.mxu0 0.0
    %431 = vmatpush.msra.mxu0 0.0
    %432 = vmatpush.msra.mxu0 0.0
    %433 = vmatpush.msra.mxu0 0.0
    %434 = vmatpush.msra.mxu0 0.0
    %435 = vmatpush.msra.mxu0 0.0
    %436 = vmatpush.msra.mxu0 0.0
    %437 = vmatpush.msra.mxu0 0.0
    %438 = vmatpush.msra.mxu0 0.0
    %439 = vmatpush.msra.mxu0 0.0
    %440 = vmatpush.msra.mxu0 0.0
    %441 = vmatpush.msra.mxu0 0.0
    %442 = vmatpush.msra.mxu0 %v277
    %443 = vmatpush.msra.mxu0 %v276
    %444 = vmatpush.msra.mxu0 %v275
    %445 = vmatpush.msra.mxu0 %v274
    %446 = vmatmul.f32.gmra.mxu0 %v419
    %v447 = vpop.f32.mrf.mxu0
    %v448 = vadd.f32 0.0, %v447
    %449 = vmatmul.f32.gmra.mxu0 %v422
    %v450 = vpop.f32.mrf.mxu0
    %v451 = vadd.f32 0.0, %v450
    %452 = vmatmul.f32.gmra.mxu0 %v425
    %v453 = vpop.f32.mrf.mxu0
    %v454 = vadd.f32 0.0, %v453
    %455 = vmatmul.f32.gmra.mxu0 %v428
    %v456 = vpop.f32.mrf.mxu0
    %v457 = vadd.f32 0.0, %v456
    %458 = vdwg.mxu0
    %v459 = vpack.c.bf16 %v451, %v448
    %v460 = vpack.c.bf16 %v457, %v454
    %s461 = scalar_lea.vmem %s3, 32
    %v462 = vld [vmem:[%s461] sm:$0xf]
    %v463 = vld [vmem:[%s461 + $0x4] sm:$0xf]
    %v464 = vld [vmem:[%s461 + $0x8] sm:$0xf]
    %v465 = vld [vmem:[%s461 + $0xc] sm:$0xf]
    %v466 = vld [vmem:[%s461 + $0x10] sm:$0xf]
    %v467 = vld [vmem:[%s461 + $0x14] sm:$0xf]
    %v468 = vld [vmem:[%s461 + $0x18] sm:$0xf]
    %v469 = vld [vmem:[%s461 + $0x1c] sm:$0xf]
    %v478 = vunpack.c.l.b16 %v462
    %v479 = vunpack.c.l.b16 %v463
    %v480 = vunpack.c.l.b16 %v464
    %v481 = vunpack.c.l.b16 %v465
    %v482 = vunpack.c.l.b16 %v466
    %v483 = vunpack.c.l.b16 %v467
    %v484 = vunpack.c.l.b16 %v468
    %v485 = vunpack.c.l.b16 %v469
    %v486 = vpack.c.b16 %v479, %v478
    %v487 = vpack.c.b16 %v481, %v480
    %v488 = vpack.c.b16 %v483, %v482
    %v489 = vpack.c.b16 %v485, %v484
    %v495 = vsel %vm191, %v459, 0
    %v498 = vsel %vm191, %v460, 0
    %500 = vmatpush.bf16.msra.mxu0 0
    %501 = vmatpush.bf16.msra.mxu0 0
    %502 = vmatpush.bf16.msra.mxu0 0
    %503 = vmatpush.bf16.msra.mxu0 0
    %504 = vmatpush.bf16.msra.mxu0 %v489
    %505 = vmatpush.bf16.msra.mxu0 %v488
    %506 = vmatpush.bf16.msra.mxu0 %v487
    %507 = vmatpush.bf16.msra.mxu0 %v486
    %508 = vmatmul.bf16.gmra.mxu0 %v495
    %v509 = vpop.f32.mrf.mxu0
    %v510 = vadd.f32 0.0, %v509
    %v511 = vpop.f32.mrf.mxu0
    %v512 = vadd.f32 0.0, %v511
    %513 = vmatmul.bf16.gmra.mxu0 %v498
    %v514 = vpop.f32.mrf.mxu0
    %v515 = vadd.f32 0.0, %v514
    %v516 = vpop.f32.mrf.mxu0
    %v517 = vadd.f32 0.0, %v516
    %518 = vdwg.mxu0
    %v527 = vunpack.c.l.b16 %v390
    %v528 = vunpack.c.l.b16 %v391
    %v529 = vunpack.c.l.b16 %v392
    %v530 = vunpack.c.l.b16 %v393
    %v531 = vunpack.c.l.b16 %v394
    %v532 = vunpack.c.l.b16 %v395
    %v533 = vunpack.c.l.b16 %v396
    %v534 = vunpack.c.l.b16 %v397
    %v535 = vpack.c.b16 %v528, %v527
    %v536 = vpack.c.b16 %v530, %v529
    %v537 = vpack.c.b16 %v532, %v531
    %v538 = vpack.c.b16 %v534, %v533
    %v544 = vsel %vm191, %v388, 0
    %v547 = vsel %vm191, %v389, 0
    %549 = vmatpush.bf16.msra.mxu0 0
    %550 = vmatpush.bf16.msra.mxu0 0
    %551 = vmatpush.bf16.msra.mxu0 0
    %552 = vmatpush.bf16.msra.mxu0 0
    %553 = vmatpush.bf16.msra.mxu0 %v538
    %554 = vmatpush.bf16.msra.mxu0 %v537
    %555 = vmatpush.bf16.msra.mxu0 %v536
    %556 = vmatpush.bf16.msra.mxu0 %v535
    %557 = vmatmul.bf16.gmra.mxu0 %v544
    %v558 = vpop.f32.mrf.mxu0
    %v559 = vadd.f32 %v510, %v558
    %v560 = vpop.f32.mrf.mxu0
    %v561 = vadd.f32 %v512, %v560
    %562 = vmatmul.bf16.gmra.mxu0 %v547
    %v563 = vpop.f32.mrf.mxu0
    %v564 = vadd.f32 %v515, %v563
    %v565 = vpop.f32.mrf.mxu0
    %v566 = vadd.f32 %v517, %v565
    %567 = vdwg.mxu0
    %v568 = vpack.c.bf16 %v275, %v274
    %v569 = vpack.c.bf16 %v277, %v276
    %s570 = scalar_lea.vmem %s3, 64
    %v571 = vld [vmem:[%s570] sm:$0xf]
    %v572 = vld [vmem:[%s570 + $0x4] sm:$0xf]
    %v573 = vld [vmem:[%s570 + $0x8] sm:$0xf]
    %v574 = vld [vmem:[%s570 + $0xc] sm:$0xf]
    %v575 = vld [vmem:[%s570 + $0x10] sm:$0xf]
    %v576 = vld [vmem:[%s570 + $0x14] sm:$0xf]
    %v577 = vld [vmem:[%s570 + $0x18] sm:$0xf]
    %v578 = vld [vmem:[%s570 + $0x1c] sm:$0xf]
    %v587 = vunpack.c.l.b16 %v571
    %v588 = vunpack.c.l.b16 %v572
    %v589 = vunpack.c.l.b16 %v573
    %v590 = vunpack.c.l.b16 %v574
    %v591 = vunpack.c.l.b16 %v575
    %v592 = vunpack.c.l.b16 %v576
    %v593 = vunpack.c.l.b16 %v577
    %v594 = vunpack.c.l.b16 %v578
    %v595 = vpack.c.b16 %v588, %v587
    %v596 = vpack.c.b16 %v590, %v589
    %v597 = vpack.c.b16 %v592, %v591
    %v598 = vpack.c.b16 %v594, %v593
    %v604 = vsel %vm191, %v568, 0
    %v607 = vsel %vm191, %v569, 0
    %609 = vmatpush.bf16.msra.mxu0 0
    %610 = vmatpush.bf16.msra.mxu0 0
    %611 = vmatpush.bf16.msra.mxu0 0
    %612 = vmatpush.bf16.msra.mxu0 0
    %613 = vmatpush.bf16.msra.mxu0 %v598
    %614 = vmatpush.bf16.msra.mxu0 %v597
    %615 = vmatpush.bf16.msra.mxu0 %v596
    %616 = vmatpush.bf16.msra.mxu0 %v595
    %617 = vmatmul.bf16.gmra.mxu0 %v604
    %v618 = vpop.f32.mrf.mxu0
    %v619 = vadd.f32 0.0, %v618
    %v620 = vpop.f32.mrf.mxu0
    %v621 = vadd.f32 0.0, %v620
    %622 = vmatmul.bf16.gmra.mxu0 %v607
    %v623 = vpop.f32.mrf.mxu0
    %v624 = vadd.f32 0.0, %v623
    %v625 = vpop.f32.mrf.mxu0
    %v626 = vadd.f32 0.0, %v625
    %627 = vdwg.mxu0
    %v628 = vadd.f32 %v559, %v619
    %v629 = vadd.f32 %v561, %v621
    %v630 = vadd.f32 %v564, %v624
    %v631 = vadd.f32 %v566, %v626
    %v632 = vadd.s32 %v153, 1
    %v633 = vadd.s32 %v154, 1
    %v634 = vadd.s32 %v155, 1
    %v635 = vadd.s32 %v156, 1
    %vm636 = vcmp.eq.s32.totalorder %v158, %v632
    %vm637 = vcmp.eq.s32.totalorder %v158, %v633
    %vm638 = vcmp.eq.s32.totalorder %v158, %v634
    %vm639 = vcmp.eq.s32.totalorder %v158, %v635
    %vm640 = vmand %vm636, %vm330
    %vm641 = vmand %vm637, %vm331
    %vm642 = vmand %vm638, %vm332
    %vm643 = vmand %vm639, %vm333
    %v644 = vsel %vm640, 1, 0
    %v645 = vsel %vm641, 1, 0
    %v646 = vsel %vm642, 1, 0
    %v647 = vsel %vm643, 1, 0
    %v648 = vcvt.s32.f32 %v644
    %v649 = vcvt.s32.f32 %v645
    %v650 = vcvt.s32.f32 %v646
    %v651 = vcvt.s32.f32 %v647
    %v653 = vsel %vm346, %v648, 0
    %v656 = vsel %vm346, %v649, 0
    %v659 = vsel %vm346, %v650, 0
    %v662 = vsel %vm346, %v651, 0
    %664 = vmatpush.msra.mxu0 0.0
    %665 = vmatpush.msra.mxu0 0.0
    %666 = vmatpush.msra.mxu0 0.0
    %667 = vmatpush.msra.mxu0 0.0
    %668 = vmatpush.msra.mxu0 0.0
    %669 = vmatpush.msra.mxu0 0.0
    %670 = vmatpush.msra.mxu0 0.0
    %671 = vmatpush.msra.mxu0 0.0
    %672 = vmatpush.msra.mxu0 0.0
    %673 = vmatpush.msra.mxu0 0.0
    %674 = vmatpush.msra.mxu0 0.0
    %675 = vmatpush.msra.mxu0 0.0
    %676 = vmatpush.msra.mxu0 %v277
    %677 = vmatpush.msra.mxu0 %v276
    %678 = vmatpush.msra.mxu0 %v275
    %679 = vmatpush.msra.mxu0 %v274
    %680 = vmatmul.f32.gmra.mxu0 %v653
    %v681 = vpop.f32.mrf.mxu0
    %v682 = vadd.f32 0.0, %v681
    %683 = vmatmul.f32.gmra.mxu0 %v656
    %v684 = vpop.f32.mrf.mxu0
    %v685 = vadd.f32 0.0, %v684
    %686 = vmatmul.f32.gmra.mxu0 %v659
    %v687 = vpop.f32.mrf.mxu0
    %v688 = vadd.f32 0.0, %v687
    %689 = vmatmul.f32.gmra.mxu0 %v662
    %v690 = vpop.f32.mrf.mxu0
    %v691 = vadd.f32 0.0, %v690
    %692 = vdwg.mxu0
    %v693 = vpack.c.bf16 %v685, %v682
    %v694 = vpack.c.bf16 %v691, %v688
    %s695 = scalar_lea.vmem %s3, 96
    %v696 = vld [vmem:[%s695] sm:$0xf]
    %v697 = vld [vmem:[%s695 + $0x4] sm:$0xf]
    %v698 = vld [vmem:[%s695 + $0x8] sm:$0xf]
    %v699 = vld [vmem:[%s695 + $0xc] sm:$0xf]
    %v700 = vld [vmem:[%s695 + $0x10] sm:$0xf]
    %v701 = vld [vmem:[%s695 + $0x14] sm:$0xf]
    %v702 = vld [vmem:[%s695 + $0x18] sm:$0xf]
    %v703 = vld [vmem:[%s695 + $0x1c] sm:$0xf]
    %v712 = vunpack.c.l.b16 %v696
    %v713 = vunpack.c.l.b16 %v697
    %v714 = vunpack.c.l.b16 %v698
    %v715 = vunpack.c.l.b16 %v699
    %v716 = vunpack.c.l.b16 %v700
    %v717 = vunpack.c.l.b16 %v701
    %v718 = vunpack.c.l.b16 %v702
    %v719 = vunpack.c.l.b16 %v703
    %v720 = vpack.c.b16 %v713, %v712
    %v721 = vpack.c.b16 %v715, %v714
    %v722 = vpack.c.b16 %v717, %v716
    %v723 = vpack.c.b16 %v719, %v718
    %v729 = vsel %vm191, %v693, 0
    %v732 = vsel %vm191, %v694, 0
    %734 = vmatpush.bf16.msra.mxu0 0
    %735 = vmatpush.bf16.msra.mxu0 0
    %736 = vmatpush.bf16.msra.mxu0 0
    %737 = vmatpush.bf16.msra.mxu0 0
    %738 = vmatpush.bf16.msra.mxu0 %v723
    %739 = vmatpush.bf16.msra.mxu0 %v722
    %740 = vmatpush.bf16.msra.mxu0 %v721
    %741 = vmatpush.bf16.msra.mxu0 %v720
    %742 = vmatmul.bf16.gmra.mxu0 %v729
    %v743 = vpop.f32.mrf.mxu0
    %v744 = vadd.f32 0.0, %v743
    %v745 = vpop.f32.mrf.mxu0
    %v746 = vadd.f32 0.0, %v745
    %747 = vmatmul.bf16.gmra.mxu0 %v732
    %v748 = vpop.f32.mrf.mxu0
    %v749 = vadd.f32 0.0, %v748
    %v750 = vpop.f32.mrf.mxu0
    %v751 = vadd.f32 0.0, %v750
    %752 = vdwg.mxu0
    %v753 = vadd.f32 %v628, %v744
    %v754 = vadd.f32 %v629, %v746
    %v755 = vadd.f32 %v630, %v749
    %v756 = vadd.f32 %v631, %v751
    %v757 = vadd.s32 %v153, 2
    %v758 = vadd.s32 %v154, 2
    %v759 = vadd.s32 %v155, 2
    %v760 = vadd.s32 %v156, 2
    %vm761 = vcmp.eq.s32.totalorder %v158, %v757
    %vm762 = vcmp.eq.s32.totalorder %v158, %v758
    %vm763 = vcmp.eq.s32.totalorder %v158, %v759
    %vm764 = vcmp.eq.s32.totalorder %v158, %v760
    %vm765 = vmand %vm761, %vm330
    %vm766 = vmand %vm762, %vm331
    %vm767 = vmand %vm763, %vm332
    %vm768 = vmand %vm764, %vm333
    %v769 = vsel %vm765, 1, 0
    %v770 = vsel %vm766, 1, 0
    %v771 = vsel %vm767, 1, 0
    %v772 = vsel %vm768, 1, 0
    %v773 = vcvt.s32.f32 %v769
    %v774 = vcvt.s32.f32 %v770
    %v775 = vcvt.s32.f32 %v771
    %v776 = vcvt.s32.f32 %v772
    %v778 = vsel %vm346, %v773, 0
    %v781 = vsel %vm346, %v774, 0
    %v784 = vsel %vm346, %v775, 0
    %v787 = vsel %vm346, %v776, 0
    %789 = vmatpush.msra.mxu0 0.0
    %790 = vmatpush.msra.mxu0 0.0
    %791 = vmatpush.msra.mxu0 0.0
    %792 = vmatpush.msra.mxu0 0.0
    %793 = vmatpush.msra.mxu0 0.0
    %794 = vmatpush.msra.mxu0 0.0
    %795 = vmatpush.msra.mxu0 0.0
    %796 = vmatpush.msra.mxu0 0.0
    %797 = vmatpush.msra.mxu0 0.0
    %798 = vmatpush.msra.mxu0 0.0
    %799 = vmatpush.msra.mxu0 0.0
    %800 = vmatpush.msra.mxu0 0.0
    %801 = vmatpush.msra.mxu0 %v277
    %802 = vmatpush.msra.mxu0 %v276
    %803 = vmatpush.msra.mxu0 %v275
    %804 = vmatpush.msra.mxu0 %v274
    %805 = vmatmul.f32.gmra.mxu0 %v778
    %v806 = vpop.f32.mrf.mxu0
    %v807 = vadd.f32 0.0, %v806
    %808 = vmatmul.f32.gmra.mxu0 %v781
    %v809 = vpop.f32.mrf.mxu0
    %v810 = vadd.f32 0.0, %v809
    %811 = vmatmul.f32.gmra.mxu0 %v784
    %v812 = vpop.f32.mrf.mxu0
    %v813 = vadd.f32 0.0, %v812
    %814 = vmatmul.f32.gmra.mxu0 %v787
    %v815 = vpop.f32.mrf.mxu0
    %v816 = vadd.f32 0.0, %v815
    %817 = vdwg.mxu0
    %v818 = vpack.c.bf16 %v810, %v807
    %v819 = vpack.c.bf16 %v816, %v813
    %s820 = scalar_lea.vmem %s3, 128
    %v821 = vld [vmem:[%s820] sm:$0xf]
    %v822 = vld [vmem:[%s820 + $0x4] sm:$0xf]
    %v823 = vld [vmem:[%s820 + $0x8] sm:$0xf]
    %v824 = vld [vmem:[%s820 + $0xc] sm:$0xf]
    %v825 = vld [vmem:[%s820 + $0x10] sm:$0xf]
    %v826 = vld [vmem:[%s820 + $0x14] sm:$0xf]
    %v827 = vld [vmem:[%s820 + $0x18] sm:$0xf]
    %v828 = vld [vmem:[%s820 + $0x1c] sm:$0xf]
    %v837 = vunpack.c.l.b16 %v821
    %v838 = vunpack.c.l.b16 %v822
    %v839 = vunpack.c.l.b16 %v823
    %v840 = vunpack.c.l.b16 %v824
    %v841 = vunpack.c.l.b16 %v825
    %v842 = vunpack.c.l.b16 %v826
    %v843 = vunpack.c.l.b16 %v827
    %v844 = vunpack.c.l.b16 %v828
    %v845 = vpack.c.b16 %v838, %v837
    %v846 = vpack.c.b16 %v840, %v839
    %v847 = vpack.c.b16 %v842, %v841
    %v848 = vpack.c.b16 %v844, %v843
    %v854 = vsel %vm191, %v818, 0
    %v857 = vsel %vm191, %v819, 0
    %859 = vmatpush.bf16.msra.mxu0 0
    %860 = vmatpush.bf16.msra.mxu0 0
    %861 = vmatpush.bf16.msra.mxu0 0
    %862 = vmatpush.bf16.msra.mxu0 0
    %863 = vmatpush.bf16.msra.mxu0 %v848
    %864 = vmatpush.bf16.msra.mxu0 %v847
    %865 = vmatpush.bf16.msra.mxu0 %v846
    %866 = vmatpush.bf16.msra.mxu0 %v845
    %867 = vmatmul.bf16.gmra.mxu0 %v854
    %v868 = vpop.f32.mrf.mxu0
    %v869 = vadd.f32 0.0, %v868
    %v870 = vpop.f32.mrf.mxu0
    %v871 = vadd.f32 0.0, %v870
    %872 = vmatmul.bf16.gmra.mxu0 %v857
    %v873 = vpop.f32.mrf.mxu0
    %v874 = vadd.f32 0.0, %v873
    %v875 = vpop.f32.mrf.mxu0
    %v876 = vadd.f32 0.0, %v875
    %877 = vdwg.mxu0
    %v878 = vadd.f32 %v753, %v869
    %v879 = vadd.f32 %v754, %v871
    %v880 = vadd.f32 %v755, %v874
    %v881 = vadd.f32 %v756, %v876
    %v882 = vld [vmem:[%s4] sm:$0x1]
    %v884 = vperm.slane %v882, 0
    %v886 = vadd.f32 %v878, %v884
    %v887 = vadd.f32 %v879, %v884
    %v888 = vadd.f32 %v880, %v884
    %v889 = vadd.f32 %v881, %v884
    %v890 = vmax.f32 %v886, 0.0
    %v891 = vmax.f32 %v887, 0.0
    %v892 = vmax.f32 %v888, 0.0
    %v893 = vmax.f32 %v889, 0.0
    %v894 = vsel %vm346, %v171, 0
    %v896 = vsel %vm346, %v172, 0
    %898 = vmatpush.msra.mxu0 0.0
    %899 = vmatpush.msra.mxu0 0.0
    %900 = vmatpush.msra.mxu0 0.0
    %901 = vmatpush.msra.mxu0 0.0
    %902 = vmatpush.msra.mxu0 0.0
    %903 = vmatpush.msra.mxu0 0.0
    %904 = vmatpush.msra.mxu0 0.0
    %905 = vmatpush.msra.mxu0 0.0
    %906 = vmatpush.msra.mxu0 0.0
    %907 = vmatpush.msra.mxu0 0.0
    %908 = vmatpush.msra.mxu0 0.0
    %909 = vmatpush.msra.mxu0 0.0
    %910 = vmatpush.msra.mxu0 %v893
    %911 = vmatpush.msra.mxu0 %v892
    %912 = vmatpush.msra.mxu0 %v891
    %913 = vmatpush.msra.mxu0 %v890
    %914 = vmatmul.f32.gmra.mxu0 %v894
    %v915 = vpop.f32.mrf.mxu0
    %v916 = vadd.f32 0.0, %v915
    %917 = vmatmul.f32.gmra.mxu0 %v896
    %v918 = vpop.f32.mrf.mxu0
    %v919 = vadd.f32 0.0, %v918
    %920 = vdwg.mxu0
    %v921 = vsel %vm346, %v187, 0
    %v923 = vsel %vm346, %v188, 0
    %925 = vmatpush.msra.mxu0 0.0
    %926 = vmatpush.msra.mxu0 0.0
    %927 = vmatpush.msra.mxu0 0.0
    %928 = vmatpush.msra.mxu0 0.0
    %929 = vmatpush.msra.mxu0 0.0
    %930 = vmatpush.msra.mxu0 0.0
    %931 = vmatpush.msra.mxu0 0.0
    %932 = vmatpush.msra.mxu0 0.0
    %933 = vmatpush.msra.mxu0 0.0
    %934 = vmatpush.msra.mxu0 0.0
    %935 = vmatpush.msra.mxu0 0.0
    %936 = vmatpush.msra.mxu0 0.0
    %937 = vmatpush.msra.mxu0 %v893
    %938 = vmatpush.msra.mxu0 %v892
    %939 = vmatpush.msra.mxu0 %v891
    %940 = vmatpush.msra.mxu0 %v890
    %941 = vmatmul.f32.gmra.mxu0 %v921
    %v942 = vpop.f32.mrf.mxu0
    %v943 = vadd.f32 0.0, %v942
    %944 = vmatmul.f32.gmra.mxu0 %v923
    %v945 = vpop.f32.mrf.mxu0
    %v946 = vadd.f32 0.0, %v945
    %947 = vdwg.mxu0
    %v948 = vmax.f32 %v916, %v943
    %v949 = vmax.f32 %v919, %v946
    %vm950 = vcmp.lt.s32.totalorder %v153, 8
    %vm951 = vcmp.lt.s32.totalorder %v154, 8
    %vm952 = vmand %vm286, %vm950
    %vm953 = vmand %vm287, %vm951
    %vm954 = vmand %vm952, %vm298
    %vm955 = vmand %vm953, %vm298
    %vm956 = vcmp.lt.s32.totalorder %v158, 8
    %vm957 = vmand %vm954, %vm956
    %vm958 = vmand %vm955, %vm956
    %vm959 = vcmp.ge.s32.totalorder %v153, 8
    %vm960 = vcmp.ge.s32.totalorder %v154, 8
    %vm961 = vmand %vm959, %vm290
    %vm962 = vmand %vm960, %vm291
    %vm963 = vcmp.ge.s32.totalorder %v158, 8
    %vm964 = vmand %vm961, %vm963
    %vm965 = vmand %vm962, %vm963
    %vm966 = vmand %vm964, %vm303
    %vm967 = vmand %vm965, %vm303
    %vm968 = vmor %vm957, %vm966
    %vm969 = vmor %vm958, %vm967
    %vm970 = vmand %vm402, %vm968
    %vm971 = vmand %vm403, %vm969
    %v972 = vsel %vm970, 1, 0
    %v973 = vsel %vm971, 1, 0
    %v974 = vcvt.s32.f32 %v972
    %v975 = vcvt.s32.f32 %v973
    %vm976 = vcmask 130048
    %v978 = vsel %vm976, %v974, 0
    %v981 = vsel %vm976, %v975, 0
    %983 = vmatpush.msra.mxu0 0.0
    %984 = vmatpush.msra.mxu0 0.0
    %985 = vmatpush.msra.mxu0 0.0
    %986 = vmatpush.msra.mxu0 0.0
    %987 = vmatpush.msra.mxu0 0.0
    %988 = vmatpush.msra.mxu0 0.0
    %989 = vmatpush.msra.mxu0 0.0
    %990 = vmatpush.msra.mxu0 0.0
    %991 = vmatpush.msra.mxu0 0.0
    %992 = vmatpush.msra.mxu0 0.0
    %993 = vmatpush.msra.mxu0 0.0
    %994 = vmatpush.msra.mxu0 0.0
    %995 = vmatpush.msra.mxu0 0.0
    %996 = vmatpush.msra.mxu0 0.0
    %997 = vmatpush.msra.mxu0 %v949
    %998 = vmatpush.msra.mxu0 %v948
    %999 = vmatmul.f32.gmra.mxu0 %v978
    %v1000 = vpop.f32.mrf.mxu0
    %v1001 = vadd.f32 0.0, %v1000
    %1002 = vmatmul.f32.gmra.mxu0 %v981
    %v1003 = vpop.f32.mrf.mxu0
    %v1004 = vadd.f32 0.0, %v1003
    %1005 = vdwg.mxu0
    %v1006 = vpack.c.bf16 %v1004, %v1001
    %v1007 = vld [vmem:[#allocation2] sm:$0xff]
    %v1008 = vld [vmem:[#allocation2 + $0x8] sm:$0xff]
    %v1009 = vld [vmem:[#allocation2 + $0x10] sm:$0xff]
    %v1010 = vld [vmem:[#allocation2 + $0x18] sm:$0xff]
    %v1011 = vld [vmem:[#allocation2 + $0x20] sm:$0xff]
    %v1012 = vld [vmem:[#allocation2 + $0x28] sm:$0xff]
    %v1013 = vld [vmem:[#allocation2 + $0x30] sm:$0xff]
    %v1014 = vld [vmem:[#allocation2 + $0x38] sm:$0xff]
    %v1015 = vld [vmem:[#allocation2 + $0x40] sm:$0xff]
    %v1016 = vld [vmem:[#allocation2 + $0x48] sm:$0xff]
    %v1017 = vld [vmem:[#allocation2 + $0x50] sm:$0xff]
    %v1018 = vld [vmem:[#allocation2 + $0x58] sm:$0xff]
    %v1019 = vld [vmem:[#allocation2 + $0x60] sm:$0xff]
    %v1020 = vld [vmem:[#allocation2 + $0x68] sm:$0xff]
    %v1021 = vld [vmem:[#allocation2 + $0x70] sm:$0xff]
    %v1022 = vld [vmem:[#allocation2 + $0x78] sm:$0xff]
    %v1023 = vpack.c.bf16 %v949, %v948
    %s1024 = scalar_lea.vmem [#allocation2], 128
    %v1025 = vld [vmem:[%s1024] sm:$0xff]
    %v1026 = vld [vmem:[%s1024 + $0x8] sm:$0xff]
    %v1027 = vld [vmem:[%s1024 + $0x10] sm:$0xff]
    %v1028 = vld [vmem:[%s1024 + $0x18] sm:$0xff]
    %v1029 = vld [vmem:[%s1024 + $0x20] sm:$0xff]
    %v1030 = vld [vmem:[%s1024 + $0x28] sm:$0xff]
    %v1031 = vld [vmem:[%s1024 + $0x30] sm:$0xff]
    %v1032 = vld [vmem:[%s1024 + $0x38] sm:$0xff]
    %v1033 = vld [vmem:[%s1024 + $0x40] sm:$0xff]
    %v1034 = vld [vmem:[%s1024 + $0x48] sm:$0xff]
    %v1035 = vld [vmem:[%s1024 + $0x50] sm:$0xff]
    %v1036 = vld [vmem:[%s1024 + $0x58] sm:$0xff]
    %v1037 = vld [vmem:[%s1024 + $0x60] sm:$0xff]
    %v1038 = vld [vmem:[%s1024 + $0x68] sm:$0xff]
    %v1039 = vld [vmem:[%s1024 + $0x70] sm:$0xff]
    %v1040 = vld [vmem:[%s1024 + $0x78] sm:$0xff]
    %v1057 = vunpack.c.l.b16 %v1025
    %v1058 = vunpack.c.h.b16 %v1025
    %v1059 = vunpack.c.l.b16 %v1026
    %v1060 = vunpack.c.h.b16 %v1026
    %v1061 = vunpack.c.l.b16 %v1027
    %v1062 = vunpack.c.h.b16 %v1027
    %v1063 = vunpack.c.l.b16 %v1028
    %v1064 = vunpack.c.h.b16 %v1028
    %v1065 = vunpack.c.l.b16 %v1029
    %v1066 = vunpack.c.h.b16 %v1029
    %v1067 = vunpack.c.l.b16 %v1030
    %v1068 = vunpack.c.h.b16 %v1030
    %v1069 = vunpack.c.l.b16 %v1031
    %v1070 = vunpack.c.h.b16 %v1031
    %v1071 = vunpack.c.l.b16 %v1032
    %v1072 = vunpack.c.h.b16 %v1032
    %v1073 = vunpack.c.l.b16 %v1033
    %v1074 = vunpack.c.h.b16 %v1033
    %v1075 = vunpack.c.l.b16 %v1034
    %v1076 = vunpack.c.h.b16 %v1034
    %v1077 = vunpack.c.l.b16 %v1035
    %v1078 = vunpack.c.h.b16 %v1035
    %v1079 = vunpack.c.l.b16 %v1036
    %v1080 = vunpack.c.h.b16 %v1036
    %v1081 = vunpack.c.l.b16 %v1037
    %v1082 = vunpack.c.h.b16 %v1037
    %v1083 = vunpack.c.l.b16 %v1038
    %v1084 = vunpack.c.h.b16 %v1038
    %v1085 = vunpack.c.l.b16 %v1039
    %v1086 = vunpack.c.h.b16 %v1039
    %v1087 = vunpack.c.l.b16 %v1040
    %v1088 = vunpack.c.h.b16 %v1040
    %v1089 = vpack.c.b16 %v1059, %v1057
    %v1090 = vpack.c.b16 %v1060, %v1058
    %v1091 = vpack.c.b16 %v1063, %v1061
    %v1092 = vpack.c.b16 %v1064, %v1062
    %v1093 = vpack.c.b16 %v1067, %v1065
    %v1094 = vpack.c.b16 %v1068, %v1066
    %v1095 = vpack.c.b16 %v1071, %v1069
    %v1096 = vpack.c.b16 %v1072, %v1070
    %v1097 = vpack.c.b16 %v1075, %v1073
    %v1098 = vpack.c.b16 %v1076, %v1074
    %v1099 = vpack.c.b16 %v1079, %v1077
    %v1100 = vpack.c.b16 %v1080, %v1078
    %v1101 = vpack.c.b16 %v1083, %v1081
    %v1102 = vpack.c.b16 %v1084, %v1082
    %v1103 = vpack.c.b16 %v1087, %v1085
    %v1104 = vpack.c.b16 %v1088, %v1086
    %1121 = vmatpush.bf16.msra.mxu0 %v1103
    %1122 = vmatpush.bf16.msra.mxu0 %v1101
    %1123 = vmatpush.bf16.msra.mxu0 %v1099
    %1124 = vmatpush.bf16.msra.mxu0 %v1097
    %1125 = vmatpush.bf16.msra.mxu0 %v1095
    %1126 = vmatpush.bf16.msra.mxu0 %v1093
    %1127 = vmatpush.bf16.msra.mxu0 %v1091
    %1128 = vmatpush.bf16.msra.mxu0 %v1089
    %1129 = vmatmul.bf16.gmra.mxu0 %v1023
    %v1130 = vpop.f32.mrf.mxu0
    %v1131 = vadd.f32 0.0, %v1130
    %v1132 = vpop.f32.mrf.mxu0
    %v1133 = vadd.f32 0.0, %v1132
    %1134 = vdwg.mxu0
    %1135 = vmatpush.bf16.msra.mxu0 %v1104
    %1136 = vmatpush.bf16.msra.mxu0 %v1102
    %1137 = vmatpush.bf16.msra.mxu0 %v1100
    %1138 = vmatpush.bf16.msra.mxu0 %v1098
    %1139 = vmatpush.bf16.msra.mxu0 %v1096
    %1140 = vmatpush.bf16.msra.mxu0 %v1094
    %1141 = vmatpush.bf16.msra.mxu0 %v1092
    %1142 = vmatpush.bf16.msra.mxu0 %v1090
    %1143 = vmatmul.bf16.gmra.mxu0 %v1023
    %v1144 = vpop.f32.mrf.mxu0
    %v1145 = vadd.f32 0.0, %v1144
    %v1146 = vpop.f32.mrf.mxu0
    %v1147 = vadd.f32 0.0, %v1146
    %1148 = vdwg.mxu0
    %v1165 = vunpack.c.l.b16 %v1007
    %v1166 = vunpack.c.h.b16 %v1007
    %v1167 = vunpack.c.l.b16 %v1008
    %v1168 = vunpack.c.h.b16 %v1008
    %v1169 = vunpack.c.l.b16 %v1009
    %v1170 = vunpack.c.h.b16 %v1009
    %v1171 = vunpack.c.l.b16 %v1010
    %v1172 = vunpack.c.h.b16 %v1010
    %v1173 = vunpack.c.l.b16 %v1011
    %v1174 = vunpack.c.h.b16 %v1011
    %v1175 = vunpack.c.l.b16 %v1012
    %v1176 = vunpack.c.h.b16 %v1012
    %v1177 = vunpack.c.l.b16 %v1013
    %v1178 = vunpack.c.h.b16 %v1013
    %v1179 = vunpack.c.l.b16 %v1014
    %v1180 = vunpack.c.h.b16 %v1014
    %v1181 = vunpack.c.l.b16 %v1015
    %v1182 = vunpack.c.h.b16 %v1015
    %v1183 = vunpack.c.l.b16 %v1016
    %v1184 = vunpack.c.h.b16 %v1016
    %v1185 = vunpack.c.l.b16 %v1017
    %v1186 = vunpack.c.h.b16 %v1017
    %v1187 = vunpack.c.l.b16 %v1018
    %v1188 = vunpack.c.h.b16 %v1018
    %v1189 = vunpack.c.l.b16 %v1019
    %v1190 = vunpack.c.h.b16 %v1019
    %v1191 = vunpack.c.l.b16 %v1020
    %v1192 = vunpack.c.h.b16 %v1020
    %v1193 = vunpack.c.l.b16 %v1021
    %v1194 = vunpack.c.h.b16 %v1021
    %v1195 = vunpack.c.l.b16 %v1022
    %v1196 = vunpack.c.h.b16 %v1022
    %v1197 = vpack.c.b16 %v1167, %v1165
    %v1198 = vpack.c.b16 %v1168, %v1166
    %v1199 = vpack.c.b16 %v1171, %v1169
    %v1200 = vpack.c.b16 %v1172, %v1170
    %v1201 = vpack.c.b16 %v1175, %v1173
    %v1202 = vpack.c.b16 %v1176, %v1174
    %v1203 = vpack.c.b16 %v1179, %v1177
    %v1204 = vpack.c.b16 %v1180, %v1178
    %v1205 = vpack.c.b16 %v1183, %v1181
    %v1206 = vpack.c.b16 %v1184, %v1182
    %v1207 = vpack.c.b16 %v1187, %v1185
    %v1208 = vpack.c.b16 %v1188, %v1186
    %v1209 = vpack.c.b16 %v1191, %v1189
    %v1210 = vpack.c.b16 %v1192, %v1190
    %v1211 = vpack.c.b16 %v1195, %v1193
    %v1212 = vpack.c.b16 %v1196, %v1194
    %1229 = vmatpush.bf16.msra.mxu0 %v1211
    %1230 = vmatpush.bf16.msra.mxu0 %v1209
    %1231 = vmatpush.bf16.msra.mxu0 %v1207
    %1232 = vmatpush.bf16.msra.mxu0 %v1205
    %1233 = vmatpush.bf16.msra.mxu0 %v1203
    %1234 = vmatpush.bf16.msra.mxu0 %v1201
    %1235 = vmatpush.bf16.msra.mxu0 %v1199
    %1236 = vmatpush.bf16.msra.mxu0 %v1197
    %1237 = vmatmul.bf16.gmra.mxu0 %v1006
    %v1238 = vpop.f32.mrf.mxu0
    %v1239 = vadd.f32 %v1131, %v1238
    %v1240 = vpop.f32.mrf.mxu0
    %v1241 = vadd.f32 %v1133, %v1240
    %1242 = vdwg.mxu0
    %1243 = vmatpush.bf16.msra.mxu0 %v1212
    %1244 = vmatpush.bf16.msra.mxu0 %v1210
    %1245 = vmatpush.bf16.msra.mxu0 %v1208
    %1246 = vmatpush.bf16.msra.mxu0 %v1206
    %1247 = vmatpush.bf16.msra.mxu0 %v1204
    %1248 = vmatpush.bf16.msra.mxu0 %v1202
    %1249 = vmatpush.bf16.msra.mxu0 %v1200
    %1250 = vmatpush.bf16.msra.mxu0 %v1198
    %1251 = vmatmul.bf16.gmra.mxu0 %v1006
    %v1252 = vpop.f32.mrf.mxu0
    %v1253 = vadd.f32 %v1145, %v1252
    %v1254 = vpop.f32.mrf.mxu0
    %v1255 = vadd.f32 %v1147, %v1254
    %1256 = vdwg.mxu0
    %vm1257 = vmand %vm636, %vm968
    %vm1258 = vmand %vm637, %vm969
    %v1259 = vsel %vm1257, 1, 0
    %v1260 = vsel %vm1258, 1, 0
    %v1261 = vcvt.s32.f32 %v1259
    %v1262 = vcvt.s32.f32 %v1260
    %v1264 = vsel %vm976, %v1261, 0
    %v1267 = vsel %vm976, %v1262, 0
    %1269 = vmatpush.msra.mxu0 0.0
    %1270 = vmatpush.msra.mxu0 0.0
    %1271 = vmatpush.msra.mxu0 0.0
    %1272 = vmatpush.msra.mxu0 0.0
    %1273 = vmatpush.msra.mxu0 0.0
    %1274 = vmatpush.msra.mxu0 0.0
    %1275 = vmatpush.msra.mxu0 0.0
    %1276 = vmatpush.msra.mxu0 0.0
    %1277 = vmatpush.msra.mxu0 0.0
    %1278 = vmatpush.msra.mxu0 0.0
    %1279 = vmatpush.msra.mxu0 0.0
    %1280 = vmatpush.msra.mxu0 0.0
    %1281 = vmatpush.msra.mxu0 0.0
    %1282 = vmatpush.msra.mxu0 0.0
    %1283 = vmatpush.msra.mxu0 %v949
    %1284 = vmatpush.msra.mxu0 %v948
    %1285 = vmatmul.f32.gmra.mxu0 %v1264
    %v1286 = vpop.f32.mrf.mxu0
    %v1287 = vadd.f32 0.0, %v1286
    %1288 = vmatmul.f32.gmra.mxu0 %v1267
    %v1289 = vpop.f32.mrf.mxu0
    %v1290 = vadd.f32 0.0, %v1289
    %1291 = vdwg.mxu0
    %v1292 = vpack.c.bf16 %v1290, %v1287
    %s1293 = scalar_lea.vmem [#allocation2], 256
    %v1294 = vld [vmem:[%s1293] sm:$0xff]
    %v1295 = vld [vmem:[%s1293 + $0x8] sm:$0xff]
    %v1296 = vld [vmem:[%s1293 + $0x10] sm:$0xff]
    %v1297 = vld [vmem:[%s1293 + $0x18] sm:$0xff]
    %v1298 = vld [vmem:[%s1293 + $0x20] sm:$0xff]
    %v1299 = vld [vmem:[%s1293 + $0x28] sm:$0xff]
    %v1300 = vld [vmem:[%s1293 + $0x30] sm:$0xff]
    %v1301 = vld [vmem:[%s1293 + $0x38] sm:$0xff]
    %v1302 = vld [vmem:[%s1293 + $0x40] sm:$0xff]
    %v1303 = vld [vmem:[%s1293 + $0x48] sm:$0xff]
    %v1304 = vld [vmem:[%s1293 + $0x50] sm:$0xff]
    %v1305 = vld [vmem:[%s1293 + $0x58] sm:$0xff]
    %v1306 = vld [vmem:[%s1293 + $0x60] sm:$0xff]
    %v1307 = vld [vmem:[%s1293 + $0x68] sm:$0xff]
    %v1308 = vld [vmem:[%s1293 + $0x70] sm:$0xff]
    %v1309 = vld [vmem:[%s1293 + $0x78] sm:$0xff]
    %v1326 = vunpack.c.l.b16 %v1294
    %v1327 = vunpack.c.h.b16 %v1294
    %v1328 = vunpack.c.l.b16 %v1295
    %v1329 = vunpack.c.h.b16 %v1295
    %v1330 = vunpack.c.l.b16 %v1296
    %v1331 = vunpack.c.h.b16 %v1296
    %v1332 = vunpack.c.l.b16 %v1297
    %v1333 = vunpack.c.h.b16 %v1297
    %v1334 = vunpack.c.l.b16 %v1298
    %v1335 = vunpack.c.h.b16 %v1298
    %v1336 = vunpack.c.l.b16 %v1299
    %v1337 = vunpack.c.h.b16 %v1299
    %v1338 = vunpack.c.l.b16 %v1300
    %v1339 = vunpack.c.h.b16 %v1300
    %v1340 = vunpack.c.l.b16 %v1301
    %v1341 = vunpack.c.h.b16 %v1301
    %v1342 = vunpack.c.l.b16 %v1302
    %v1343 = vunpack.c.h.b16 %v1302
    %v1344 = vunpack.c.l.b16 %v1303
    %v1345 = vunpack.c.h.b16 %v1303
    %v1346 = vunpack.c.l.b16 %v1304
    %v1347 = vunpack.c.h.b16 %v1304
    %v1348 = vunpack.c.l.b16 %v1305
    %v1349 = vunpack.c.h.b16 %v1305
    %v1350 = vunpack.c.l.b16 %v1306
    %v1351 = vunpack.c.h.b16 %v1306
    %v1352 = vunpack.c.l.b16 %v1307
    %v1353 = vunpack.c.h.b16 %v1307
    %v1354 = vunpack.c.l.b16 %v1308
    %v1355 = vunpack.c.h.b16 %v1308
    %v1356 = vunpack.c.l.b16 %v1309
    %v1357 = vunpack.c.h.b16 %v1309
    %v1358 = vpack.c.b16 %v1328, %v1326
    %v1359 = vpack.c.b16 %v1329, %v1327
    %v1360 = vpack.c.b16 %v1332, %v1330
    %v1361 = vpack.c.b16 %v1333, %v1331
    %v1362 = vpack.c.b16 %v1336, %v1334
    %v1363 = vpack.c.b16 %v1337, %v1335
    %v1364 = vpack.c.b16 %v1340, %v1338
    %v1365 = vpack.c.b16 %v1341, %v1339
    %v1366 = vpack.c.b16 %v1344, %v1342
    %v1367 = vpack.c.b16 %v1345, %v1343
    %v1368 = vpack.c.b16 %v1348, %v1346
    %v1369 = vpack.c.b16 %v1349, %v1347
    %v1370 = vpack.c.b16 %v1352, %v1350
    %v1371 = vpack.c.b16 %v1353, %v1351
    %v1372 = vpack.c.b16 %v1356, %v1354
    %v1373 = vpack.c.b16 %v1357, %v1355
    %1390 = vmatpush.bf16.msra.mxu0 %v1372
    %1391 = vmatpush.bf16.msra.mxu0 %v1370
    %1392 = vmatpush.bf16.msra.mxu0 %v1368
    %1393 = vmatpush.bf16.msra.mxu0 %v1366
    %1394 = vmatpush.bf16.msra.mxu0 %v1364
    %1395 = vmatpush.bf16.msra.mxu0 %v1362
    %1396 = vmatpush.bf16.msra.mxu0 %v1360
    %1397 = vmatpush.bf16.msra.mxu0 %v1358
    %1398 = vmatmul.bf16.gmra.mxu0 %v1292
    %v1399 = vpop.f32.mrf.mxu0
    %v1400 = vadd.f32 0.0, %v1399
    %v1401 = vpop.f32.mrf.mxu0
    %v1402 = vadd.f32 0.0, %v1401
    %1403 = vdwg.mxu0
    %1404 = vmatpush.bf16.msra.mxu0 %v1373
    %1405 = vmatpush.bf16.msra.mxu0 %v1371
    %1406 = vmatpush.bf16.msra.mxu0 %v1369
    %1407 = vmatpush.bf16.msra.mxu0 %v1367
    %1408 = vmatpush.bf16.msra.mxu0 %v1365
    %1409 = vmatpush.bf16.msra.mxu0 %v1363
    %1410 = vmatpush.bf16.msra.mxu0 %v1361
    %1411 = vmatpush.bf16.msra.mxu0 %v1359
    %1412 = vmatmul.bf16.gmra.mxu0 %v1292
    %v1413 = vpop.f32.mrf.mxu0
    %v1414 = vadd.f32 0.0, %v1413
    %v1415 = vpop.f32.mrf.mxu0
    %v1416 = vadd.f32 0.0, %v1415
    %1417 = vdwg.mxu0
    %v1418 = vadd.f32 %v1239, %v1400
    %v1419 = vadd.f32 %v1253, %v1414
    %v1420 = vadd.f32 %v1241, %v1402
    %v1421 = vadd.f32 %v1255, %v1416
    %v1422 = vld [vmem:[%s6] sm:$0x3]
    %v1424 = vperm.slane %v1422, 0
    %v1425 = vperm.slane %v1422, 1
    %v1428 = vadd.f32 %v1418, %v1424
    %v1429 = vadd.f32 %v1419, %v1425
    %v1430 = vadd.f32 %v1420, %v1424
    %v1431 = vadd.f32 %v1421, %v1425
    %v1432 = vmax.f32 %v1428, 0.0
    %v1433 = vmax.f32 %v1429, 0.0
    %v1434 = vmax.f32 %v1430, 0.0
    %v1435 = vmax.f32 %v1431, 0.0
    %v1436 = vsel %vm976, %v171, 0
    %1438 = vmatpush.msra.mxu0 0.0
    %1439 = vmatpush.msra.mxu0 0.0
    %1440 = vmatpush.msra.mxu0 0.0
    %1441 = vmatpush.msra.mxu0 0.0
    %1442 = vmatpush.msra.mxu0 0.0
    %1443 = vmatpush.msra.mxu0 0.0
    %1444 = vmatpush.msra.mxu0 0.0
    %1445 = vmatpush.msra.mxu0 0.0
    %1446 = vmatpush.msra.mxu0 0.0
    %1447 = vmatpush.msra.mxu0 0.0
    %1448 = vmatpush.msra.mxu0 0.0
    %1449 = vmatpush.msra.mxu0 0.0
    %1450 = vmatpush.msra.mxu0 0.0
    %1451 = vmatpush.msra.mxu0 0.0
    %1452 = vmatpush.msra.mxu0 %v1434
    %1453 = vmatpush.msra.mxu0 %v1432
    %1454 = vmatmul.f32.gmra.mxu0 %v1436
    %v1455 = vpop.f32.mrf.mxu0
    %v1456 = vadd.f32 0.0, %v1455
    %1457 = vdwg.mxu0
    %1458 = vmatpush.msra.mxu0 0.0
    %1459 = vmatpush.msra.mxu0 0.0
    %1460 = vmatpush.msra.mxu0 0.0
    %1461 = vmatpush.msra.mxu0 0.0
    %1462 = vmatpush.msra.mxu0 0.0
    %1463 = vmatpush.msra.mxu0 0.0
    %1464 = vmatpush.msra.mxu0 0.0
    %1465 = vmatpush.msra.mxu0 0.0
    %1466 = vmatpush.msra.mxu0 0.0
    %1467 = vmatpush.msra.mxu0 0.0
    %1468 = vmatpush.msra.mxu0 0.0
    %1469 = vmatpush.msra.mxu0 0.0
    %1470 = vmatpush.msra.mxu0 0.0
    %1471 = vmatpush.msra.mxu0 0.0
    %1472 = vmatpush.msra.mxu0 %v1435
    %1473 = vmatpush.msra.mxu0 %v1433
    %1474 = vmatmul.f32.gmra.mxu0 %v1436
    %v1475 = vpop.f32.mrf.mxu0
    %v1476 = vadd.f32 0.0, %v1475
    %1477 = vdwg.mxu0
    %v1478 = vsel %vm976, %v187, 0
    %1480 = vmatpush.msra.mxu0 0.0
    %1481 = vmatpush.msra.mxu0 0.0
    %1482 = vmatpush.msra.mxu0 0.0
    %1483 = vmatpush.msra.mxu0 0.0
    %1484 = vmatpush.msra.mxu0 0.0
    %1485 = vmatpush.msra.mxu0 0.0
    %1486 = vmatpush.msra.mxu0 0.0
    %1487 = vmatpush.msra.mxu0 0.0
    %1488 = vmatpush.msra.mxu0 0.0
    %1489 = vmatpush.msra.mxu0 0.0
    %1490 = vmatpush.msra.mxu0 0.0
    %1491 = vmatpush.msra.mxu0 0.0
    %1492 = vmatpush.msra.mxu0 0.0
    %1493 = vmatpush.msra.mxu0 0.0
    %1494 = vmatpush.msra.mxu0 %v1434
    %1495 = vmatpush.msra.mxu0 %v1432
    %1496 = vmatmul.f32.gmra.mxu0 %v1478
    %v1497 = vpop.f32.mrf.mxu0
    %v1498 = vadd.f32 0.0, %v1497
    %1499 = vdwg.mxu0
    %1500 = vmatpush.msra.mxu0 0.0
    %1501 = vmatpush.msra.mxu0 0.0
    %1502 = vmatpush.msra.mxu0 0.0
    %1503 = vmatpush.msra.mxu0 0.0
    %1504 = vmatpush.msra.mxu0 0.0
    %1505 = vmatpush.msra.mxu0 0.0
    %1506 = vmatpush.msra.mxu0 0.0
    %1507 = vmatpush.msra.mxu0 0.0
    %1508 = vmatpush.msra.mxu0 0.0
    %1509 = vmatpush.msra.mxu0 0.0
    %1510 = vmatpush.msra.mxu0 0.0
    %1511 = vmatpush.msra.mxu0 0.0
    %1512 = vmatpush.msra.mxu0 0.0
    %1513 = vmatpush.msra.mxu0 0.0
    %1514 = vmatpush.msra.mxu0 %v1435
    %1515 = vmatpush.msra.mxu0 %v1433
    %1516 = vmatmul.f32.gmra.mxu0 %v1478
    %v1517 = vpop.f32.mrf.mxu0
    %v1518 = vadd.f32 0.0, %v1517
    %1519 = vdwg.mxu0
    %v1520 = vmax.f32 %v1456, %v1498
    %v1521 = vmax.f32 %v1476, %v1518
    %vm1522 = vcmp.lt.s32.totalorder %v153, 4
    %vm1523 = vmand %vm286, %vm1522
    %vm1524 = vmand %vm1523, %vm298
    %vm1525 = vcmp.lt.s32.totalorder %v158, 4
    %vm1526 = vmand %vm1524, %vm1525
    %vm1527 = vcmp.ge.s32.totalorder %v153, 4
    %vm1528 = vmand %vm1527, %vm950
    %vm1529 = vcmp.ge.s32.totalorder %v158, 4
    %vm1530 = vmand %vm1528, %vm1529
    %vm1531 = vmand %vm1530, %vm956
    %vm1532 = vmor %vm1526, %vm1531
    %vm1533 = vmand %vm402, %vm1532
    %v1534 = vsel %vm1533, 1, 0
    %v1535 = vcvt.s32.f32 %v1534
    %vm1536 = vcmask 64512
    %v1538 = vsel %vm1536, %v1535, 0
    %1540 = vmatpush.msra.mxu0 0.0
    %1541 = vmatpush.msra.mxu0 0.0
    %1542 = vmatpush.msra.mxu0 0.0
    %1543 = vmatpush.msra.mxu0 0.0
    %1544 = vmatpush.msra.mxu0 0.0
    %1545 = vmatpush.msra.mxu0 0.0
    %1546 = vmatpush.msra.mxu0 0.0
    %1547 = vmatpush.msra.mxu0 0.0
    %1548 = vmatpush.msra.mxu0 0.0
    %1549 = vmatpush.msra.mxu0 0.0
    %1550 = vmatpush.msra.mxu0 0.0
    %1551 = vmatpush.msra.mxu0 0.0
    %1552 = vmatpush.msra.mxu0 0.0
    %1553 = vmatpush.msra.mxu0 0.0
    %1554 = vmatpush.msra.mxu0 0.0
    %1555 = vmatpush.msra.mxu0 %v1520
    %1556 = vmatmul.f32.gmra.mxu0 %v1538
    %v1557 = vpop.f32.mrf.mxu0
    %v1558 = vadd.f32 0.0, %v1557
    %1559 = vdwg.mxu0
    %1560 = vmatpush.msra.mxu0 0.0
    %1561 = vmatpush.msra.mxu0 0.0
    %1562 = vmatpush.msra.mxu0 0.0
    %1563 = vmatpush.msra.mxu0 0.0
    %1564 = vmatpush.msra.mxu0 0.0
    %1565 = vmatpush.msra.mxu0 0.0
    %1566 = vmatpush.msra.mxu0 0.0
    %1567 = vmatpush.msra.mxu0 0.0
    %1568 = vmatpush.msra.mxu0 0.0
    %1569 = vmatpush.msra.mxu0 0.0
    %1570 = vmatpush.msra.mxu0 0.0
    %1571 = vmatpush.msra.mxu0 0.0
    %1572 = vmatpush.msra.mxu0 0.0
    %1573 = vmatpush.msra.mxu0 0.0
    %1574 = vmatpush.msra.mxu0 0.0
    %1575 = vmatpush.msra.mxu0 %v1521
    %1576 = vmatmul.f32.gmra.mxu0 %v1538
    %v1577 = vpop.f32.mrf.mxu0
    %v1578 = vadd.f32 0.0, %v1577
    %1579 = vdwg.mxu0
    %v1580 = vpack.c.bf16 %v1558, %v1558
    %v1581 = vpack.c.bf16 %v1578, %v1578
    %v1582 = vld [vmem:[#allocation5] sm:$0xff]
    %v1583 = vld [vmem:[#allocation5 + $0x8] sm:$0xff]
    %v1584 = vld [vmem:[#allocation5 + $0x10] sm:$0xff]
    %v1585 = vld [vmem:[#allocation5 + $0x18] sm:$0xff]
    %v1586 = vld [vmem:[#allocation5 + $0x20] sm:$0xff]
    %v1587 = vld [vmem:[#allocation5 + $0x28] sm:$0xff]
    %v1588 = vld [vmem:[#allocation5 + $0x30] sm:$0xff]
    %v1589 = vld [vmem:[#allocation5 + $0x38] sm:$0xff]
    %v1590 = vld [vmem:[#allocation5 + $0x40] sm:$0xff]
    %v1591 = vld [vmem:[#allocation5 + $0x48] sm:$0xff]
    %v1592 = vld [vmem:[#allocation5 + $0x50] sm:$0xff]
    %v1593 = vld [vmem:[#allocation5 + $0x58] sm:$0xff]
    %v1594 = vld [vmem:[#allocation5 + $0x60] sm:$0xff]
    %v1595 = vld [vmem:[#allocation5 + $0x68] sm:$0xff]
    %v1596 = vld [vmem:[#allocation5 + $0x70] sm:$0xff]
    %v1597 = vld [vmem:[#allocation5 + $0x78] sm:$0xff]
    %v1598 = vld [vmem:[#allocation5 + $0x80] sm:$0xff]
    %v1599 = vld [vmem:[#allocation5 + $0x88] sm:$0xff]
    %v1600 = vld [vmem:[#allocation5 + $0x90] sm:$0xff]
    %v1601 = vld [vmem:[#allocation5 + $0x98] sm:$0xff]
    %v1602 = vld [vmem:[#allocation5 + $0xa0] sm:$0xff]
    %v1603 = vld [vmem:[#allocation5 + $0xa8] sm:$0xff]
    %v1604 = vld [vmem:[#allocation5 + $0xb0] sm:$0xff]
    %v1605 = vld [vmem:[#allocation5 + $0xb8] sm:$0xff]
    %v1606 = vld [vmem:[#allocation5 + $0xc0] sm:$0xff]
    %v1607 = vld [vmem:[#allocation5 + $0xc8] sm:$0xff]
    %v1608 = vld [vmem:[#allocation5 + $0xd0] sm:$0xff]
    %v1609 = vld [vmem:[#allocation5 + $0xd8] sm:$0xff]
    %v1610 = vld [vmem:[#allocation5 + $0xe0] sm:$0xff]
    %v1611 = vld [vmem:[#allocation5 + $0xe8] sm:$0xff]
    %v1612 = vld [vmem:[#allocation5 + $0xf0] sm:$0xff]
    %v1613 = vld [vmem:[#allocation5 + $0xf8] sm:$0xff]
    %v1614 = vpack.c.bf16 %v1520, %v1520
    %v1615 = vpack.c.bf16 %v1521, %v1521
    %s1616 = scalar_lea.vmem [#allocation5], 256
    %v1617 = vld [vmem:[%s1616] sm:$0xff]
    %v1618 = vld [vmem:[%s1616 + $0x8] sm:$0xff]
    %v1619 = vld [vmem:[%s1616 + $0x10] sm:$0xff]
    %v1620 = vld [vmem:[%s1616 + $0x18] sm:$0xff]
    %v1621 = vld [vmem:[%s1616 + $0x20] sm:$0xff]
    %v1622 = vld [vmem:[%s1616 + $0x28] sm:$0xff]
    %v1623 = vld [vmem:[%s1616 + $0x30] sm:$0xff]
    %v1624 = vld [vmem:[%s1616 + $0x38] sm:$0xff]
    %v1625 = vld [vmem:[%s1616 + $0x40] sm:$0xff]
    %v1626 = vld [vmem:[%s1616 + $0x48] sm:$0xff]
    %v1627 = vld [vmem:[%s1616 + $0x50] sm:$0xff]
    %v1628 = vld [vmem:[%s1616 + $0x58] sm:$0xff]
    %v1629 = vld [vmem:[%s1616 + $0x60] sm:$0xff]
    %v1630 = vld [vmem:[%s1616 + $0x68] sm:$0xff]
    %v1631 = vld [vmem:[%s1616 + $0x70] sm:$0xff]
    %v1632 = vld [vmem:[%s1616 + $0x78] sm:$0xff]
    %v1633 = vld [vmem:[%s1616 + $0x80] sm:$0xff]
    %v1634 = vld [vmem:[%s1616 + $0x88] sm:$0xff]
    %v1635 = vld [vmem:[%s1616 + $0x90] sm:$0xff]
    %v1636 = vld [vmem:[%s1616 + $0x98] sm:$0xff]
    %v1637 = vld [vmem:[%s1616 + $0xa0] sm:$0xff]
    %v1638 = vld [vmem:[%s1616 + $0xa8] sm:$0xff]
    %v1639 = vld [vmem:[%s1616 + $0xb0] sm:$0xff]
    %v1640 = vld [vmem:[%s1616 + $0xb8] sm:$0xff]
    %v1641 = vld [vmem:[%s1616 + $0xc0] sm:$0xff]
    %v1642 = vld [vmem:[%s1616 + $0xc8] sm:$0xff]
    %v1643 = vld [vmem:[%s1616 + $0xd0] sm:$0xff]
    %v1644 = vld [vmem:[%s1616 + $0xd8] sm:$0xff]
    %v1645 = vld [vmem:[%s1616 + $0xe0] sm:$0xff]
    %v1646 = vld [vmem:[%s1616 + $0xe8] sm:$0xff]
    %v1647 = vld [vmem:[%s1616 + $0xf0] sm:$0xff]
    %v1648 = vld [vmem:[%s1616 + $0xf8] sm:$0xff]
    %v1681 = vunpack.c.l.b16 %v1617
    %v1682 = vunpack.c.h.b16 %v1617
    %v1683 = vunpack.c.l.b16 %v1618
    %v1684 = vunpack.c.h.b16 %v1618
    %v1685 = vunpack.c.l.b16 %v1619
    %v1686 = vunpack.c.h.b16 %v1619
    %v1687 = vunpack.c.l.b16 %v1620
    %v1688 = vunpack.c.h.b16 %v1620
    %v1689 = vunpack.c.l.b16 %v1621
    %v1690 = vunpack.c.h.b16 %v1621
    %v1691 = vunpack.c.l.b16 %v1622
    %v1692 = vunpack.c.h.b16 %v1622
    %v1693 = vunpack.c.l.b16 %v1623
    %v1694 = vunpack.c.h.b16 %v1623
    %v1695 = vunpack.c.l.b16 %v1624
    %v1696 = vunpack.c.h.b16 %v1624
    %v1697 = vunpack.c.l.b16 %v1625
    %v1698 = vunpack.c.h.b16 %v1625
    %v1699 = vunpack.c.l.b16 %v1626
    %v1700 = vunpack.c.h.b16 %v1626
    %v1701 = vunpack.c.l.b16 %v1627
    %v1702 = vunpack.c.h.b16 %v1627
    %v1703 = vunpack.c.l.b16 %v1628
    %v1704 = vunpack.c.h.b16 %v1628
    %v1705 = vunpack.c.l.b16 %v1629
    %v1706 = vunpack.c.h.b16 %v1629
    %v1707 = vunpack.c.l.b16 %v1630
    %v1708 = vunpack.c.h.b16 %v1630
    %v1709 = vunpack.c.l.b16 %v1631
    %v1710 = vunpack.c.h.b16 %v1631
    %v1711 = vunpack.c.l.b16 %v1632
    %v1712 = vunpack.c.h.b16 %v1632
    %v1713 = vunpack.c.l.b16 %v1633
    %v1714 = vunpack.c.h.b16 %v1633
    %v1715 = vunpack.c.l.b16 %v1634
    %v1716 = vunpack.c.h.b16 %v1634
    %v1717 = vunpack.c.l.b16 %v1635
    %v1718 = vunpack.c.h.b16 %v1635
    %v1719 = vunpack.c.l.b16 %v1636
    %v1720 = vunpack.c.h.b16 %v1636
    %v1721 = vunpack.c.l.b16 %v1637
    %v1722 = vunpack.c.h.b16 %v1637
    %v1723 = vunpack.c.l.b16 %v1638
    %v1724 = vunpack.c.h.b16 %v1638
    %v1725 = vunpack.c.l.b16 %v1639
    %v1726 = vunpack.c.h.b16 %v1639
    %v1727 = vunpack.c.l.b16 %v1640
    %v1728 = vunpack.c.h.b16 %v1640
    %v1729 = vunpack.c.l.b16 %v1641
    %v1730 = vunpack.c.h.b16 %v1641
    %v1731 = vunpack.c.l.b16 %v1642
    %v1732 = vunpack.c.h.b16 %v1642
    %v1733 = vunpack.c.l.b16 %v1643
    %v1734 = vunpack.c.h.b16 %v1643
    %v1735 = vunpack.c.l.b16 %v1644
    %v1736 = vunpack.c.h.b16 %v1644
    %v1737 = vunpack.c.l.b16 %v1645
    %v1738 = vunpack.c.h.b16 %v1645
    %v1739 = vunpack.c.l.b16 %v1646
    %v1740 = vunpack.c.h.b16 %v1646
    %v1741 = vunpack.c.l.b16 %v1647
    %v1742 = vunpack.c.h.b16 %v1647
    %v1743 = vunpack.c.l.b16 %v1648
    %v1744 = vunpack.c.h.b16 %v1648
    %v1745 = vpack.c.b16 %v1683, %v1681
    %v1746 = vpack.c.b16 %v1684, %v1682
    %v1747 = vpack.c.b16 %v1687, %v1685
    %v1748 = vpack.c.b16 %v1688, %v1686
    %v1749 = vpack.c.b16 %v1691, %v1689
    %v1750 = vpack.c.b16 %v1692, %v1690
    %v1751 = vpack.c.b16 %v1695, %v1693
    %v1752 = vpack.c.b16 %v1696, %v1694
    %v1753 = vpack.c.b16 %v1699, %v1697
    %v1754 = vpack.c.b16 %v1700, %v1698
    %v1755 = vpack.c.b16 %v1703, %v1701
    %v1756 = vpack.c.b16 %v1704, %v1702
    %v1757 = vpack.c.b16 %v1707, %v1705
    %v1758 = vpack.c.b16 %v1708, %v1706
    %v1759 = vpack.c.b16 %v1711, %v1709
    %v1760 = vpack.c.b16 %v1712, %v1710
    %v1761 = vpack.c.b16 %v1715, %v1713
    %v1762 = vpack.c.b16 %v1716, %v1714
    %v1763 = vpack.c.b16 %v1719, %v1717
    %v1764 = vpack.c.b16 %v1720, %v1718
    %v1765 = vpack.c.b16 %v1723, %v1721
    %v1766 = vpack.c.b16 %v1724, %v1722
    %v1767 = vpack.c.b16 %v1727, %v1725
    %v1768 = vpack.c.b16 %v1728, %v1726
    %v1769 = vpack.c.b16 %v1731, %v1729
    %v1770 = vpack.c.b16 %v1732, %v1730
    %v1771 = vpack.c.b16 %v1735, %v1733
    %v1772 = vpack.c.b16 %v1736, %v1734
    %v1773 = vpack.c.b16 %v1739, %v1737
    %v1774 = vpack.c.b16 %v1740, %v1738
    %v1775 = vpack.c.b16 %v1743, %v1741
    %v1776 = vpack.c.b16 %v1744, %v1742
    %1809 = vmatpush.bf16.msra.mxu0 %v1759
    %1810 = vmatpush.bf16.msra.mxu0 %v1757
    %1811 = vmatpush.bf16.msra.mxu0 %v1755
    %1812 = vmatpush.bf16.msra.mxu0 %v1753
    %1813 = vmatpush.bf16.msra.mxu0 %v1751
    %1814 = vmatpush.bf16.msra.mxu0 %v1749
    %1815 = vmatpush.bf16.msra.mxu0 %v1747
    %1816 = vmatpush.bf16.msra.mxu0 %v1745
    %1817 = vmatmul.bf16.gmra.mxu0 %v1614
    %v1818 = vpop.f32.mrf.mxu0
    %v1819 = vadd.f32 0.0, %v1818
    %v1820 = vpop.f32.mrf.mxu0
    %1821 = vdwg.mxu0
    %1822 = vmatpush.bf16.msra.mxu0 %v1775
    %1823 = vmatpush.bf16.msra.mxu0 %v1773
    %1824 = vmatpush.bf16.msra.mxu0 %v1771
    %1825 = vmatpush.bf16.msra.mxu0 %v1769
    %1826 = vmatpush.bf16.msra.mxu0 %v1767
    %1827 = vmatpush.bf16.msra.mxu0 %v1765
    %1828 = vmatpush.bf16.msra.mxu0 %v1763
    %1829 = vmatpush.bf16.msra.mxu0 %v1761
    %1830 = vmatmul.bf16.gmra.mxu0 %v1615
    %v1831 = vpop.f32.mrf.mxu0
    %v1832 = vadd.f32 %v1819, %v1831
    %v1833 = vpop.f32.mrf.mxu0
    %1834 = vdwg.mxu0
    %1835 = vmatpush.bf16.msra.mxu0 %v1760
    %1836 = vmatpush.bf16.msra.mxu0 %v1758
    %1837 = vmatpush.bf16.msra.mxu0 %v1756
    %1838 = vmatpush.bf16.msra.mxu0 %v1754
    %1839 = vmatpush.bf16.msra.mxu0 %v1752
    %1840 = vmatpush.bf16.msra.mxu0 %v1750
    %1841 = vmatpush.bf16.msra.mxu0 %v1748
    %1842 = vmatpush.bf16.msra.mxu0 %v1746
    %1843 = vmatmul.bf16.gmra.mxu0 %v1614
    %v1844 = vpop.f32.mrf.mxu0
    %v1845 = vadd.f32 0.0, %v1844
    %v1846 = vpop.f32.mrf.mxu0
    %1847 = vdwg.mxu0
    %1848 = vmatpush.bf16.msra.mxu0 %v1776
    %1849 = vmatpush.bf16.msra.mxu0 %v1774
    %1850 = vmatpush.bf16.msra.mxu0 %v1772
    %1851 = vmatpush.bf16.msra.mxu0 %v1770
    %1852 = vmatpush.bf16.msra.mxu0 %v1768
    %1853 = vmatpush.bf16.msra.mxu0 %v1766
    %1854 = vmatpush.bf16.msra.mxu0 %v1764
    %1855 = vmatpush.bf16.msra.mxu0 %v1762
    %1856 = vmatmul.bf16.gmra.mxu0 %v1615
    %v1857 = vpop.f32.mrf.mxu0
    %v1858 = vadd.f32 %v1845, %v1857
    %v1859 = vpop.f32.mrf.mxu0
    %1860 = vdwg.mxu0
    %v1893 = vunpack.c.l.b16 %v1582
    %v1894 = vunpack.c.h.b16 %v1582
    %v1895 = vunpack.c.l.b16 %v1583
    %v1896 = vunpack.c.h.b16 %v1583
    %v1897 = vunpack.c.l.b16 %v1584
    %v1898 = vunpack.c.h.b16 %v1584
    %v1899 = vunpack.c.l.b16 %v1585
    %v1900 = vunpack.c.h.b16 %v1585
    %v1901 = vunpack.c.l.b16 %v1586
    %v1902 = vunpack.c.h.b16 %v1586
    %v1903 = vunpack.c.l.b16 %v1587
    %v1904 = vunpack.c.h.b16 %v1587
    %v1905 = vunpack.c.l.b16 %v1588
    %v1906 = vunpack.c.h.b16 %v1588
    %v1907 = vunpack.c.l.b16 %v1589
    %v1908 = vunpack.c.h.b16 %v1589
    %v1909 = vunpack.c.l.b16 %v1590
    %v1910 = vunpack.c.h.b16 %v1590
    %v1911 = vunpack.c.l.b16 %v1591
    %v1912 = vunpack.c.h.b16 %v1591
    %v1913 = vunpack.c.l.b16 %v1592
    %v1914 = vunpack.c.h.b16 %v1592
    %v1915 = vunpack.c.l.b16 %v1593
    %v1916 = vunpack.c.h.b16 %v1593
    %v1917 = vunpack.c.l.b16 %v1594
    %v1918 = vunpack.c.h.b16 %v1594
    %v1919 = vunpack.c.l.b16 %v1595
    %v1920 = vunpack.c.h.b16 %v1595
    %v1921 = vunpack.c.l.b16 %v1596
    %v1922 = vunpack.c.h.b16 %v1596
    %v1923 = vunpack.c.l.b16 %v1597
    %v1924 = vunpack.c.h.b16 %v1597
    %v1925 = vunpack.c.l.b16 %v1598
    %v1926 = vunpack.c.h.b16 %v1598
    %v1927 = vunpack.c.l.b16 %v1599
    %v1928 = vunpack.c.h.b16 %v1599
    %v1929 = vunpack.c.l.b16 %v1600
    %v1930 = vunpack.c.h.b16 %v1600
    %v1931 = vunpack.c.l.b16 %v1601
    %v1932 = vunpack.c.h.b16 %v1601
    %v1933 = vunpack.c.l.b16 %v1602
    %v1934 = vunpack.c.h.b16 %v1602
    %v1935 = vunpack.c.l.b16 %v1603
    %v1936 = vunpack.c.h.b16 %v1603
    %v1937 = vunpack.c.l.b16 %v1604
    %v1938 = vunpack.c.h.b16 %v1604
    %v1939 = vunpack.c.l.b16 %v1605
    %v1940 = vunpack.c.h.b16 %v1605
    %v1941 = vunpack.c.l.b16 %v1606
    %v1942 = vunpack.c.h.b16 %v1606
    %v1943 = vunpack.c.l.b16 %v1607
    %v1944 = vunpack.c.h.b16 %v1607
    %v1945 = vunpack.c.l.b16 %v1608
    %v1946 = vunpack.c.h.b16 %v1608
    %v1947 = vunpack.c.l.b16 %v1609
    %v1948 = vunpack.c.h.b16 %v1609
    %v1949 = vunpack.c.l.b16 %v1610
    %v1950 = vunpack.c.h.b16 %v1610
    %v1951 = vunpack.c.l.b16 %v1611
    %v1952 = vunpack.c.h.b16 %v1611
    %v1953 = vunpack.c.l.b16 %v1612
    %v1954 = vunpack.c.h.b16 %v1612
    %v1955 = vunpack.c.l.b16 %v1613
    %v1956 = vunpack.c.h.b16 %v1613
    %v1957 = vpack.c.b16 %v1895, %v1893
    %v1958 = vpack.c.b16 %v1896, %v1894
    %v1959 = vpack.c.b16 %v1899, %v1897
    %v1960 = vpack.c.b16 %v1900, %v1898
    %v1961 = vpack.c.b16 %v1903, %v1901
    %v1962 = vpack.c.b16 %v1904, %v1902
    %v1963 = vpack.c.b16 %v1907, %v1905
    %v1964 = vpack.c.b16 %v1908, %v1906
    %v1965 = vpack.c.b16 %v1911, %v1909
    %v1966 = vpack.c.b16 %v1912, %v1910
    %v1967 = vpack.c.b16 %v1915, %v1913
    %v1968 = vpack.c.b16 %v1916, %v1914
    %v1969 = vpack.c.b16 %v1919, %v1917
    %v1970 = vpack.c.b16 %v1920, %v1918
    %v1971 = vpack.c.b16 %v1923, %v1921
    %v1972 = vpack.c.b16 %v1924, %v1922
    %v1973 = vpack.c.b16 %v1927, %v1925
    %v1974 = vpack.c.b16 %v1928, %v1926
    %v1975 = vpack.c.b16 %v1931, %v1929
    %v1976 = vpack.c.b16 %v1932, %v1930
    %v1977 = vpack.c.b16 %v1935, %v1933
    %v1978 = vpack.c.b16 %v1936, %v1934
    %v1979 = vpack.c.b16 %v1939, %v1937
    %v1980 = vpack.c.b16 %v1940, %v1938
    %v1981 = vpack.c.b16 %v1943, %v1941
    %v1982 = vpack.c.b16 %v1944, %v1942
    %v1983 = vpack.c.b16 %v1947, %v1945
    %v1984 = vpack.c.b16 %v1948, %v1946
    %v1985 = vpack.c.b16 %v1951, %v1949
    %v1986 = vpack.c.b16 %v1952, %v1950
    %v1987 = vpack.c.b16 %v1955, %v1953
    %v1988 = vpack.c.b16 %v1956, %v1954
    %2021 = vmatpush.bf16.msra.mxu0 %v1971
    %2022 = vmatpush.bf16.msra.mxu0 %v1969
    %2023 = vmatpush.bf16.msra.mxu0 %v1967
    %2024 = vmatpush.bf16.msra.mxu0 %v1965
    %2025 = vmatpush.bf16.msra.mxu0 %v1963
    %2026 = vmatpush.bf16.msra.mxu0 %v1961
    %2027 = vmatpush.bf16.msra.mxu0 %v1959
    %2028 = vmatpush.bf16.msra.mxu0 %v1957
    %2029 = vmatmul.bf16.gmra.mxu0 %v1580
    %v2030 = vpop.f32.mrf.mxu0
    %v2031 = vadd.f32 %v1832, %v2030
    %v2032 = vpop.f32.mrf.mxu0
    %2033 = vdwg.mxu0
    %2034 = vmatpush.bf16.msra.mxu0 %v1987
    %2035 = vmatpush.bf16.msra.mxu0 %v1985
    %2036 = vmatpush.bf16.msra.mxu0 %v1983
    %2037 = vmatpush.bf16.msra.mxu0 %v1981
    %2038 = vmatpush.bf16.msra.mxu0 %v1979
    %2039 = vmatpush.bf16.msra.mxu0 %v1977
    %2040 = vmatpush.bf16.msra.mxu0 %v1975
    %2041 = vmatpush.bf16.msra.mxu0 %v1973
    %2042 = vmatmul.bf16.gmra.mxu0 %v1581
    %v2043 = vpop.f32.mrf.mxu0
    %v2044 = vadd.f32 %v2031, %v2043
    %v2045 = vpop.f32.mrf.mxu0
    %2046 = vdwg.mxu0
    %2047 = vmatpush.bf16.msra.mxu0 %v1972
    %2048 = vmatpush.bf16.msra.mxu0 %v1970
    %2049 = vmatpush.bf16.msra.mxu0 %v1968
    %2050 = vmatpush.bf16.msra.mxu0 %v1966
    %2051 = vmatpush.bf16.msra.mxu0 %v1964
    %2052 = vmatpush.bf16.msra.mxu0 %v1962
    %2053 = vmatpush.bf16.msra.mxu0 %v1960
    %2054 = vmatpush.bf16.msra.mxu0 %v1958
    %2055 = vmatmul.bf16.gmra.mxu0 %v1580
    %v2056 = vpop.f32.mrf.mxu0
    %v2057 = vadd.f32 %v1858, %v2056
    %v2058 = vpop.f32.mrf.mxu0
    %2059 = vdwg.mxu0
    %2060 = vmatpush.bf16.msra.mxu0 %v1988
    %2061 = vmatpush.bf16.msra.mxu0 %v1986
    %2062 = vmatpush.bf16.msra.mxu0 %v1984
    %2063 = vmatpush.bf16.msra.mxu0 %v1982
    %2064 = vmatpush.bf16.msra.mxu0 %v1980
    %2065 = vmatpush.bf16.msra.mxu0 %v1978
    %2066 = vmatpush.bf16.msra.mxu0 %v1976
    %2067 = vmatpush.bf16.msra.mxu0 %v1974
    %2068 = vmatmul.bf16.gmra.mxu0 %v1581
    %v2069 = vpop.f32.mrf.mxu0
    %v2070 = vadd.f32 %v2057, %v2069
    %v2071 = vpop.f32.mrf.mxu0
    %2072 = vdwg.mxu0
    %vm2073 = vmand %vm636, %vm1532
    %v2074 = vsel %vm2073, 1, 0
    %v2075 = vcvt.s32.f32 %v2074
    %v2077 = vsel %vm1536, %v2075, 0
    %2079 = vmatpush.msra.mxu0 0.0
    %2080 = vmatpush.msra.mxu0 0.0
    %2081 = vmatpush.msra.mxu0 0.0
    %2082 = vmatpush.msra.mxu0 0.0
    %2083 = vmatpush.msra.mxu0 0.0
    %2084 = vmatpush.msra.mxu0 0.0
    %2085 = vmatpush.msra.mxu0 0.0
    %2086 = vmatpush.msra.mxu0 0.0
    %2087 = vmatpush.msra.mxu0 0.0
    %2088 = vmatpush.msra.mxu0 0.0
    %2089 = vmatpush.msra.mxu0 0.0
    %2090 = vmatpush.msra.mxu0 0.0
    %2091 = vmatpush.msra.mxu0 0.0
    %2092 = vmatpush.msra.mxu0 0.0
    %2093 = vmatpush.msra.mxu0 0.0
    %2094 = vmatpush.msra.mxu0 %v1520
    %2095 = vmatmul.f32.gmra.mxu0 %v2077
    %v2096 = vpop.f32.mrf.mxu0
    %v2097 = vadd.f32 0.0, %v2096
    %2098 = vdwg.mxu0
    %2099 = vmatpush.msra.mxu0 0.0
    %2100 = vmatpush.msra.mxu0 0.0
    %2101 = vmatpush.msra.mxu0 0.0
    %2102 = vmatpush.msra.mxu0 0.0
    %2103 = vmatpush.msra.mxu0 0.0
    %2104 = vmatpush.msra.mxu0 0.0
    %2105 = vmatpush.msra.mxu0 0.0
    %2106 = vmatpush.msra.mxu0 0.0
    %2107 = vmatpush.msra.mxu0 0.0
    %2108 = vmatpush.msra.mxu0 0.0
    %2109 = vmatpush.msra.mxu0 0.0
    %2110 = vmatpush.msra.mxu0 0.0
    %2111 = vmatpush.msra.mxu0 0.0
    %2112 = vmatpush.msra.mxu0 0.0
    %2113 = vmatpush.msra.mxu0 0.0
    %2114 = vmatpush.msra.mxu0 %v1521
    %2115 = vmatmul.f32.gmra.mxu0 %v2077
    %v2116 = vpop.f32.mrf.mxu0
    %v2117 = vadd.f32 0.0, %v2116
    %2118 = vdwg.mxu0
    %v2119 = vpack.c.bf16 %v2097, %v2097
    %v2120 = vpack.c.bf16 %v2117, %v2117
    %s2121 = scalar_lea.vmem [#allocation5], 512
    %v2122 = vld [vmem:[%s2121] sm:$0xff]
    %v2123 = vld [vmem:[%s2121 + $0x8] sm:$0xff]
    %v2124 = vld [vmem:[%s2121 + $0x10] sm:$0xff]
    %v2125 = vld [vmem:[%s2121 + $0x18] sm:$0xff]
    %v2126 = vld [vmem:[%s2121 + $0x20] sm:$0xff]
    %v2127 = vld [vmem:[%s2121 + $0x28] sm:$0xff]
    %v2128 = vld [vmem:[%s2121 + $0x30] sm:$0xff]
    %v2129 = vld [vmem:[%s2121 + $0x38] sm:$0xff]
    %v2130 = vld [vmem:[%s2121 + $0x40] sm:$0xff]
    %v2131 = vld [vmem:[%s2121 + $0x48] sm:$0xff]
    %v2132 = vld [vmem:[%s2121 + $0x50] sm:$0xff]
    %v2133 = vld [vmem:[%s2121 + $0x58] sm:$0xff]
    %v2134 = vld [vmem:[%s2121 + $0x60] sm:$0xff]
    %v2135 = vld [vmem:[%s2121 + $0x68] sm:$0xff]
    %v2136 = vld [vmem:[%s2121 + $0x70] sm:$0xff]
    %v2137 = vld [vmem:[%s2121 + $0x78] sm:$0xff]
    %v2138 = vld [vmem:[%s2121 + $0x80] sm:$0xff]
    %v2139 = vld [vmem:[%s2121 + $0x88] sm:$0xff]
    %v2140 = vld [vmem:[%s2121 + $0x90] sm:$0xff]
    %v2141 = vld [vmem:[%s2121 + $0x98] sm:$0xff]
    %v2142 = vld [vmem:[%s2121 + $0xa0] sm:$0xff]
    %v2143 = vld [vmem:[%s2121 + $0xa8] sm:$0xff]
    %v2144 = vld [vmem:[%s2121 + $0xb0] sm:$0xff]
    %v2145 = vld [vmem:[%s2121 + $0xb8] sm:$0xff]
    %v2146 = vld [vmem:[%s2121 + $0xc0] sm:$0xff]
    %v2147 = vld [vmem:[%s2121 + $0xc8] sm:$0xff]
    %v2148 = vld [vmem:[%s2121 + $0xd0] sm:$0xff]
    %v2149 = vld [vmem:[%s2121 + $0xd8] sm:$0xff]
    %v2150 = vld [vmem:[%s2121 + $0xe0] sm:$0xff]
    %v2151 = vld [vmem:[%s2121 + $0xe8] sm:$0xff]
    %v2152 = vld [vmem:[%s2121 + $0xf0] sm:$0xff]
    %v2153 = vld [vmem:[%s2121 + $0xf8] sm:$0xff]
    %v2186 = vunpack.c.l.b16 %v2122
    %v2187 = vunpack.c.h.b16 %v2122
    %v2188 = vunpack.c.l.b16 %v2123
    %v2189 = vunpack.c.h.b16 %v2123
    %v2190 = vunpack.c.l.b16 %v2124
    %v2191 = vunpack.c.h.b16 %v2124
    %v2192 = vunpack.c.l.b16 %v2125
    %v2193 = vunpack.c.h.b16 %v2125
    %v2194 = vunpack.c.l.b16 %v2126
    %v2195 = vunpack.c.h.b16 %v2126
    %v2196 = vunpack.c.l.b16 %v2127
    %v2197 = vunpack.c.h.b16 %v2127
    %v2198 = vunpack.c.l.b16 %v2128
    %v2199 = vunpack.c.h.b16 %v2128
    %v2200 = vunpack.c.l.b16 %v2129
    %v2201 = vunpack.c.h.b16 %v2129
    %v2202 = vunpack.c.l.b16 %v2130
    %v2203 = vunpack.c.h.b16 %v2130
    %v2204 = vunpack.c.l.b16 %v2131
    %v2205 = vunpack.c.h.b16 %v2131
    %v2206 = vunpack.c.l.b16 %v2132
    %v2207 = vunpack.c.h.b16 %v2132
    %v2208 = vunpack.c.l.b16 %v2133
    %v2209 = vunpack.c.h.b16 %v2133
    %v2210 = vunpack.c.l.b16 %v2134
    %v2211 = vunpack.c.h.b16 %v2134
    %v2212 = vunpack.c.l.b16 %v2135
    %v2213 = vunpack.c.h.b16 %v2135
    %v2214 = vunpack.c.l.b16 %v2136
    %v2215 = vunpack.c.h.b16 %v2136
    %v2216 = vunpack.c.l.b16 %v2137
    %v2217 = vunpack.c.h.b16 %v2137
    %v2218 = vunpack.c.l.b16 %v2138
    %v2219 = vunpack.c.h.b16 %v2138
    %v2220 = vunpack.c.l.b16 %v2139
    %v2221 = vunpack.c.h.b16 %v2139
    %v2222 = vunpack.c.l.b16 %v2140
    %v2223 = vunpack.c.h.b16 %v2140
    %v2224 = vunpack.c.l.b16 %v2141
    %v2225 = vunpack.c.h.b16 %v2141
    %v2226 = vunpack.c.l.b16 %v2142
    %v2227 = vunpack.c.h.b16 %v2142
    %v2228 = vunpack.c.l.b16 %v2143
    %v2229 = vunpack.c.h.b16 %v2143
    %v2230 = vunpack.c.l.b16 %v2144
    %v2231 = vunpack.c.h.b16 %v2144
    %v2232 = vunpack.c.l.b16 %v2145
    %v2233 = vunpack.c.h.b16 %v2145
    %v2234 = vunpack.c.l.b16 %v2146
    %v2235 = vunpack.c.h.b16 %v2146
    %v2236 = vunpack.c.l.b16 %v2147
    %v2237 = vunpack.c.h.b16 %v2147
    %v2238 = vunpack.c.l.b16 %v2148
    %v2239 = vunpack.c.h.b16 %v2148
    %v2240 = vunpack.c.l.b16 %v2149
    %v2241 = vunpack.c.h.b16 %v2149
    %v2242 = vunpack.c.l.b16 %v2150
    %v2243 = vunpack.c.h.b16 %v2150
    %v2244 = vunpack.c.l.b16 %v2151
    %v2245 = vunpack.c.h.b16 %v2151
    %v2246 = vunpack.c.l.b16 %v2152
    %v2247 = vunpack.c.h.b16 %v2152
    %v2248 = vunpack.c.l.b16 %v2153
    %v2249 = vunpack.c.h.b16 %v2153
    %v2250 = vpack.c.b16 %v2188, %v2186
    %v2251 = vpack.c.b16 %v2189, %v2187
    %v2252 = vpack.c.b16 %v2192, %v2190
    %v2253 = vpack.c.b16 %v2193, %v2191
    %v2254 = vpack.c.b16 %v2196, %v2194
    %v2255 = vpack.c.b16 %v2197, %v2195
    %v2256 = vpack.c.b16 %v2200, %v2198
    %v2257 = vpack.c.b16 %v2201, %v2199
    %v2258 = vpack.c.b16 %v2204, %v2202
    %v2259 = vpack.c.b16 %v2205, %v2203
    %v2260 = vpack.c.b16 %v2208, %v2206
    %v2261 = vpack.c.b16 %v2209, %v2207
    %v2262 = vpack.c.b16 %v2212, %v2210
    %v2263 = vpack.c.b16 %v2213, %v2211
    %v2264 = vpack.c.b16 %v2216, %v2214
    %v2265 = vpack.c.b16 %v2217, %v2215
    %v2266 = vpack.c.b16 %v2220, %v2218
    %v2267 = vpack.c.b16 %v2221, %v2219
    %v2268 = vpack.c.b16 %v2224, %v2222
    %v2269 = vpack.c.b16 %v2225, %v2223
    %v2270 = vpack.c.b16 %v2228, %v2226
    %v2271 = vpack.c.b16 %v2229, %v2227
    %v2272 = vpack.c.b16 %v2232, %v2230
    %v2273 = vpack.c.b16 %v2233, %v2231
    %v2274 = vpack.c.b16 %v2236, %v2234
    %v2275 = vpack.c.b16 %v2237, %v2235
    %v2276 = vpack.c.b16 %v2240, %v2238
    %v2277 = vpack.c.b16 %v2241, %v2239
    %v2278 = vpack.c.b16 %v2244, %v2242
    %v2279 = vpack.c.b16 %v2245, %v2243
    %v2280 = vpack.c.b16 %v2248, %v2246
    %v2281 = vpack.c.b16 %v2249, %v2247
    %2314 = vmatpush.bf16.msra.mxu0 %v2264
    %2315 = vmatpush.bf16.msra.mxu0 %v2262
    %2316 = vmatpush.bf16.msra.mxu0 %v2260
    %2317 = vmatpush.bf16.msra.mxu0 %v2258
    %2318 = vmatpush.bf16.msra.mxu0 %v2256
    %2319 = vmatpush.bf16.msra.mxu0 %v2254
    %2320 = vmatpush.bf16.msra.mxu0 %v2252
    %2321 = vmatpush.bf16.msra.mxu0 %v2250
    %2322 = vmatmul.bf16.gmra.mxu0 %v2119
    %v2323 = vpop.f32.mrf.mxu0
    %v2324 = vadd.f32 0.0, %v2323
    %v2325 = vpop.f32.mrf.mxu0
    %2326 = vdwg.mxu0
    %2327 = vmatpush.bf16.msra.mxu0 %v2280
    %2328 = vmatpush.bf16.msra.mxu0 %v2278
    %2329 = vmatpush.bf16.msra.mxu0 %v2276
    %2330 = vmatpush.bf16.msra.mxu0 %v2274
    %2331 = vmatpush.bf16.msra.mxu0 %v2272
    %2332 = vmatpush.bf16.msra.mxu0 %v2270
    %2333 = vmatpush.bf16.msra.mxu0 %v2268
    %2334 = vmatpush.bf16.msra.mxu0 %v2266
    %2335 = vmatmul.bf16.gmra.mxu0 %v2120
    %v2336 = vpop.f32.mrf.mxu0
    %v2337 = vadd.f32 %v2324, %v2336
    %v2338 = vpop.f32.mrf.mxu0
    %2339 = vdwg.mxu0
    %2340 = vmatpush.bf16.msra.mxu0 %v2265
    %2341 = vmatpush.bf16.msra.mxu0 %v2263
    %2342 = vmatpush.bf16.msra.mxu0 %v2261
    %2343 = vmatpush.bf16.msra.mxu0 %v2259
    %2344 = vmatpush.bf16.msra.mxu0 %v2257
    %2345 = vmatpush.bf16.msra.mxu0 %v2255
    %2346 = vmatpush.bf16.msra.mxu0 %v2253
    %2347 = vmatpush.bf16.msra.mxu0 %v2251
    %2348 = vmatmul.bf16.gmra.mxu0 %v2119
    %v2349 = vpop.f32.mrf.mxu0
    %v2350 = vadd.f32 0.0, %v2349
    %v2351 = vpop.f32.mrf.mxu0
    %2352 = vdwg.mxu0
    %2353 = vmatpush.bf16.msra.mxu0 %v2281
    %2354 = vmatpush.bf16.msra.mxu0 %v2279
    %2355 = vmatpush.bf16.msra.mxu0 %v2277
    %2356 = vmatpush.bf16.msra.mxu0 %v2275
    %2357 = vmatpush.bf16.msra.mxu0 %v2273
    %2358 = vmatpush.bf16.msra.mxu0 %v2271
    %2359 = vmatpush.bf16.msra.mxu0 %v2269
    %2360 = vmatpush.bf16.msra.mxu0 %v2267
    %2361 = vmatmul.bf16.gmra.mxu0 %v2120
    %v2362 = vpop.f32.mrf.mxu0
    %v2363 = vadd.f32 %v2350, %v2362
    %v2364 = vpop.f32.mrf.mxu0
    %2365 = vdwg.mxu0
    %v2366 = vadd.f32 %v2044, %v2337
    %v2367 = vadd.f32 %v2070, %v2363
    %v2368 = vld [vmem:[%s8] sm:$0x3]
    %v2370 = vperm.slane %v2368, 0
    %v2371 = vperm.slane %v2368, 1
    %v2374 = vadd.f32 %v2366, %v2370
    %v2375 = vadd.f32 %v2367, %v2371
    %v2376 = vmax.f32 %v2374, 0.0
    %v2377 = vmax.f32 %v2375, 0.0
    %v2378 = vsel %vm1536, %v171, 0
    %2380 = vmatpush.msra.mxu0 0.0
    %2381 = vmatpush.msra.mxu0 0.0
    %2382 = vmatpush.msra.mxu0 0.0
    %2383 = vmatpush.msra.mxu0 0.0
    %2384 = vmatpush.msra.mxu0 0.0
    %2385 = vmatpush.msra.mxu0 0.0
    %2386 = vmatpush.msra.mxu0 0.0
    %2387 = vmatpush.msra.mxu0 0.0
    %2388 = vmatpush.msra.mxu0 0.0
    %2389 = vmatpush.msra.mxu0 0.0
    %2390 = vmatpush.msra.mxu0 0.0
    %2391 = vmatpush.msra.mxu0 0.0
    %2392 = vmatpush.msra.mxu0 0.0
    %2393 = vmatpush.msra.mxu0 0.0
    %2394 = vmatpush.msra.mxu0 0.0
    %2395 = vmatpush.msra.mxu0 %v2376
    %2396 = vmatmul.f32.gmra.mxu0 %v2378
    %v2397 = vpop.f32.mrf.mxu0
    %v2398 = vadd.f32 0.0, %v2397
    %2399 = vdwg.mxu0
    %2400 = vmatpush.msra.mxu0 0.0
    %2401 = vmatpush.msra.mxu0 0.0
    %2402 = vmatpush.msra.mxu0 0.0
    %2403 = vmatpush.msra.mxu0 0.0
    %2404 = vmatpush.msra.mxu0 0.0
    %2405 = vmatpush.msra.mxu0 0.0
    %2406 = vmatpush.msra.mxu0 0.0
    %2407 = vmatpush.msra.mxu0 0.0
    %2408 = vmatpush.msra.mxu0 0.0
    %2409 = vmatpush.msra.mxu0 0.0
    %2410 = vmatpush.msra.mxu0 0.0
    %2411 = vmatpush.msra.mxu0 0.0
    %2412 = vmatpush.msra.mxu0 0.0
    %2413 = vmatpush.msra.mxu0 0.0
    %2414 = vmatpush.msra.mxu0 0.0
    %2415 = vmatpush.msra.mxu0 %v2377
    %2416 = vmatmul.f32.gmra.mxu0 %v2378
    %v2417 = vpop.f32.mrf.mxu0
    %v2418 = vadd.f32 0.0, %v2417
    %2419 = vdwg.mxu0
    %v2420 = vsel %vm1536, %v187, 0
    %2422 = vmatpush.msra.mxu0 0.0
    %2423 = vmatpush.msra.mxu0 0.0
    %2424 = vmatpush.msra.mxu0 0.0
    %2425 = vmatpush.msra.mxu0 0.0
    %2426 = vmatpush.msra.mxu0 0.0
    %2427 = vmatpush.msra.mxu0 0.0
    %2428 = vmatpush.msra.mxu0 0.0
    %2429 = vmatpush.msra.mxu0 0.0
    %2430 = vmatpush.msra.mxu0 0.0
    %2431 = vmatpush.msra.mxu0 0.0
    %2432 = vmatpush.msra.mxu0 0.0
    %2433 = vmatpush.msra.mxu0 0.0
    %2434 = vmatpush.msra.mxu0 0.0
    %2435 = vmatpush.msra.mxu0 0.0
    %2436 = vmatpush.msra.mxu0 0.0
    %2437 = vmatpush.msra.mxu0 %v2376
    %2438 = vmatmul.f32.gmra.mxu0 %v2420
    %v2439 = vpop.f32.mrf.mxu0
    %v2440 = vadd.f32 0.0, %v2439
    %2441 = vdwg.mxu0
    %2442 = vmatpush.msra.mxu0 0.0
    %2443 = vmatpush.msra.mxu0 0.0
    %2444 = vmatpush.msra.mxu0 0.0
    %2445 = vmatpush.msra.mxu0 0.0
    %2446 = vmatpush.msra.mxu0 0.0
    %2447 = vmatpush.msra.mxu0 0.0
    %2448 = vmatpush.msra.mxu0 0.0
    %2449 = vmatpush.msra.mxu0 0.0
    %2450 = vmatpush.msra.mxu0 0.0
    %2451 = vmatpush.msra.mxu0 0.0
    %2452 = vmatpush.msra.mxu0 0.0
    %2453 = vmatpush.msra.mxu0 0.0
    %2454 = vmatpush.msra.mxu0 0.0
    %2455 = vmatpush.msra.mxu0 0.0
    %2456 = vmatpush.msra.mxu0 0.0
    %2457 = vmatpush.msra.mxu0 %v2377
    %2458 = vmatmul.f32.gmra.mxu0 %v2420
    %v2459 = vpop.f32.mrf.mxu0
    %v2460 = vadd.f32 0.0, %v2459
    %2461 = vdwg.mxu0
    %v2462 = vmax.f32 %v2398, %v2440
    %v2463 = vmax.f32 %v2418, %v2460
    %vm2464 = vcmp.ge.s32.totalorder %v158, %v159
    %v2465 = vmul.u32 %v632, 2
    %vm2466 = vcmp.lt.s32.totalorder %v158, %v2465
    %vm2467 = vmand %vm2464, %vm2466
    %v2468 = vsel %vm2467, 1, 0
    %v2469 = vcvt.s32.f32 %v2468
    %v2470 = vmul.f32 %v2469, 0.5
    %vm2471 = vcmask 31744
    %v2473 = vsel %vm2471, %v2470, 0
    %vm2475 = vcmask 1043456
    %v2477 = vsel %vm2475, %v2462, 0
    %v2480 = vsel %vm2475, %v2463, 0
    %2482 = vmatpush.msra.mxu0 0.0
    %2483 = vmatpush.msra.mxu0 0.0
    %2484 = vmatpush.msra.mxu0 0.0
    %2485 = vmatpush.msra.mxu0 0.0
    %2486 = vmatpush.msra.mxu0 0.0
    %2487 = vmatpush.msra.mxu0 0.0
    %2488 = vmatpush.msra.mxu0 0.0
    %2489 = vmatpush.msra.mxu0 0.0
    %2490 = vmatpush.msra.mxu0 0.0
    %2491 = vmatpush.msra.mxu0 0.0
    %2492 = vmatpush.msra.mxu0 0.0
    %2493 = vmatpush.msra.mxu0 0.0
    %2494 = vmatpush.msra.mxu0 0.0
    %2495 = vmatpush.msra.mxu0 0.0
    %2496 = vmatpush.msra.mxu0 0.0
    %2497 = vmatpush.msra.mxu0 %v2477
    %2498 = vmatmul.f32.gmra.mxu0 %v2473
    %v2499 = vpop.f32.mrf.mxu0
    %v2500 = vadd.f32 0.0, %v2499
    %2501 = vdwg.mxu0
    %2502 = vmatpush.msra.mxu0 0.0
    %2503 = vmatpush.msra.mxu0 0.0
    %2504 = vmatpush.msra.mxu0 0.0
    %2505 = vmatpush.msra.mxu0 0.0
    %2506 = vmatpush.msra.mxu0 0.0
    %2507 = vmatpush.msra.mxu0 0.0
    %2508 = vmatpush.msra.mxu0 0.0
    %2509 = vmatpush.msra.mxu0 0.0
    %2510 = vmatpush.msra.mxu0 0.0
    %2511 = vmatpush.msra.mxu0 0.0
    %2512 = vmatpush.msra.mxu0 0.0
    %2513 = vmatpush.msra.mxu0 0.0
    %2514 = vmatpush.msra.mxu0 0.0
    %2515 = vmatpush.msra.mxu0 0.0
    %2516 = vmatpush.msra.mxu0 0.0
    %2517 = vmatpush.msra.mxu0 %v2480
    %2518 = vmatmul.f32.gmra.mxu0 %v2473
    %v2519 = vpop.f32.mrf.mxu0
    %v2520 = vadd.f32 0.0, %v2519
    %2521 = vdwg.mxu0
    %v2522 = vpack.c.bf16 %v2500, %v2500
    %v2523 = vpack.c.bf16 %v2520, %v2520
    %v2524 = vld [vmem:[%s9] sm:$0xf]
    %v2525 = vld [vmem:[%s9 + $0x4] sm:$0xf]
    %v2526 = vld [vmem:[%s9 + $0x8] sm:$0xf]
    %v2527 = vld [vmem:[%s9 + $0xc] sm:$0xf]
    %v2528 = vld [vmem:[%s9 + $0x10] sm:$0xf]
    %v2529 = vld [vmem:[%s9 + $0x14] sm:$0xf]
    %v2530 = vld [vmem:[%s9 + $0x18] sm:$0xf]
    %v2531 = vld [vmem:[%s9 + $0x1c] sm:$0xf]
    %v2532 = vld [vmem:[%s9 + $0x20] sm:$0xf]
    %v2533 = vld [vmem:[%s9 + $0x24] sm:$0xf]
    %v2534 = vld [vmem:[%s9 + $0x28] sm:$0xf]
    %v2535 = vld [vmem:[%s9 + $0x2c] sm:$0xf]
    %v2536 = vld [vmem:[%s9 + $0x30] sm:$0xf]
    %v2537 = vld [vmem:[%s9 + $0x34] sm:$0xf]
    %v2538 = vld [vmem:[%s9 + $0x38] sm:$0xf]
    %v2539 = vld [vmem:[%s9 + $0x3c] sm:$0xf]
    %v2540 = vld [vmem:[%s9 + $0x40] sm:$0xf]
    %v2541 = vld [vmem:[%s9 + $0x44] sm:$0xf]
    %v2542 = vld [vmem:[%s9 + $0x48] sm:$0xf]
    %v2543 = vld [vmem:[%s9 + $0x4c] sm:$0xf]
    %v2544 = vld [vmem:[%s9 + $0x50] sm:$0xf]
    %v2545 = vld [vmem:[%s9 + $0x54] sm:$0xf]
    %v2546 = vld [vmem:[%s9 + $0x58] sm:$0xf]
    %v2547 = vld [vmem:[%s9 + $0x5c] sm:$0xf]
    %v2548 = vld [vmem:[%s9 + $0x60] sm:$0xf]
    %v2549 = vld [vmem:[%s9 + $0x64] sm:$0xf]
    %v2550 = vld [vmem:[%s9 + $0x68] sm:$0xf]
    %v2551 = vld [vmem:[%s9 + $0x6c] sm:$0xf]
    %v2552 = vld [vmem:[%s9 + $0x70] sm:$0xf]
    %v2553 = vld [vmem:[%s9 + $0x74] sm:$0xf]
    %v2554 = vld [vmem:[%s9 + $0x78] sm:$0xf]
    %v2555 = vld [vmem:[%s9 + $0x7c] sm:$0xf]
    %v2556 = vld [vmem:[%s10] sm:$0x1]
    %v2558 = vperm.slane %v2556, 0
    %v2592 = vunpack.c.l.b16 %v2524
    %v2593 = vunpack.c.l.b16 %v2525
    %v2594 = vunpack.c.l.b16 %v2526
    %v2595 = vunpack.c.l.b16 %v2527
    %v2596 = vunpack.c.l.b16 %v2528
    %v2597 = vunpack.c.l.b16 %v2529
    %v2598 = vunpack.c.l.b16 %v2530
    %v2599 = vunpack.c.l.b16 %v2531
    %v2600 = vunpack.c.l.b16 %v2532
    %v2601 = vunpack.c.l.b16 %v2533
    %v2602 = vunpack.c.l.b16 %v2534
    %v2603 = vunpack.c.l.b16 %v2535
    %v2604 = vunpack.c.l.b16 %v2536
    %v2605 = vunpack.c.l.b16 %v2537
    %v2606 = vunpack.c.l.b16 %v2538
    %v2607 = vunpack.c.l.b16 %v2539
    %v2608 = vunpack.c.l.b16 %v2540
    %v2609 = vunpack.c.l.b16 %v2541
    %v2610 = vunpack.c.l.b16 %v2542
    %v2611 = vunpack.c.l.b16 %v2543
    %v2612 = vunpack.c.l.b16 %v2544
    %v2613 = vunpack.c.l.b16 %v2545
    %v2614 = vunpack.c.l.b16 %v2546
    %v2615 = vunpack.c.l.b16 %v2547
    %v2616 = vunpack.c.l.b16 %v2548
    %v2617 = vunpack.c.l.b16 %v2549
    %v2618 = vunpack.c.l.b16 %v2550
    %v2619 = vunpack.c.l.b16 %v2551
    %v2620 = vunpack.c.l.b16 %v2552
    %v2621 = vunpack.c.l.b16 %v2553
    %v2622 = vunpack.c.l.b16 %v2554
    %v2623 = vunpack.c.l.b16 %v2555
    %v2624 = vpack.c.b16 %v2593, %v2592
    %v2625 = vpack.c.b16 %v2595, %v2594
    %v2626 = vpack.c.b16 %v2597, %v2596
    %v2627 = vpack.c.b16 %v2599, %v2598
    %v2628 = vpack.c.b16 %v2601, %v2600
    %v2629 = vpack.c.b16 %v2603, %v2602
    %v2630 = vpack.c.b16 %v2605, %v2604
    %v2631 = vpack.c.b16 %v2607, %v2606
    %v2632 = vpack.c.b16 %v2609, %v2608
    %v2633 = vpack.c.b16 %v2611, %v2610
    %v2634 = vpack.c.b16 %v2613, %v2612
    %v2635 = vpack.c.b16 %v2615, %v2614
    %v2636 = vpack.c.b16 %v2617, %v2616
    %v2637 = vpack.c.b16 %v2619, %v2618
    %v2638 = vpack.c.b16 %v2621, %v2620
    %v2639 = vpack.c.b16 %v2623, %v2622
    %2656 = vmatpush.bf16.msra.mxu0 %v2631
    %2657 = vmatpush.bf16.msra.mxu0 %v2630
    %2658 = vmatpush.bf16.msra.mxu0 %v2629
    %2659 = vmatpush.bf16.msra.mxu0 %v2628
    %2660 = vmatpush.bf16.msra.mxu0 %v2627
    %2661 = vmatpush.bf16.msra.mxu0 %v2626
    %2662 = vmatpush.bf16.msra.mxu0 %v2625
    %2663 = vmatpush.bf16.msra.mxu0 %v2624
    %2664 = vmatmul.bf16.gmra.mxu0 %v2522
    %v2665 = vpop.f32.mrf.mxu0
    %v2666 = vadd.f32 %v2558, %v2665
    %v2667 = vpop.f32.mrf.mxu0
    %2668 = vdwg.mxu0
    %2669 = vmatpush.bf16.msra.mxu0 %v2639
    %2670 = vmatpush.bf16.msra.mxu0 %v2638
    %2671 = vmatpush.bf16.msra.mxu0 %v2637
    %2672 = vmatpush.bf16.msra.mxu0 %v2636
    %2673 = vmatpush.bf16.msra.mxu0 %v2635
    %2674 = vmatpush.bf16.msra.mxu0 %v2634
    %2675 = vmatpush.bf16.msra.mxu0 %v2633
    %2676 = vmatpush.bf16.msra.mxu0 %v2632
    %2677 = vmatmul.bf16.gmra.mxu0 %v2523
    %v2678 = vpop.f32.mrf.mxu0
    %v2679 = vadd.f32 %v2666, %v2678
    %v2680 = vpop.f32.mrf.mxu0
    %2681 = vdwg.mxu0
    %v2682 = vmax.f32 %v2679, 0.0
    %v2683 = vpack.c.bf16 %v2682, %v2682
    %v2684 = vld [vmem:[%s11] sm:$0xf]
    %v2685 = vld [vmem:[%s11 + $0x4] sm:$0xf]
    %v2686 = vld [vmem:[%s11 + $0x8] sm:$0xf]
    %v2687 = vld [vmem:[%s11 + $0xc] sm:$0xf]
    %v2688 = vld [vmem:[%s11 + $0x10] sm:$0xf]
    %v2689 = vld [vmem:[%s11 + $0x14] sm:$0xf]
    %v2690 = vld [vmem:[%s11 + $0x18] sm:$0xf]
    %v2691 = vld [vmem:[%s11 + $0x1c] sm:$0xf]
    %v2692 = vld [vmem:[%s12] sm:$0x1]
    %v2694 = vperm.slane %v2692, 0
    %v2704 = vunpack.c.l.b16 %v2684
    %v2705 = vunpack.c.l.b16 %v2685
    %v2706 = vunpack.c.l.b16 %v2686
    %v2707 = vunpack.c.l.b16 %v2687
    %v2708 = vunpack.c.l.b16 %v2688
    %v2709 = vunpack.c.l.b16 %v2689
    %v2710 = vunpack.c.l.b16 %v2690
    %v2711 = vunpack.c.l.b16 %v2691
    %v2712 = vpack.c.b16 %v2705, %v2704
    %v2713 = vpack.c.b16 %v2707, %v2706
    %v2714 = vpack.c.b16 %v2709, %v2708
    %v2715 = vpack.c.b16 %v2711, %v2710
    %v2721 = vsel %vm191, %v2683, 0
    %2723 = vmatpush.bf16.msra.mxu0 0
    %2724 = vmatpush.bf16.msra.mxu0 0
    %2725 = vmatpush.bf16.msra.mxu0 0
    %2726 = vmatpush.bf16.msra.mxu0 0
    %2727 = vmatpush.bf16.msra.mxu0 %v2715
    %2728 = vmatpush.bf16.msra.mxu0 %v2714
    %2729 = vmatpush.bf16.msra.mxu0 %v2713
    %2730 = vmatpush.bf16.msra.mxu0 %v2712
    %2731 = vmatmul.bf16.gmra.mxu0 %v2721
    %v2732 = vpop.f32.mrf.mxu0
    %v2733 = vadd.f32 %v2694, %v2732
    %v2734 = vpop.f32.mrf.mxu0
    %2735 = vdwg.mxu0
    %vm2736 = vcmask 17408
    %2737 = vst.msk [vmem:[#allocation7] sm:$0x3] %vm2736, %v2733
    // Predicated region
    $region62: #{cnn1d_large_forward.1} parent=1 // pred_check
      _
    $region63: #{cnn1d_large_forward.1} parent=1 // pred_check_branch
      %2739 = sbr.rel (0) target = $region65
    $region64: #{cnn1d_large_forward.1} parent=1 // pred_region
      %2741 = vsyncadd [#allocation4], 0
      %s2743 = sshll.u32 [#allocation7], 4
      %s2744 = int_to_ptr.vmem [resolvable:$true] %s2743
      %s2745 = sshll.u32 %s13, 4
      %s2746 = int_to_ptr.hbm [resolvable:$true] %s2745
      %2748 = dma.vmem_to_hbm [thread:$0]  %s2744, 32, %s2746, [#allocation4]
    $region65: #{cnn1d_large_forward.1} parent=1 // pred_fallthru
      _
    // Predicated region
    $region66: #{cnn1d_large_forward.1} parent=1 // pred_check
      _
    $region67: #{cnn1d_large_forward.1} parent=1 // pred_check_branch
      %2750 = sbr.rel (0) target = $region69
    $region68: #{cnn1d_large_forward.1} parent=1 // pred_region
      %2752 = dma.done [#allocation4], 32
    $region69: #{cnn1d_large_forward.1} parent=1 // pred_fallthru
      _
    %2753 = vsyncpa [#allocation3], 1
    %2754 = vsyncpa [#allocation6], 1
    %2755 = vsyncpa [#allocation4], 1

</llo_original>
